<compile_context>
chip_gen: v6e
topology: v6e:2x2x1
jax: 0.10.0
libtpu: 0.0.40
codegen_flags: <defaults>
</compile_context>

<pallas_src>
import functools

import jax
import jax.numpy as jnp
import numpy as np
from jax.experimental import pallas as pl
from jax.experimental.pallas import tpu as pltpu


def _round_up(x, m):
    return ((x + m - 1) // m) * m


def qu_encoder_kernel(x_ref, wih0_ref, b0_ref, wih_hid_ref, bhid_ref, whh_ref,
                      wfc_ref, bfc_ref, out_ref, proj_ref,
                      *, seq_len, batch, hidden_size, num_layers, f_pad):
    """Single invocation: whole sequence in VMEM, recurrence in-kernel."""
    T, B, H, L = seq_len, batch, hidden_size, num_layers

    # ---- layer-0 input projection for all time steps: one big MXU pass ----
    # tanh(embedding) @ W_ih0 + (b_ih0 + b_hh0)   -> (T*B, 4H)
    proj_ref[...] = (
        jnp.dot(jnp.tanh(x_ref[...]), wih0_ref[...],
                preferred_element_type=jnp.float32)
        + b0_ref[...])

    # ---- hoist loop-invariant weight / bias loads out of the recurrence ----
    whh = [whh_ref[l] for l in range(L)]                      # (H, 4H) each
    wih_h = [wih_hid_ref[l - 1] for l in range(1, L)]         # (H, 4H) each
    b_h = [bhid_ref[l - 1] for l in range(1, L)]              # (1, 4H) each

    zeros = jnp.zeros((B, H), jnp.float32)
    init = (tuple(zeros for _ in range(L)), tuple(zeros for _ in range(L)))

    def step(t, carry):
        hs, cs = carry
        base = pl.multiple_of(t * B, B)                        # sublane-aligned
        layer_in = None
        new_h, new_c = [], []
        for l in range(L):                                     # static unroll
            if l == 0:
                gates = (proj_ref[pl.ds(base, B), :]
                         + jnp.dot(hs[0], whh[0],
                                   preferred_element_type=jnp.float32))
            else:
                gates = (jnp.dot(layer_in, wih_h[l - 1],
                                 preferred_element_type=jnp.float32)
                         + jnp.dot(hs[l], whh[l],
                                   preferred_element_type=jnp.float32)
                         + b_h[l - 1])
            # two full-width transcendentals instead of four narrow ones
            sg = jax.nn.sigmoid(gates)                         # (B, 4H)
            th = jnp.tanh(gates)                               # (B, 4H)
            i = sg[:, 0 * H:1 * H]
            f = sg[:, 1 * H:2 * H]
            g = th[:, 2 * H:3 * H]
            o = sg[:, 3 * H:4 * H]
            c_new = f * cs[l] + i * g
            h_new = o * jnp.tanh(c_new)
            new_h.append(h_new)
            new_c.append(c_new)
            layer_in = h_new
        return tuple(new_h), tuple(new_c)

    hs, cs = jax.lax.fori_loop(0, T, step, init, unroll=True)

    # ---- fc head: accumulated per-block dots, no concatenate ----
    acc = jnp.zeros((B, f_pad), jnp.float32)
    for l in range(L):
        acc = acc + jnp.dot(jnp.tanh(hs[l]), wfc_ref[2 * l],
                            preferred_element_type=jnp.float32)
        acc = acc + jnp.dot(jnp.tanh(cs[l]), wfc_ref[2 * l + 1],
                            preferred_element_type=jnp.float32)
    out_ref[...] = acc + bfc_ref[...]


def make_params(key, qu_vocab_size, word_embed, hidden_size, num_hidden,
                qu_feature_size):
    """Deterministic synthetic parameters with PyTorch-convention shapes."""
    H = hidden_size
    ks = jax.random.split(key, 3 + 4 * num_hidden)
    scale = 1.0 / np.sqrt(H)
    p = {"embedding": jax.random.normal(ks[0], (qu_vocab_size, word_embed),
                                        jnp.float32) * 0.5}
    w_ih, w_hh, b_ih, b_hh = [], [], [], []
    for l in range(num_hidden):
        in_dim = word_embed if l == 0 else H
        k0, k1, k2, k3 = ks[1 + 4 * l: 5 + 4 * l]
        w_ih.append(jax.random.uniform(k0, (4 * H, in_dim), jnp.float32,
                                       -scale, scale))
        w_hh.append(jax.random.uniform(k1, (4 * H, H), jnp.float32, -scale, scale))
        b_ih.append(jax.random.uniform(k2, (4 * H,), jnp.float32, -scale, scale))
        b_hh.append(jax.random.uniform(k3, (4 * H,), jnp.float32, -scale, scale))
    p["w_ih"], p["w_hh"], p["b_ih"], p["b_hh"] = w_ih, w_hh, b_ih, b_hh
    fc_in = 2 * num_hidden * H
    p["w_fc"] = jax.random.uniform(ks[-2], (qu_feature_size, fc_in), jnp.float32,
                                   -1.0 / np.sqrt(fc_in), 1.0 / np.sqrt(fc_in))
    p["b_fc"] = jax.random.uniform(ks[-1], (qu_feature_size,), jnp.float32,
                                   -1.0 / np.sqrt(fc_in), 1.0 / np.sqrt(fc_in))
    return p


def qu_encoder_forward(question, params, *, word_embed, hidden_size, num_hidden,
                       qu_feature_size):
    """JAX glue (embedding gather, weight packing/padding) + Pallas kernel."""
    B, T = question.shape
    H, L, F = hidden_size, num_hidden, qu_feature_size
    G = 4 * H
    B_pad = _round_up(B, 8)            # sublane-aligned batch
    F_pad = _round_up(F, 128)          # lane-dense output

    # Embedding lookup (gather is glue), time-major, batch-padded, flattened.
    emb = jnp.take(params["embedding"], question, axis=0)          # (B, T, E)
    x = jnp.transpose(emb, (1, 0, 2)).astype(jnp.float32)          # (T, B, E)
    if B_pad > B:
        x = jnp.pad(x, ((0, 0), (0, B_pad - B), (0, 0)))
    x2d = x.reshape(T * B_pad, word_embed)                         # (T*Bp, E)

    # Layer-0 weights (true input dim, no lane padding).
    wih0 = params["w_ih"][0].T.astype(jnp.float32)                 # (E, 4H)
    b0 = (params["b_ih"][0] + params["b_hh"][0]).reshape(1, G).astype(jnp.float32)

    # Hidden-layer weights (l >= 1).
    nrest = max(L - 1, 1)
    wih_hid = jnp.zeros((nrest, H, G), jnp.float32)
    b_hid = jnp.zeros((nrest, 1, G), jnp.float32)
    whh = jnp.zeros((L, H, G), jnp.float32)
    for l in range(L):
        whh = whh.at[l].set(params["w_hh"][l].T)
        if l >= 1:
            wih_hid = wih_hid.at[l - 1].set(params["w_ih"][l].T)
            b_hid = b_hid.at[l - 1, 0].set(params["b_ih"][l] + params["b_hh"][l])

    # fc weight split into per-(layer, h/c) row blocks; F padded to F_pad.
    wfc_t = params["w_fc"].T.astype(jnp.float32)                   # (2LH, F)
    wfc = jnp.zeros((2 * L, H, F_pad), jnp.float32)
    for k in range(2 * L):
        wfc = wfc.at[k, :, :F].set(wfc_t[k * H:(k + 1) * H, :])
    bfc = jnp.zeros((1, F_pad), jnp.float32).at[0, :F].set(params["b_fc"])

    kernel = functools.partial(qu_encoder_kernel, seq_len=T, batch=B_pad,
                               hidden_size=H, num_layers=L, f_pad=F_pad)

    out = pl.pallas_call(
        kernel,
        out_shape=jax.ShapeDtypeStruct((B_pad, F_pad), jnp.float32),
        grid_spec=pltpu.PrefetchScalarGridSpec(
            num_scalar_prefetch=0,
            grid=(1,),
            in_specs=[
                pl.BlockSpec((T * B_pad, word_embed), lambda i: (0, 0)),   # x
                pl.BlockSpec((word_embed, G), lambda i: (0, 0)),           # W_ih0
                pl.BlockSpec((1, G), lambda i: (0, 0)),                    # b0
                pl.BlockSpec((nrest, H, G), lambda i: (0, 0, 0)),          # W_ih l>=1
                pl.BlockSpec((nrest, 1, G), lambda i: (0, 0, 0)),          # b   l>=1
                pl.BlockSpec((L, H, G), lambda i: (0, 0, 0)),              # W_hh
                pl.BlockSpec((2 * L, H, F_pad), lambda i: (0, 0, 0)),      # W_fc blocks
                pl.BlockSpec((1, F_pad), lambda i: (0, 0)),                # b_fc
            ],
            out_specs=pl.BlockSpec((B_pad, F_pad), lambda i: (0, 0)),
            scratch_shapes=[pltpu.VMEM((T * B_pad, G), jnp.float32)],      # proj
        ),
        compiler_params=pltpu.CompilerParams(
            dimension_semantics=("arbitrary",)),
    )(x2d, wih0, b0, wih_hid, b_hid, whh, wfc, bfc)

    return out[:B, :F]


def qu_encoder_reference(question, p, *, word_embed, hidden_size, num_hidden):
    """Pure-JAX reference matching torch semantics exactly."""
    H, L = hidden_size, num_hidden
    B, T = question.shape
    x = jnp.tanh(jnp.take(p["embedding"], question, axis=0))       # (B, T, E)
    x = jnp.transpose(x, (1, 0, 2))                                # (T, B, E)
    h = jnp.zeros((L, B, H), jnp.float32)
    c = jnp.zeros((L, B, H), jnp.float32)
    for t in range(T):
        inp = x[t]
        new_h, new_c = [], []
        for l in range(L):
            gates = (inp @ p["w_ih"][l].T + p["b_ih"][l]
                     + h[l] @ p["w_hh"][l].T + p["b_hh"][l])
            i = jax.nn.sigmoid(gates[:, :H])
            f = jax.nn.sigmoid(gates[:, H:2 * H])
            g = jnp.tanh(gates[:, 2 * H:3 * H])
            o = jax.nn.sigmoid(gates[:, 3 * H:])
            cl = f * c[l] + i * g
            hl = o * jnp.tanh(cl)
            new_h.append(hl)
            new_c.append(cl)
            inp = hl
        h, c = jnp.stack(new_h), jnp.stack(new_c)
    feat = jnp.concatenate([h, c], axis=2)                         # (L, B, 2H)
    feat = jnp.transpose(feat, (1, 0, 2)).reshape(B, -1)           # (B, 2*L*H)
    feat = jnp.tanh(feat)
    return feat @ p["w_fc"].T + p["b_fc"]


if __name__ == "__main__":
    # Small, module-consistent sizes.
    QU_VOCAB, WORD_EMBED, HIDDEN, NUM_HIDDEN, QU_FEAT = 50, 16, 32, 2, 24
    BATCH, SEQ = 2, 8

    key = jax.random.PRNGKey(0)
    k_param, k_q = jax.random.split(key)
    params = make_params(k_param, QU_VOCAB, WORD_EMBED, HIDDEN, NUM_HIDDEN, QU_FEAT)
    question = jax.random.randint(k_q, (BATCH, SEQ), 0, QU_VOCAB, dtype=jnp.int32)

    out = qu_encoder_forward(question, params, word_embed=WORD_EMBED,
                             hidden_size=HIDDEN, num_hidden=NUM_HIDDEN,
                             qu_feature_size=QU_FEAT)
    out = jax.block_until_ready(out)

    ref = qu_encoder_reference(question, params, word_embed=WORD_EMBED,
                               hidden_size=HIDDEN, num_hidden=NUM_HIDDEN)
    np.testing.assert_allclose(np.asarray(out), np.asarray(ref),
                               rtol=1e-4, atol=1e-4)
    print("KERNEL_OK")
</pallas_src>

<mosaic_0001>
module attributes {stable_mosaic.version = 11 : i64} {
  func.func @qu_encoder_kernel(%arg0: i32, %arg1: memref<64x16xf32, #tpu.memory_space<vmem>>, %arg2: memref<16x128xf32, #tpu.memory_space<vmem>>, %arg3: memref<1x128xf32, #tpu.memory_space<vmem>>, %arg4: memref<1x32x128xf32, #tpu.memory_space<vmem>>, %arg5: memref<1x1x128xf32, #tpu.memory_space<vmem>>, %arg6: memref<2x32x128xf32, #tpu.memory_space<vmem>>, %arg7: memref<4x32x128xf32, #tpu.memory_space<vmem>>, %arg8: memref<1x128xf32, #tpu.memory_space<vmem>>, %arg9: memref<8x128xf32, #tpu.memory_space<vmem>>, %arg10: memref<64x128xf32, #tpu.memory_space<vmem>>) attributes {dimension_semantics = [#tpu.dimension_semantics<arbitrary>], iteration_bounds = array<i64: 1>, scalar_prefetch = 0 : i64, scratch_operands = 1 : i64, tpu.core_type = #tpu.core_type<tc>, window_params = [{pipeline_mode = #tpu.pipeline_mode<synchronous>, transform_indices = @transform_0, window_bounds = array<i64: 64, 16>}, {pipeline_mode = #tpu.pipeline_mode<synchronous>, transform_indices = @transform_1, window_bounds = array<i64: 16, 128>}, {pipeline_mode = #tpu.pipeline_mode<synchronous>, transform_indices = @transform_2, window_bounds = array<i64: 1, 128>}, {pipeline_mode = #tpu.pipeline_mode<synchronous>, transform_indices = @transform_3, window_bounds = array<i64: 1, 32, 128>}, {pipeline_mode = #tpu.pipeline_mode<synchronous>, transform_indices = @transform_4, window_bounds = array<i64: 1, 1, 128>}, {pipeline_mode = #tpu.pipeline_mode<synchronous>, transform_indices = @transform_5, window_bounds = array<i64: 2, 32, 128>}, {pipeline_mode = #tpu.pipeline_mode<synchronous>, transform_indices = @transform_6, window_bounds = array<i64: 4, 32, 128>}, {pipeline_mode = #tpu.pipeline_mode<synchronous>, transform_indices = @transform_7, window_bounds = array<i64: 1, 128>}, {pipeline_mode = #tpu.pipeline_mode<synchronous>, transform_indices = @transform_8, window_bounds = array<i64: 8, 128>}]} {
    %c0 = arith.constant 0 : index
    %c0_0 = arith.constant 0 : index
    %0 = vector.load %arg1[%c0, %c0_0] : memref<64x16xf32, #tpu.memory_space<vmem>>, vector<64x16xf32>
    %1 = math.tanh %0 : vector<64x16xf32>
    %c0_1 = arith.constant 0 : index
    %c0_2 = arith.constant 0 : index
    %2 = vector.load %arg2[%c0_1, %c0_2] : memref<16x128xf32, #tpu.memory_space<vmem>>, vector<16x128xf32>
    %cst = arith.constant dense<0.000000e+00> : vector<64x128xf32>
    %3 = tpu.matmul %1, %2, %cst {dimension_numbers = #tpu.dot_dimension_numbers<[1], [0], [0], [1], [0, 0, 1, 1], [], []>} : vector<64x16xf32>, vector<16x128xf32>, vector<64x128xf32> -> vector<64x128xf32>
    %c0_3 = arith.constant 0 : index
    %c0_4 = arith.constant 0 : index
    %4 = vector.load %arg3[%c0_3, %c0_4] : memref<1x128xf32, #tpu.memory_space<vmem>>, vector<1x128xf32>
    %5 = vector.broadcast %4 : vector<1x128xf32> to vector<64x128xf32>
    %6 = arith.addf %3, %5 : vector<64x128xf32>
    %c0_5 = arith.constant 0 : index
    %c0_6 = arith.constant 0 : index
    %7 = vector.load %arg10[%c0_5, %c0_6] : memref<64x128xf32, #tpu.memory_space<vmem>>, vector<64x128xf32>
    tpu.vector_store %arg10[%c0_5, %c0_6], %6 {strides = array<i32>} : memref<64x128xf32, #tpu.memory_space<vmem>>, vector<64x128xf32>,
    %c0_7 = arith.constant 0 : index
    %c0_8 = arith.constant 0 : index
    %c0_9 = arith.constant 0 : index
    %8 = vector.load %arg6[%c0_7, %c0_8, %c0_9] : memref<2x32x128xf32, #tpu.memory_space<vmem>>, vector<1x32x128xf32>
    %9 = vector.shape_cast %8 : vector<1x32x128xf32> to vector<32x128xf32>
    %c1 = arith.constant 1 : index
    %c0_10 = arith.constant 0 : index
    %c0_11 = arith.constant 0 : index
    %10 = vector.load %arg6[%c1, %c0_10, %c0_11] : memref<2x32x128xf32, #tpu.memory_space<vmem>>, vector<1x32x128xf32>
    %11 = vector.shape_cast %10 : vector<1x32x128xf32> to vector<32x128xf32>
    %c0_12 = arith.constant 0 : index
    %c0_13 = arith.constant 0 : index
    %c0_14 = arith.constant 0 : index
    %12 = vector.load %arg4[%c0_12, %c0_13, %c0_14] : memref<1x32x128xf32, #tpu.memory_space<vmem>>, vector<1x32x128xf32>
    %13 = vector.shape_cast %12 : vector<1x32x128xf32> to vector<32x128xf32>
    %c0_15 = arith.constant 0 : index
    %c0_16 = arith.constant 0 : index
    %c0_17 = arith.constant 0 : index
    %14 = vector.load %arg5[%c0_15, %c0_16, %c0_17] : memref<1x1x128xf32, #tpu.memory_space<vmem>>, vector<1x1x128xf32>
    %15 = vector.shape_cast %14 : vector<1x1x128xf32> to vector<1x128xf32>
    %cst_18 = arith.constant 0.000000e+00 : f32
    %16 = vector.broadcast %cst_18 : f32 to vector<8x32xf32>
    %c0_i32 = arith.constant 0 : i32
    %c8_i32 = arith.constant 8 : i32
    %17 = arith.muli %c0_i32, %c8_i32 : i32
    %18 = tpu.assume_multiple %17, 8 : i32
    %19 = arith.index_cast %18 : i32 to index
    %c0_19 = arith.constant 0 : index
    %20 = vector.load %arg10[%19, %c0_19] : memref<64x128xf32, #tpu.memory_space<vmem>>, vector<8x128xf32>
    %cst_20 = arith.constant dense<0.000000e+00> : vector<8x128xf32>
    %21 = tpu.matmul %16, %9, %cst_20 {dimension_numbers = #tpu.dot_dimension_numbers<[1], [0], [0], [1], [0, 0, 1, 1], [], []>} : vector<8x32xf32>, vector<32x128xf32>, vector<8x128xf32> -> vector<8x128xf32>
    %22 = arith.addf %20, %21 : vector<8x128xf32>
    %23 = arith.negf %22 : vector<8x128xf32>
    %24 = math.exp %23 : vector<8x128xf32>
    %cst_21 = arith.constant 1.000000e+00 : f32
    %25 = vector.broadcast %cst_21 : f32 to vector<8x128xf32>
    %26 = arith.addf %25, %24 : vector<8x128xf32>
    %27 = arith.divf %25, %26 : vector<8x128xf32>
    %28 = math.tanh %22 : vector<8x128xf32>
    %29 = vector.extract_strided_slice %27 {offsets = [0, 0], sizes = [8, 32], strides = [1, 1]} : vector<8x128xf32> to vector<8x32xf32>
    %30 = vector.extract_strided_slice %27 {offsets = [0, 32], sizes = [8, 32], strides = [1, 1]} : vector<8x128xf32> to vector<8x32xf32>
    %31 = vector.extract_strided_slice %28 {offsets = [0, 64], sizes = [8, 32], strides = [1, 1]} : vector<8x128xf32> to vector<8x32xf32>
    %32 = vector.extract_strided_slice %27 {offsets = [0, 96], sizes = [8, 32], strides = [1, 1]} : vector<8x128xf32> to vector<8x32xf32>
    %33 = arith.mulf %30, %16 : vector<8x32xf32>
    %34 = arith.mulf %29, %31 : vector<8x32xf32>
    %35 = arith.addf %33, %34 : vector<8x32xf32>
    %36 = math.tanh %35 : vector<8x32xf32>
    %37 = arith.mulf %32, %36 : vector<8x32xf32>
    %cst_22 = arith.constant dense<0.000000e+00> : vector<8x128xf32>
    %38 = tpu.matmul %37, %13, %cst_22 {dimension_numbers = #tpu.dot_dimension_numbers<[1], [0], [0], [1], [0, 0, 1, 1], [], []>} : vector<8x32xf32>, vector<32x128xf32>, vector<8x128xf32> -> vector<8x128xf32>
    %cst_23 = arith.constant dense<0.000000e+00> : vector<8x128xf32>
    %39 = tpu.matmul %16, %11, %cst_23 {dimension_numbers = #tpu.dot_dimension_numbers<[1], [0], [0], [1], [0, 0, 1, 1], [], []>} : vector<8x32xf32>, vector<32x128xf32>, vector<8x128xf32> -> vector<8x128xf32>
    %40 = arith.addf %38, %39 : vector<8x128xf32>
    %41 = vector.broadcast %15 : vector<1x128xf32> to vector<8x128xf32>
    %42 = arith.addf %40, %41 : vector<8x128xf32>
    %43 = arith.negf %42 : vector<8x128xf32>
    %44 = math.exp %43 : vector<8x128xf32>
    %cst_24 = arith.constant 1.000000e+00 : f32
    %45 = vector.broadcast %cst_24 : f32 to vector<8x128xf32>
    %46 = arith.addf %45, %44 : vector<8x128xf32>
    %47 = arith.divf %45, %46 : vector<8x128xf32>
    %48 = math.tanh %42 : vector<8x128xf32>
    %49 = vector.extract_strided_slice %47 {offsets = [0, 0], sizes = [8, 32], strides = [1, 1]} : vector<8x128xf32> to vector<8x32xf32>
    %50 = vector.extract_strided_slice %47 {offsets = [0, 32], sizes = [8, 32], strides = [1, 1]} : vector<8x128xf32> to vector<8x32xf32>
    %51 = vector.extract_strided_slice %48 {offsets = [0, 64], sizes = [8, 32], strides = [1, 1]} : vector<8x128xf32> to vector<8x32xf32>
    %52 = vector.extract_strided_slice %47 {offsets = [0, 96], sizes = [8, 32], strides = [1, 1]} : vector<8x128xf32> to vector<8x32xf32>
    %53 = arith.mulf %50, %16 : vector<8x32xf32>
    %54 = arith.mulf %49, %51 : vector<8x32xf32>
    %55 = arith.addf %53, %54 : vector<8x32xf32>
    %56 = math.tanh %55 : vector<8x32xf32>
    %57 = arith.mulf %52, %56 : vector<8x32xf32>
    %c1_i32 = arith.constant 1 : i32
    %c8_i32_25 = arith.constant 8 : i32
    %58 = arith.muli %c1_i32, %c8_i32_25 : i32
    %59 = tpu.assume_multiple %58, 8 : i32
    %60 = arith.index_cast %59 : i32 to index
    %c0_26 = arith.constant 0 : index
    %61 = vector.load %arg10[%60, %c0_26] : memref<64x128xf32, #tpu.memory_space<vmem>>, vector<8x128xf32>
    %cst_27 = arith.constant dense<0.000000e+00> : vector<8x128xf32>
    %62 = tpu.matmul %37, %9, %cst_27 {dimension_numbers = #tpu.dot_dimension_numbers<[1], [0], [0], [1], [0, 0, 1, 1], [], []>} : vector<8x32xf32>, vector<32x128xf32>, vector<8x128xf32> -> vector<8x128xf32>
    %63 = arith.addf %61, %62 : vector<8x128xf32>
    %64 = arith.negf %63 : vector<8x128xf32>
    %65 = math.exp %64 : vector<8x128xf32>
    %cst_28 = arith.constant 1.000000e+00 : f32
    %66 = vector.broadcast %cst_28 : f32 to vector<8x128xf32>
    %67 = arith.addf %66, %65 : vector<8x128xf32>
    %68 = arith.divf %66, %67 : vector<8x128xf32>
    %69 = math.tanh %63 : vector<8x128xf32>
    %70 = vector.extract_strided_slice %68 {offsets = [0, 0], sizes = [8, 32], strides = [1, 1]} : vector<8x128xf32> to vector<8x32xf32>
    %71 = vector.extract_strided_slice %68 {offsets = [0, 32], sizes = [8, 32], strides = [1, 1]} : vector<8x128xf32> to vector<8x32xf32>
    %72 = vector.extract_strided_slice %69 {offsets = [0, 64], sizes = [8, 32], strides = [1, 1]} : vector<8x128xf32> to vector<8x32xf32>
    %73 = vector.extract_strided_slice %68 {offsets = [0, 96], sizes = [8, 32], strides = [1, 1]} : vector<8x128xf32> to vector<8x32xf32>
    %74 = arith.mulf %71, %35 : vector<8x32xf32>
    %75 = arith.mulf %70, %72 : vector<8x32xf32>
    %76 = arith.addf %74, %75 : vector<8x32xf32>
    %77 = math.tanh %76 : vector<8x32xf32>
    %78 = arith.mulf %73, %77 : vector<8x32xf32>
    %cst_29 = arith.constant dense<0.000000e+00> : vector<8x128xf32>
    %79 = tpu.matmul %78, %13, %cst_29 {dimension_numbers = #tpu.dot_dimension_numbers<[1], [0], [0], [1], [0, 0, 1, 1], [], []>} : vector<8x32xf32>, vector<32x128xf32>, vector<8x128xf32> -> vector<8x128xf32>
    %cst_30 = arith.constant dense<0.000000e+00> : vector<8x128xf32>
    %80 = tpu.matmul %57, %11, %cst_30 {dimension_numbers = #tpu.dot_dimension_numbers<[1], [0], [0], [1], [0, 0, 1, 1], [], []>} : vector<8x32xf32>, vector<32x128xf32>, vector<8x128xf32> -> vector<8x128xf32>
    %81 = arith.addf %79, %80 : vector<8x128xf32>
    %82 = vector.broadcast %15 : vector<1x128xf32> to vector<8x128xf32>
    %83 = arith.addf %81, %82 : vector<8x128xf32>
    %84 = arith.negf %83 : vector<8x128xf32>
    %85 = math.exp %84 : vector<8x128xf32>
    %cst_31 = arith.constant 1.000000e+00 : f32
    %86 = vector.broadcast %cst_31 : f32 to vector<8x128xf32>
    %87 = arith.addf %86, %85 : vector<8x128xf32>
    %88 = arith.divf %86, %87 : vector<8x128xf32>
    %89 = math.tanh %83 : vector<8x128xf32>
    %90 = vector.extract_strided_slice %88 {offsets = [0, 0], sizes = [8, 32], strides = [1, 1]} : vector<8x128xf32> to vector<8x32xf32>
    %91 = vector.extract_strided_slice %88 {offsets = [0, 32], sizes = [8, 32], strides = [1, 1]} : vector<8x128xf32> to vector<8x32xf32>
    %92 = vector.extract_strided_slice %89 {offsets = [0, 64], sizes = [8, 32], strides = [1, 1]} : vector<8x128xf32> to vector<8x32xf32>
    %93 = vector.extract_strided_slice %88 {offsets = [0, 96], sizes = [8, 32], strides = [1, 1]} : vector<8x128xf32> to vector<8x32xf32>
    %94 = arith.mulf %91, %55 : vector<8x32xf32>
    %95 = arith.mulf %90, %92 : vector<8x32xf32>
    %96 = arith.addf %94, %95 : vector<8x32xf32>
    %97 = math.tanh %96 : vector<8x32xf32>
    %98 = arith.mulf %93, %97 : vector<8x32xf32>
    %c2_i32 = arith.constant 2 : i32
    %c8_i32_32 = arith.constant 8 : i32
    %99 = arith.muli %c2_i32, %c8_i32_32 : i32
    %100 = tpu.assume_multiple %99, 8 : i32
    %101 = arith.index_cast %100 : i32 to index
    %c0_33 = arith.constant 0 : index
    %102 = vector.load %arg10[%101, %c0_33] : memref<64x128xf32, #tpu.memory_space<vmem>>, vector<8x128xf32>
    %cst_34 = arith.constant dense<0.000000e+00> : vector<8x128xf32>
    %103 = tpu.matmul %78, %9, %cst_34 {dimension_numbers = #tpu.dot_dimension_numbers<[1], [0], [0], [1], [0, 0, 1, 1], [], []>} : vector<8x32xf32>, vector<32x128xf32>, vector<8x128xf32> -> vector<8x128xf32>
    %104 = arith.addf %102, %103 : vector<8x128xf32>
    %105 = arith.negf %104 : vector<8x128xf32>
    %106 = math.exp %105 : vector<8x128xf32>
    %cst_35 = arith.constant 1.000000e+00 : f32
    %107 = vector.broadcast %cst_35 : f32 to vector<8x128xf32>
    %108 = arith.addf %107, %106 : vector<8x128xf32>
    %109 = arith.divf %107, %108 : vector<8x128xf32>
    %110 = math.tanh %104 : vector<8x128xf32>
    %111 = vector.extract_strided_slice %109 {offsets = [0, 0], sizes = [8, 32], strides = [1, 1]} : vector<8x128xf32> to vector<8x32xf32>
    %112 = vector.extract_strided_slice %109 {offsets = [0, 32], sizes = [8, 32], strides = [1, 1]} : vector<8x128xf32> to vector<8x32xf32>
    %113 = vector.extract_strided_slice %110 {offsets = [0, 64], sizes = [8, 32], strides = [1, 1]} : vector<8x128xf32> to vector<8x32xf32>
    %114 = vector.extract_strided_slice %109 {offsets = [0, 96], sizes = [8, 32], strides = [1, 1]} : vector<8x128xf32> to vector<8x32xf32>
    %115 = arith.mulf %112, %76 : vector<8x32xf32>
    %116 = arith.mulf %111, %113 : vector<8x32xf32>
    %117 = arith.addf %115, %116 : vector<8x32xf32>
    %118 = math.tanh %117 : vector<8x32xf32>
    %119 = arith.mulf %114, %118 : vector<8x32xf32>
    %cst_36 = arith.constant dense<0.000000e+00> : vector<8x128xf32>
    %120 = tpu.matmul %119, %13, %cst_36 {dimension_numbers = #tpu.dot_dimension_numbers<[1], [0], [0], [1], [0, 0, 1, 1], [], []>} : vector<8x32xf32>, vector<32x128xf32>, vector<8x128xf32> -> vector<8x128xf32>
    %cst_37 = arith.constant dense<0.000000e+00> : vector<8x128xf32>
    %121 = tpu.matmul %98, %11, %cst_37 {dimension_numbers = #tpu.dot_dimension_numbers<[1], [0], [0], [1], [0, 0, 1, 1], [], []>} : vector<8x32xf32>, vector<32x128xf32>, vector<8x128xf32> -> vector<8x128xf32>
    %122 = arith.addf %120, %121 : vector<8x128xf32>
    %123 = vector.broadcast %15 : vector<1x128xf32> to vector<8x128xf32>
    %124 = arith.addf %122, %123 : vector<8x128xf32>
    %125 = arith.negf %124 : vector<8x128xf32>
    %126 = math.exp %125 : vector<8x128xf32>
    %cst_38 = arith.constant 1.000000e+00 : f32
    %127 = vector.broadcast %cst_38 : f32 to vector<8x128xf32>
    %128 = arith.addf %127, %126 : vector<8x128xf32>
    %129 = arith.divf %127, %128 : vector<8x128xf32>
    %130 = math.tanh %124 : vector<8x128xf32>
    %131 = vector.extract_strided_slice %129 {offsets = [0, 0], sizes = [8, 32], strides = [1, 1]} : vector<8x128xf32> to vector<8x32xf32>
    %132 = vector.extract_strided_slice %129 {offsets = [0, 32], sizes = [8, 32], strides = [1, 1]} : vector<8x128xf32> to vector<8x32xf32>
    %133 = vector.extract_strided_slice %130 {offsets = [0, 64], sizes = [8, 32], strides = [1, 1]} : vector<8x128xf32> to vector<8x32xf32>
    %134 = vector.extract_strided_slice %129 {offsets = [0, 96], sizes = [8, 32], strides = [1, 1]} : vector<8x128xf32> to vector<8x32xf32>
    %135 = arith.mulf %132, %96 : vector<8x32xf32>
    %136 = arith.mulf %131, %133 : vector<8x32xf32>
    %137 = arith.addf %135, %136 : vector<8x32xf32>
    %138 = math.tanh %137 : vector<8x32xf32>
    %139 = arith.mulf %134, %138 : vector<8x32xf32>
    %c3_i32 = arith.constant 3 : i32
    %c8_i32_39 = arith.constant 8 : i32
    %140 = arith.muli %c3_i32, %c8_i32_39 : i32
    %141 = tpu.assume_multiple %140, 8 : i32
    %142 = arith.index_cast %141 : i32 to index
    %c0_40 = arith.constant 0 : index
    %143 = vector.load %arg10[%142, %c0_40] : memref<64x128xf32, #tpu.memory_space<vmem>>, vector<8x128xf32>
    %cst_41 = arith.constant dense<0.000000e+00> : vector<8x128xf32>
    %144 = tpu.matmul %119, %9, %cst_41 {dimension_numbers = #tpu.dot_dimension_numbers<[1], [0], [0], [1], [0, 0, 1, 1], [], []>} : vector<8x32xf32>, vector<32x128xf32>, vector<8x128xf32> -> vector<8x128xf32>
    %145 = arith.addf %143, %144 : vector<8x128xf32>
    %146 = arith.negf %145 : vector<8x128xf32>
    %147 = math.exp %146 : vector<8x128xf32>
    %cst_42 = arith.constant 1.000000e+00 : f32
    %148 = vector.broadcast %cst_42 : f32 to vector<8x128xf32>
    %149 = arith.addf %148, %147 : vector<8x128xf32>
    %150 = arith.divf %148, %149 : vector<8x128xf32>
    %151 = math.tanh %145 : vector<8x128xf32>
    %152 = vector.extract_strided_slice %150 {offsets = [0, 0], sizes = [8, 32], strides = [1, 1]} : vector<8x128xf32> to vector<8x32xf32>
    %153 = vector.extract_strided_slice %150 {offsets = [0, 32], sizes = [8, 32], strides = [1, 1]} : vector<8x128xf32> to vector<8x32xf32>
    %154 = vector.extract_strided_slice %151 {offsets = [0, 64], sizes = [8, 32], strides = [1, 1]} : vector<8x128xf32> to vector<8x32xf32>
    %155 = vector.extract_strided_slice %150 {offsets = [0, 96], sizes = [8, 32], strides = [1, 1]} : vector<8x128xf32> to vector<8x32xf32>
    %156 = arith.mulf %153, %117 : vector<8x32xf32>
    %157 = arith.mulf %152, %154 : vector<8x32xf32>
    %158 = arith.addf %156, %157 : vector<8x32xf32>
    %159 = math.tanh %158 : vector<8x32xf32>
    %160 = arith.mulf %155, %159 : vector<8x32xf32>
    %cst_43 = arith.constant dense<0.000000e+00> : vector<8x128xf32>
    %161 = tpu.matmul %160, %13, %cst_43 {dimension_numbers = #tpu.dot_dimension_numbers<[1], [0], [0], [1], [0, 0, 1, 1], [], []>} : vector<8x32xf32>, vector<32x128xf32>, vector<8x128xf32> -> vector<8x128xf32>
    %cst_44 = arith.constant dense<0.000000e+00> : vector<8x128xf32>
    %162 = tpu.matmul %139, %11, %cst_44 {dimension_numbers = #tpu.dot_dimension_numbers<[1], [0], [0], [1], [0, 0, 1, 1], [], []>} : vector<8x32xf32>, vector<32x128xf32>, vector<8x128xf32> -> vector<8x128xf32>
    %163 = arith.addf %161, %162 : vector<8x128xf32>
    %164 = vector.broadcast %15 : vector<1x128xf32> to vector<8x128xf32>
    %165 = arith.addf %163, %164 : vector<8x128xf32>
    %166 = arith.negf %165 : vector<8x128xf32>
    %167 = math.exp %166 : vector<8x128xf32>
    %cst_45 = arith.constant 1.000000e+00 : f32
    %168 = vector.broadcast %cst_45 : f32 to vector<8x128xf32>
    %169 = arith.addf %168, %167 : vector<8x128xf32>
    %170 = arith.divf %168, %169 : vector<8x128xf32>
    %171 = math.tanh %165 : vector<8x128xf32>
    %172 = vector.extract_strided_slice %170 {offsets = [0, 0], sizes = [8, 32], strides = [1, 1]} : vector<8x128xf32> to vector<8x32xf32>
    %173 = vector.extract_strided_slice %170 {offsets = [0, 32], sizes = [8, 32], strides = [1, 1]} : vector<8x128xf32> to vector<8x32xf32>
    %174 = vector.extract_strided_slice %171 {offsets = [0, 64], sizes = [8, 32], strides = [1, 1]} : vector<8x128xf32> to vector<8x32xf32>
    %175 = vector.extract_strided_slice %170 {offsets = [0, 96], sizes = [8, 32], strides = [1, 1]} : vector<8x128xf32> to vector<8x32xf32>
    %176 = arith.mulf %173, %137 : vector<8x32xf32>
    %177 = arith.mulf %172, %174 : vector<8x32xf32>
    %178 = arith.addf %176, %177 : vector<8x32xf32>
    %179 = math.tanh %178 : vector<8x32xf32>
    %180 = arith.mulf %175, %179 : vector<8x32xf32>
    %c4_i32 = arith.constant 4 : i32
    %c8_i32_46 = arith.constant 8 : i32
    %181 = arith.muli %c4_i32, %c8_i32_46 : i32
    %182 = tpu.assume_multiple %181, 8 : i32
    %183 = arith.index_cast %182 : i32 to index
    %c0_47 = arith.constant 0 : index
    %184 = vector.load %arg10[%183, %c0_47] : memref<64x128xf32, #tpu.memory_space<vmem>>, vector<8x128xf32>
    %cst_48 = arith.constant dense<0.000000e+00> : vector<8x128xf32>
    %185 = tpu.matmul %160, %9, %cst_48 {dimension_numbers = #tpu.dot_dimension_numbers<[1], [0], [0], [1], [0, 0, 1, 1], [], []>} : vector<8x32xf32>, vector<32x128xf32>, vector<8x128xf32> -> vector<8x128xf32>
    %186 = arith.addf %184, %185 : vector<8x128xf32>
    %187 = arith.negf %186 : vector<8x128xf32>
    %188 = math.exp %187 : vector<8x128xf32>
    %cst_49 = arith.constant 1.000000e+00 : f32
    %189 = vector.broadcast %cst_49 : f32 to vector<8x128xf32>
    %190 = arith.addf %189, %188 : vector<8x128xf32>
    %191 = arith.divf %189, %190 : vector<8x128xf32>
    %192 = math.tanh %186 : vector<8x128xf32>
    %193 = vector.extract_strided_slice %191 {offsets = [0, 0], sizes = [8, 32], strides = [1, 1]} : vector<8x128xf32> to vector<8x32xf32>
    %194 = vector.extract_strided_slice %191 {offsets = [0, 32], sizes = [8, 32], strides = [1, 1]} : vector<8x128xf32> to vector<8x32xf32>
    %195 = vector.extract_strided_slice %192 {offsets = [0, 64], sizes = [8, 32], strides = [1, 1]} : vector<8x128xf32> to vector<8x32xf32>
    %196 = vector.extract_strided_slice %191 {offsets = [0, 96], sizes = [8, 32], strides = [1, 1]} : vector<8x128xf32> to vector<8x32xf32>
    %197 = arith.mulf %194, %158 : vector<8x32xf32>
    %198 = arith.mulf %193, %195 : vector<8x32xf32>
    %199 = arith.addf %197, %198 : vector<8x32xf32>
    %200 = math.tanh %199 : vector<8x32xf32>
    %201 = arith.mulf %196, %200 : vector<8x32xf32>
    %cst_50 = arith.constant dense<0.000000e+00> : vector<8x128xf32>
    %202 = tpu.matmul %201, %13, %cst_50 {dimension_numbers = #tpu.dot_dimension_numbers<[1], [0], [0], [1], [0, 0, 1, 1], [], []>} : vector<8x32xf32>, vector<32x128xf32>, vector<8x128xf32> -> vector<8x128xf32>
    %cst_51 = arith.constant dense<0.000000e+00> : vector<8x128xf32>
    %203 = tpu.matmul %180, %11, %cst_51 {dimension_numbers = #tpu.dot_dimension_numbers<[1], [0], [0], [1], [0, 0, 1, 1], [], []>} : vector<8x32xf32>, vector<32x128xf32>, vector<8x128xf32> -> vector<8x128xf32>
    %204 = arith.addf %202, %203 : vector<8x128xf32>
    %205 = vector.broadcast %15 : vector<1x128xf32> to vector<8x128xf32>
    %206 = arith.addf %204, %205 : vector<8x128xf32>
    %207 = arith.negf %206 : vector<8x128xf32>
    %208 = math.exp %207 : vector<8x128xf32>
    %cst_52 = arith.constant 1.000000e+00 : f32
    %209 = vector.broadcast %cst_52 : f32 to vector<8x128xf32>
    %210 = arith.addf %209, %208 : vector<8x128xf32>
    %211 = arith.divf %209, %210 : vector<8x128xf32>
    %212 = math.tanh %206 : vector<8x128xf32>
    %213 = vector.extract_strided_slice %211 {offsets = [0, 0], sizes = [8, 32], strides = [1, 1]} : vector<8x128xf32> to vector<8x32xf32>
    %214 = vector.extract_strided_slice %211 {offsets = [0, 32], sizes = [8, 32], strides = [1, 1]} : vector<8x128xf32> to vector<8x32xf32>
    %215 = vector.extract_strided_slice %212 {offsets = [0, 64], sizes = [8, 32], strides = [1, 1]} : vector<8x128xf32> to vector<8x32xf32>
    %216 = vector.extract_strided_slice %211 {offsets = [0, 96], sizes = [8, 32], strides = [1, 1]} : vector<8x128xf32> to vector<8x32xf32>
    %217 = arith.mulf %214, %178 : vector<8x32xf32>
    %218 = arith.mulf %213, %215 : vector<8x32xf32>
    %219 = arith.addf %217, %218 : vector<8x32xf32>
    %220 = math.tanh %219 : vector<8x32xf32>
    %221 = arith.mulf %216, %220 : vector<8x32xf32>
    %c5_i32 = arith.constant 5 : i32
    %c8_i32_53 = arith.constant 8 : i32
    %222 = arith.muli %c5_i32, %c8_i32_53 : i32
    %223 = tpu.assume_multiple %222, 8 : i32
    %224 = arith.index_cast %223 : i32 to index
    %c0_54 = arith.constant 0 : index
    %225 = vector.load %arg10[%224, %c0_54] : memref<64x128xf32, #tpu.memory_space<vmem>>, vector<8x128xf32>
    %cst_55 = arith.constant dense<0.000000e+00> : vector<8x128xf32>
    %226 = tpu.matmul %201, %9, %cst_55 {dimension_numbers = #tpu.dot_dimension_numbers<[1], [0], [0], [1], [0, 0, 1, 1], [], []>} : vector<8x32xf32>, vector<32x128xf32>, vector<8x128xf32> -> vector<8x128xf32>
    %227 = arith.addf %225, %226 : vector<8x128xf32>
    %228 = arith.negf %227 : vector<8x128xf32>
    %229 = math.exp %228 : vector<8x128xf32>
    %cst_56 = arith.constant 1.000000e+00 : f32
    %230 = vector.broadcast %cst_56 : f32 to vector<8x128xf32>
    %231 = arith.addf %230, %229 : vector<8x128xf32>
    %232 = arith.divf %230, %231 : vector<8x128xf32>
    %233 = math.tanh %227 : vector<8x128xf32>
    %234 = vector.extract_strided_slice %232 {offsets = [0, 0], sizes = [8, 32], strides = [1, 1]} : vector<8x128xf32> to vector<8x32xf32>
    %235 = vector.extract_strided_slice %232 {offsets = [0, 32], sizes = [8, 32], strides = [1, 1]} : vector<8x128xf32> to vector<8x32xf32>
    %236 = vector.extract_strided_slice %233 {offsets = [0, 64], sizes = [8, 32], strides = [1, 1]} : vector<8x128xf32> to vector<8x32xf32>
    %237 = vector.extract_strided_slice %232 {offsets = [0, 96], sizes = [8, 32], strides = [1, 1]} : vector<8x128xf32> to vector<8x32xf32>
    %238 = arith.mulf %235, %199 : vector<8x32xf32>
    %239 = arith.mulf %234, %236 : vector<8x32xf32>
    %240 = arith.addf %238, %239 : vector<8x32xf32>
    %241 = math.tanh %240 : vector<8x32xf32>
    %242 = arith.mulf %237, %241 : vector<8x32xf32>
    %cst_57 = arith.constant dense<0.000000e+00> : vector<8x128xf32>
    %243 = tpu.matmul %242, %13, %cst_57 {dimension_numbers = #tpu.dot_dimension_numbers<[1], [0], [0], [1], [0, 0, 1, 1], [], []>} : vector<8x32xf32>, vector<32x128xf32>, vector<8x128xf32> -> vector<8x128xf32>
    %cst_58 = arith.constant dense<0.000000e+00> : vector<8x128xf32>
    %244 = tpu.matmul %221, %11, %cst_58 {dimension_numbers = #tpu.dot_dimension_numbers<[1], [0], [0], [1], [0, 0, 1, 1], [], []>} : vector<8x32xf32>, vector<32x128xf32>, vector<8x128xf32> -> vector<8x128xf32>
    %245 = arith.addf %243, %244 : vector<8x128xf32>
    %246 = vector.broadcast %15 : vector<1x128xf32> to vector<8x128xf32>
    %247 = arith.addf %245, %246 : vector<8x128xf32>
    %248 = arith.negf %247 : vector<8x128xf32>
    %249 = math.exp %248 : vector<8x128xf32>
    %cst_59 = arith.constant 1.000000e+00 : f32
    %250 = vector.broadcast %cst_59 : f32 to vector<8x128xf32>
    %251 = arith.addf %250, %249 : vector<8x128xf32>
    %252 = arith.divf %250, %251 : vector<8x128xf32>
    %253 = math.tanh %247 : vector<8x128xf32>
    %254 = vector.extract_strided_slice %252 {offsets = [0, 0], sizes = [8, 32], strides = [1, 1]} : vector<8x128xf32> to vector<8x32xf32>
    %255 = vector.extract_strided_slice %252 {offsets = [0, 32], sizes = [8, 32], strides = [1, 1]} : vector<8x128xf32> to vector<8x32xf32>
    %256 = vector.extract_strided_slice %253 {offsets = [0, 64], sizes = [8, 32], strides = [1, 1]} : vector<8x128xf32> to vector<8x32xf32>
    %257 = vector.extract_strided_slice %252 {offsets = [0, 96], sizes = [8, 32], strides = [1, 1]} : vector<8x128xf32> to vector<8x32xf32>
    %258 = arith.mulf %255, %219 : vector<8x32xf32>
    %259 = arith.mulf %254, %256 : vector<8x32xf32>
    %260 = arith.addf %258, %259 : vector<8x32xf32>
    %261 = math.tanh %260 : vector<8x32xf32>
    %262 = arith.mulf %257, %261 : vector<8x32xf32>
    %c6_i32 = arith.constant 6 : i32
    %c8_i32_60 = arith.constant 8 : i32
    %263 = arith.muli %c6_i32, %c8_i32_60 : i32
    %264 = tpu.assume_multiple %263, 8 : i32
    %265 = arith.index_cast %264 : i32 to index
    %c0_61 = arith.constant 0 : index
    %266 = vector.load %arg10[%265, %c0_61] : memref<64x128xf32, #tpu.memory_space<vmem>>, vector<8x128xf32>
    %cst_62 = arith.constant dense<0.000000e+00> : vector<8x128xf32>
    %267 = tpu.matmul %242, %9, %cst_62 {dimension_numbers = #tpu.dot_dimension_numbers<[1], [0], [0], [1], [0, 0, 1, 1], [], []>} : vector<8x32xf32>, vector<32x128xf32>, vector<8x128xf32> -> vector<8x128xf32>
    %268 = arith.addf %266, %267 : vector<8x128xf32>
    %269 = arith.negf %268 : vector<8x128xf32>
    %270 = math.exp %269 : vector<8x128xf32>
    %cst_63 = arith.constant 1.000000e+00 : f32
    %271 = vector.broadcast %cst_63 : f32 to vector<8x128xf32>
    %272 = arith.addf %271, %270 : vector<8x128xf32>
    %273 = arith.divf %271, %272 : vector<8x128xf32>
    %274 = math.tanh %268 : vector<8x128xf32>
    %275 = vector.extract_strided_slice %273 {offsets = [0, 0], sizes = [8, 32], strides = [1, 1]} : vector<8x128xf32> to vector<8x32xf32>
    %276 = vector.extract_strided_slice %273 {offsets = [0, 32], sizes = [8, 32], strides = [1, 1]} : vector<8x128xf32> to vector<8x32xf32>
    %277 = vector.extract_strided_slice %274 {offsets = [0, 64], sizes = [8, 32], strides = [1, 1]} : vector<8x128xf32> to vector<8x32xf32>
    %278 = vector.extract_strided_slice %273 {offsets = [0, 96], sizes = [8, 32], strides = [1, 1]} : vector<8x128xf32> to vector<8x32xf32>
    %279 = arith.mulf %276, %240 : vector<8x32xf32>
    %280 = arith.mulf %275, %277 : vector<8x32xf32>
    %281 = arith.addf %279, %280 : vector<8x32xf32>
    %282 = math.tanh %281 : vector<8x32xf32>
    %283 = arith.mulf %278, %282 : vector<8x32xf32>
    %cst_64 = arith.constant dense<0.000000e+00> : vector<8x128xf32>
    %284 = tpu.matmul %283, %13, %cst_64 {dimension_numbers = #tpu.dot_dimension_numbers<[1], [0], [0], [1], [0, 0, 1, 1], [], []>} : vector<8x32xf32>, vector<32x128xf32>, vector<8x128xf32> -> vector<8x128xf32>
    %cst_65 = arith.constant dense<0.000000e+00> : vector<8x128xf32>
    %285 = tpu.matmul %262, %11, %cst_65 {dimension_numbers = #tpu.dot_dimension_numbers<[1], [0], [0], [1], [0, 0, 1, 1], [], []>} : vector<8x32xf32>, vector<32x128xf32>, vector<8x128xf32> -> vector<8x128xf32>
    %286 = arith.addf %284, %285 : vector<8x128xf32>
    %287 = vector.broadcast %15 : vector<1x128xf32> to vector<8x128xf32>
    %288 = arith.addf %286, %287 : vector<8x128xf32>
    %289 = arith.negf %288 : vector<8x128xf32>
    %290 = math.exp %289 : vector<8x128xf32>
    %cst_66 = arith.constant 1.000000e+00 : f32
    %291 = vector.broadcast %cst_66 : f32 to vector<8x128xf32>
    %292 = arith.addf %291, %290 : vector<8x128xf32>
    %293 = arith.divf %291, %292 : vector<8x128xf32>
    %294 = math.tanh %288 : vector<8x128xf32>
    %295 = vector.extract_strided_slice %293 {offsets = [0, 0], sizes = [8, 32], strides = [1, 1]} : vector<8x128xf32> to vector<8x32xf32>
    %296 = vector.extract_strided_slice %293 {offsets = [0, 32], sizes = [8, 32], strides = [1, 1]} : vector<8x128xf32> to vector<8x32xf32>
    %297 = vector.extract_strided_slice %294 {offsets = [0, 64], sizes = [8, 32], strides = [1, 1]} : vector<8x128xf32> to vector<8x32xf32>
    %298 = vector.extract_strided_slice %293 {offsets = [0, 96], sizes = [8, 32], strides = [1, 1]} : vector<8x128xf32> to vector<8x32xf32>
    %299 = arith.mulf %296, %260 : vector<8x32xf32>
    %300 = arith.mulf %295, %297 : vector<8x32xf32>
    %301 = arith.addf %299, %300 : vector<8x32xf32>
    %302 = math.tanh %301 : vector<8x32xf32>
    %303 = arith.mulf %298, %302 : vector<8x32xf32>
    %c7_i32 = arith.constant 7 : i32
    %c8_i32_67 = arith.constant 8 : i32
    %304 = arith.muli %c7_i32, %c8_i32_67 : i32
    %305 = tpu.assume_multiple %304, 8 : i32
    %306 = arith.index_cast %305 : i32 to index
    %c0_68 = arith.constant 0 : index
    %307 = vector.load %arg10[%306, %c0_68] : memref<64x128xf32, #tpu.memory_space<vmem>>, vector<8x128xf32>
    %cst_69 = arith.constant dense<0.000000e+00> : vector<8x128xf32>
    %308 = tpu.matmul %283, %9, %cst_69 {dimension_numbers = #tpu.dot_dimension_numbers<[1], [0], [0], [1], [0, 0, 1, 1], [], []>} : vector<8x32xf32>, vector<32x128xf32>, vector<8x128xf32> -> vector<8x128xf32>
    %309 = arith.addf %307, %308 : vector<8x128xf32>
    %310 = arith.negf %309 : vector<8x128xf32>
    %311 = math.exp %310 : vector<8x128xf32>
    %cst_70 = arith.constant 1.000000e+00 : f32
    %312 = vector.broadcast %cst_70 : f32 to vector<8x128xf32>
    %313 = arith.addf %312, %311 : vector<8x128xf32>
    %314 = arith.divf %312, %313 : vector<8x128xf32>
    %315 = math.tanh %309 : vector<8x128xf32>
    %316 = vector.extract_strided_slice %314 {offsets = [0, 0], sizes = [8, 32], strides = [1, 1]} : vector<8x128xf32> to vector<8x32xf32>
    %317 = vector.extract_strided_slice %314 {offsets = [0, 32], sizes = [8, 32], strides = [1, 1]} : vector<8x128xf32> to vector<8x32xf32>
    %318 = vector.extract_strided_slice %315 {offsets = [0, 64], sizes = [8, 32], strides = [1, 1]} : vector<8x128xf32> to vector<8x32xf32>
    %319 = vector.extract_strided_slice %314 {offsets = [0, 96], sizes = [8, 32], strides = [1, 1]} : vector<8x128xf32> to vector<8x32xf32>
    %320 = arith.mulf %317, %281 : vector<8x32xf32>
    %321 = arith.mulf %316, %318 : vector<8x32xf32>
    %322 = arith.addf %320, %321 : vector<8x32xf32>
    %323 = math.tanh %322 : vector<8x32xf32>
    %324 = arith.mulf %319, %323 : vector<8x32xf32>
    %cst_71 = arith.constant dense<0.000000e+00> : vector<8x128xf32>
    %325 = tpu.matmul %324, %13, %cst_71 {dimension_numbers = #tpu.dot_dimension_numbers<[1], [0], [0], [1], [0, 0, 1, 1], [], []>} : vector<8x32xf32>, vector<32x128xf32>, vector<8x128xf32> -> vector<8x128xf32>
    %cst_72 = arith.constant dense<0.000000e+00> : vector<8x128xf32>
    %326 = tpu.matmul %303, %11, %cst_72 {dimension_numbers = #tpu.dot_dimension_numbers<[1], [0], [0], [1], [0, 0, 1, 1], [], []>} : vector<8x32xf32>, vector<32x128xf32>, vector<8x128xf32> -> vector<8x128xf32>
    %327 = arith.addf %325, %326 : vector<8x128xf32>
    %328 = vector.broadcast %15 : vector<1x128xf32> to vector<8x128xf32>
    %329 = arith.addf %327, %328 : vector<8x128xf32>
    %330 = arith.negf %329 : vector<8x128xf32>
    %331 = math.exp %330 : vector<8x128xf32>
    %cst_73 = arith.constant 1.000000e+00 : f32
    %332 = vector.broadcast %cst_73 : f32 to vector<8x128xf32>
    %333 = arith.addf %332, %331 : vector<8x128xf32>
    %334 = arith.divf %332, %333 : vector<8x128xf32>
    %335 = math.tanh %329 : vector<8x128xf32>
    %336 = vector.extract_strided_slice %334 {offsets = [0, 0], sizes = [8, 32], strides = [1, 1]} : vector<8x128xf32> to vector<8x32xf32>
    %337 = vector.extract_strided_slice %334 {offsets = [0, 32], sizes = [8, 32], strides = [1, 1]} : vector<8x128xf32> to vector<8x32xf32>
    %338 = vector.extract_strided_slice %335 {offsets = [0, 64], sizes = [8, 32], strides = [1, 1]} : vector<8x128xf32> to vector<8x32xf32>
    %339 = vector.extract_strided_slice %334 {offsets = [0, 96], sizes = [8, 32], strides = [1, 1]} : vector<8x128xf32> to vector<8x32xf32>
    %340 = arith.mulf %337, %301 : vector<8x32xf32>
    %341 = arith.mulf %336, %338 : vector<8x32xf32>
    %342 = arith.addf %340, %341 : vector<8x32xf32>
    %343 = math.tanh %342 : vector<8x32xf32>
    %344 = arith.mulf %339, %343 : vector<8x32xf32>
    %c8_i32_74 = arith.constant 8 : i32
    %cst_75 = arith.constant 0.000000e+00 : f32
    %345 = vector.broadcast %cst_75 : f32 to vector<8x128xf32>
    %346 = math.tanh %324 : vector<8x32xf32>
    %c0_76 = arith.constant 0 : index
    %c0_77 = arith.constant 0 : index
    %c0_78 = arith.constant 0 : index
    %347 = vector.load %arg7[%c0_76, %c0_77, %c0_78] : memref<4x32x128xf32, #tpu.memory_space<vmem>>, vector<1x32x128xf32>
    %348 = vector.shape_cast %347 : vector<1x32x128xf32> to vector<32x128xf32>
    %cst_79 = arith.constant dense<0.000000e+00> : vector<8x128xf32>
    %349 = tpu.matmul %346, %348, %cst_79 {dimension_numbers = #tpu.dot_dimension_numbers<[1], [0], [0], [1], [0, 0, 1, 1], [], []>} : vector<8x32xf32>, vector<32x128xf32>, vector<8x128xf32> -> vector<8x128xf32>
    %350 = arith.addf %345, %349 : vector<8x128xf32>
    %351 = math.tanh %322 : vector<8x32xf32>
    %c1_80 = arith.constant 1 : index
    %c0_81 = arith.constant 0 : index
    %c0_82 = arith.constant 0 : index
    %352 = vector.load %arg7[%c1_80, %c0_81, %c0_82] : memref<4x32x128xf32, #tpu.memory_space<vmem>>, vector<1x32x128xf32>
    %353 = vector.shape_cast %352 : vector<1x32x128xf32> to vector<32x128xf32>
    %cst_83 = arith.constant dense<0.000000e+00> : vector<8x128xf32>
    %354 = tpu.matmul %351, %353, %cst_83 {dimension_numbers = #tpu.dot_dimension_numbers<[1], [0], [0], [1], [0, 0, 1, 1], [], []>} : vector<8x32xf32>, vector<32x128xf32>, vector<8x128xf32> -> vector<8x128xf32>
    %355 = arith.addf %350, %354 : vector<8x128xf32>
    %356 = math.tanh %344 : vector<8x32xf32>
    %c2 = arith.constant 2 : index
    %c0_84 = arith.constant 0 : index
    %c0_85 = arith.constant 0 : index
    %357 = vector.load %arg7[%c2, %c0_84, %c0_85] : memref<4x32x128xf32, #tpu.memory_space<vmem>>, vector<1x32x128xf32>
    %358 = vector.shape_cast %357 : vector<1x32x128xf32> to vector<32x128xf32>
    %cst_86 = arith.constant dense<0.000000e+00> : vector<8x128xf32>
    %359 = tpu.matmul %356, %358, %cst_86 {dimension_numbers = #tpu.dot_dimension_numbers<[1], [0], [0], [1], [0, 0, 1, 1], [], []>} : vector<8x32xf32>, vector<32x128xf32>, vector<8x128xf32> -> vector<8x128xf32>
    %360 = arith.addf %355, %359 : vector<8x128xf32>
    %361 = math.tanh %342 : vector<8x32xf32>
    %c3 = arith.constant 3 : index
    %c0_87 = arith.constant 0 : index
    %c0_88 = arith.constant 0 : index
    %362 = vector.load %arg7[%c3, %c0_87, %c0_88] : memref<4x32x128xf32, #tpu.memory_space<vmem>>, vector<1x32x128xf32>
    %363 = vector.shape_cast %362 : vector<1x32x128xf32> to vector<32x128xf32>
    %cst_89 = arith.constant dense<0.000000e+00> : vector<8x128xf32>
    %364 = tpu.matmul %361, %363, %cst_89 {dimension_numbers = #tpu.dot_dimension_numbers<[1], [0], [0], [1], [0, 0, 1, 1], [], []>} : vector<8x32xf32>, vector<32x128xf32>, vector<8x128xf32> -> vector<8x128xf32>
    %365 = arith.addf %360, %364 : vector<8x128xf32>
    %c0_90 = arith.constant 0 : index
    %c0_91 = arith.constant 0 : index
    %366 = vector.load %arg8[%c0_90, %c0_91] : memref<1x128xf32, #tpu.memory_space<vmem>>, vector<1x128xf32>
    %367 = vector.broadcast %366 : vector<1x128xf32> to vector<8x128xf32>
    %368 = arith.addf %365, %367 : vector<8x128xf32>
    %c0_92 = arith.constant 0 : index
    %c0_93 = arith.constant 0 : index
    %369 = vector.load %arg9[%c0_92, %c0_93] : memref<8x128xf32, #tpu.memory_space<vmem>>, vector<8x128xf32>
    tpu.vector_store %arg9[%c0_92, %c0_93], %368 {strides = array<i32>} : memref<8x128xf32, #tpu.memory_space<vmem>>, vector<8x128xf32>,
    return
  }
  func.func @transform_0(%arg0: i32) -> (i32, i32) {
    %c0_i32 = arith.constant 0 : i32
    %c0_i32_0 = arith.constant 0 : i32
    %c0_i32_1 = arith.constant 0 : i32
    return %c0_i32, %c0_i32_0 : i32, i32
  }
  func.func @transform_1(%arg0: i32) -> (i32, i32) {
    %c0_i32 = arith.constant 0 : i32
    %c0_i32_0 = arith.constant 0 : i32
    %c0_i32_1 = arith.constant 0 : i32
    return %c0_i32, %c0_i32_0 : i32, i32
  }
  func.func @transform_2(%arg0: i32) -> (i32, i32) {
    %c0_i32 = arith.constant 0 : i32
    %c0_i32_0 = arith.constant 0 : i32
    %c0_i32_1 = arith.constant 0 : i32
    return %c0_i32, %c0_i32_0 : i32, i32
  }
  func.func @transform_3(%arg0: i32) -> (i32, i32, i32) {
    %c0_i32 = arith.constant 0 : i32
    %c0_i32_0 = arith.constant 0 : i32
    %c0_i32_1 = arith.constant 0 : i32
    %c0_i32_2 = arith.constant 0 : i32
    return %c0_i32, %c0_i32_0, %c0_i32_1 : i32, i32, i32
  }
  func.func @transform_4(%arg0: i32) -> (i32, i32, i32) {
    %c0_i32 = arith.constant 0 : i32
    %c0_i32_0 = arith.constant 0 : i32
    %c0_i32_1 = arith.constant 0 : i32
    %c0_i32_2 = arith.constant 0 : i32
    return %c0_i32, %c0_i32_0, %c0_i32_1 : i32, i32, i32
  }
  func.func @transform_5(%arg0: i32) -> (i32, i32, i32) {
    %c0_i32 = arith.constant 0 : i32
    %c0_i32_0 = arith.constant 0 : i32
    %c0_i32_1 = arith.constant 0 : i32
    %c0_i32_2 = arith.constant 0 : i32
    return %c0_i32, %c0_i32_0, %c0_i32_1 : i32, i32, i32
  }
  func.func @transform_6(%arg0: i32) -> (i32, i32, i32) {
    %c0_i32 = arith.constant 0 : i32
    %c0_i32_0 = arith.constant 0 : i32
    %c0_i32_1 = arith.constant 0 : i32
    %c0_i32_2 = arith.constant 0 : i32
    return %c0_i32, %c0_i32_0, %c0_i32_1 : i32, i32, i32
  }
  func.func @transform_7(%arg0: i32) -> (i32, i32) {
    %c0_i32 = arith.constant 0 : i32
    %c0_i32_0 = arith.constant 0 : i32
    %c0_i32_1 = arith.constant 0 : i32
    return %c0_i32, %c0_i32_0 : i32, i32
  }
  func.func @transform_8(%arg0: i32) -> (i32, i32) {
    %c0_i32 = arith.constant 0 : i32
    %c0_i32_0 = arith.constant 0 : i32
    %c0_i32_1 = arith.constant 0 : i32
    return %c0_i32, %c0_i32_0 : i32, i32
  }
}

</mosaic_0001>

<llo_original>
// kernel: tpu_custom_call.1
$region0: #{tpu_custom_call.1}
  #allocation0 [shape = 'u32[]', space=smem, size = 0x4, offset = 0x4, fixed_abs, tag = 'smem constant byte address 0x4 - core index']
  #allocation1 [shape = 'u32[144,128]{1,0:T(1,128)}', space=vmem, size = 0x12000, scoped, tag = 'internal scratch']
  #allocation2 [shape = 'f32[64,128]{1,0:T(8,128)}', space=vmem, size = 0x8000, scoped, tag = 'scratch operand']
  %s0 = inlined_call_operand.vmem [shape: f32[64,16], index: 0, kind: input, shape index: {}]
  %s1 = inlined_call_operand.vmem [shape: f32[16,128], index: 1, kind: input, shape index: {}]
  %s2 = inlined_call_operand.vmem [shape: f32[1,128], index: 2, kind: input, shape index: {}]
  %s3 = inlined_call_operand.hbm [shape: f32[1,32,128], index: 3, kind: input, shape index: {}]
  %s4 = inlined_call_operand.vmem [shape: f32[1,1,128], index: 4, kind: input, shape index: {}]
  %s5 = inlined_call_operand.vmem [shape: f32[2,32,128], index: 5, kind: input, shape index: {}]
  %s6 = inlined_call_operand.hbm [shape: f32[4,32,128], index: 6, kind: input, shape index: {}]
  %s7 = inlined_call_operand.vmem [shape: f32[1,128], index: 7, kind: input, shape index: {}]
  %s8 = inlined_call_operand.hbm [shape: f32[8,128], index: 8, kind: output, shape index: {}]
  %s9 = sld [smem:[#allocation0]]
  $region50: #{tpu_custom_call.1} parent=0
    _
  %s11 = ssub.s32 1, %s9
  %s12 = scalar_select 0, %s11, %s9
  $region1: #{tpu_custom_call.1} parent=0
    #allocation3 [shape = 'u8[16384]{0}', space=vmem, size = 0x4000, scoped, tag = 'input window, operand 3, single buffered']
    #allocation4 [shape = 's32[1]{0}', space=sflag, size = 0x4, scoped, tag = 'scoped memory for tpu_custom_call.1']
    #allocation5 [shape = 's32[1]{0}', space=sflag, size = 0x4, scoped, tag = 'scoped memory for tpu_custom_call.1']
    #allocation6 [shape = 'u8[65536]{0}', space=vmem, size = 0x10000, scoped, tag = 'input window, operand 6, single buffered']
    #allocation7 [shape = 's32[1]{0}', space=sflag, size = 0x4, scoped, tag = 'scoped memory for tpu_custom_call.1']
    #allocation8 [shape = 'u8[4096]{0}', space=vmem, size = 0x1000, scoped, tag = 'output window, operand 0, single buffered']
    %13 = vsyncpa [#allocation4], 0
    %14 = vsyncpa [#allocation7], 0
    %15 = vsyncpa [#allocation5], 0
    // Predicated region
    $region2: #{tpu_custom_call.1} parent=1 // pred_check
      _
    $region3: #{tpu_custom_call.1} parent=1 // pred_check_branch
      %17 = sbr.rel (0) target = $region5
    $region4: #{tpu_custom_call.1} parent=1 // pred_region
      _
    $region5: #{tpu_custom_call.1} parent=1 // pred_fallthru
      _
    // Predicated region
    $region6: #{tpu_custom_call.1} parent=1 // pred_check
      _
    $region7: #{tpu_custom_call.1} parent=1 // pred_check_branch
      %19 = sbr.rel (0) target = $region9
    $region8: #{tpu_custom_call.1} parent=1 // pred_region
      _
    $region9: #{tpu_custom_call.1} parent=1 // pred_fallthru
      _
    // Predicated region
    $region10: #{tpu_custom_call.1} parent=1 // pred_check
      _
    $region11: #{tpu_custom_call.1} parent=1 // pred_check_branch
      %21 = sbr.rel (0) target = $region13
    $region12: #{tpu_custom_call.1} parent=1 // pred_region
      _
    $region13: #{tpu_custom_call.1} parent=1 // pred_fallthru
      _
    // Predicated region
    $region14: #{tpu_custom_call.1} parent=1 // pred_check
      _
    $region15: #{tpu_custom_call.1} parent=1 // pred_check_branch
      %23 = sbr.rel (0) target = $region17
    $region16: #{tpu_custom_call.1} parent=1 // pred_region
      %s25 = ssub.s32 512, 512
      %26 = vsyncadd [#allocation4], %s25
      %s27 = sshll.u32 [#allocation3], 4
      %s28 = int_to_ptr.vmem [resolvable:$true] %s27
      %33 = dma.hbm_to_vmem [thread:$0]  %s3, 512, %s28, [#allocation4], 128, 128, 8
    $region17: #{tpu_custom_call.1} parent=1 // pred_fallthru
      _
    // Predicated region
    $region18: #{tpu_custom_call.1} parent=1 // pred_check
      _
    $region19: #{tpu_custom_call.1} parent=1 // pred_check_branch
      %35 = sbr.rel (0) target = $region21
    $region20: #{tpu_custom_call.1} parent=1 // pred_region
      _
    $region21: #{tpu_custom_call.1} parent=1 // pred_fallthru
      _
    // Predicated region
    $region22: #{tpu_custom_call.1} parent=1 // pred_check
      _
    $region23: #{tpu_custom_call.1} parent=1 // pred_check_branch
      %37 = sbr.rel (0) target = $region25
    $region24: #{tpu_custom_call.1} parent=1 // pred_region
      _
    $region25: #{tpu_custom_call.1} parent=1 // pred_fallthru
      _
    // Predicated region
    $region26: #{tpu_custom_call.1} parent=1 // pred_check
      _
    $region27: #{tpu_custom_call.1} parent=1 // pred_check_branch
      %39 = sbr.rel (0) target = $region29
    $region28: #{tpu_custom_call.1} parent=1 // pred_region
      %s41 = ssub.s32 2048, 2048
      %42 = vsyncadd [#allocation7], %s41
      %s43 = sshll.u32 [#allocation6], 4
      %s44 = int_to_ptr.vmem [resolvable:$true] %s43
      %49 = dma.hbm_to_vmem [thread:$0]  %s6, 2048, %s44, [#allocation7], 128, 128, 8
    $region29: #{tpu_custom_call.1} parent=1 // pred_fallthru
      _
    // Predicated region
    $region30: #{tpu_custom_call.1} parent=1 // pred_check
      _
    $region31: #{tpu_custom_call.1} parent=1 // pred_check_branch
      %51 = sbr.rel (0) target = $region33
    $region32: #{tpu_custom_call.1} parent=1 // pred_region
      _
    $region33: #{tpu_custom_call.1} parent=1 // pred_fallthru
      _
    // Predicated region
    $region34: #{tpu_custom_call.1} parent=1 // pred_check
      _
    $region35: #{tpu_custom_call.1} parent=1 // pred_check_branch
      %53 = sbr.rel (0) target = $region37
    $region36: #{tpu_custom_call.1} parent=1 // pred_region
      %54 = dma.done [#allocation4], 512
    $region37: #{tpu_custom_call.1} parent=1 // pred_fallthru
      _
    // Predicated region
    $region38: #{tpu_custom_call.1} parent=1 // pred_check
      _
    $region39: #{tpu_custom_call.1} parent=1 // pred_check_branch
      %56 = sbr.rel (0) target = $region41
    $region40: #{tpu_custom_call.1} parent=1 // pred_region
      %57 = dma.done [#allocation7], 2048
    $region41: #{tpu_custom_call.1} parent=1 // pred_fallthru
      _
    %v58 = vld [vmem:[%s0] sm:$0xff]
    %v59 = vld [vmem:[%s0 + $0x8] sm:$0xff]
    %v60 = vld [vmem:[%s0 + $0x10] sm:$0xff]
    %v61 = vld [vmem:[%s0 + $0x18] sm:$0xff]
    %v62 = vld [vmem:[%s0 + $0x20] sm:$0xff]
    %v63 = vld [vmem:[%s0 + $0x28] sm:$0xff]
    %v64 = vld [vmem:[%s0 + $0x30] sm:$0xff]
    %v65 = vld [vmem:[%s0 + $0x38] sm:$0xff]
    %v66 = vtanh.pop %v58
    %v67 = vtanh.pop %v59
    %v68 = vtanh.pop %v60
    %v69 = vtanh.pop %v61
    %v70 = vtanh.pop %v62
    %v71 = vtanh.pop %v63
    %v72 = vtanh.pop %v64
    %v73 = vtanh.pop %v65
    %v74 = vld [vmem:[%s1] sm:$0xff]
    %v75 = vld [vmem:[%s1 + $0x8] sm:$0xff]
    %v76 = vld [vmem:[%s2] sm:$0x1]
    %v78 = vlaneseq
    %v79 = vshrl.u32 %v78, 7
    %v80 = vsub.s32 0, %v79
    %v81 = vrot.slane %v76, %v80
    %vm83 = vcmask 130048
    %v85 = vsel %vm83, %v66, 0
    %v88 = vsel %vm83, %v67, 0
    %v91 = vsel %vm83, %v68, 0
    %v94 = vsel %vm83, %v69, 0
    %v97 = vsel %vm83, %v70, 0
    %v100 = vsel %vm83, %v71, 0
    %v103 = vsel %vm83, %v72, 0
    %v106 = vsel %vm83, %v73, 0
    %108 = vmatprep.subr.mxu0 0.0
    %109 = vmatpush1.msra.mxu0 0.0
    %110 = vmatprep.subr.mxu0 0.0
    %111 = vmatpush1.msra.mxu0 0.0
    %112 = vmatprep.subr.mxu0 0.0
    %113 = vmatpush1.msra.mxu0 0.0
    %114 = vmatprep.subr.mxu0 0.0
    %115 = vmatpush1.msra.mxu0 0.0
    %116 = vmatprep.subr.mxu0 0.0
    %117 = vmatpush1.msra.mxu0 0.0
    %118 = vmatprep.subr.mxu0 0.0
    %119 = vmatpush1.msra.mxu0 0.0
    %120 = vmatprep.subr.mxu0 0.0
    %121 = vmatpush1.msra.mxu0 0.0
    %122 = vmatprep.subr.mxu0 0.0
    %123 = vmatpush1.msra.mxu0 0.0
    %124 = vmatprep.subr.mxu0 0.0
    %125 = vmatpush1.msra.mxu0 0.0
    %126 = vmatprep.subr.mxu0 0.0
    %127 = vmatpush1.msra.mxu0 0.0
    %128 = vmatprep.subr.mxu0 0.0
    %129 = vmatpush1.msra.mxu0 0.0
    %130 = vmatprep.subr.mxu0 0.0
    %131 = vmatpush1.msra.mxu0 0.0
    %132 = vmatprep.subr.mxu0 0.0
    %133 = vmatpush1.msra.mxu0 0.0
    %134 = vmatprep.subr.mxu0 0.0
    %135 = vmatpush1.msra.mxu0 0.0
    %136 = vmatprep.subr.mxu0 0.0
    %137 = vmatpush1.msra.mxu0 %v75
    %138 = vmatprep.subr.mxu0 0.0
    %139 = vmatpush1.msra.mxu0 %v74
    %140 = vmatprep.subr.mxu0 0.0
    %141 = vmatpush2.msra.mxu0 0.0
    %142 = vmatprep.subr.mxu0 0.0
    %143 = vmatpush2.msra.mxu0 0.0
    %144 = vmatprep.subr.mxu0 0.0
    %145 = vmatpush2.msra.mxu0 0.0
    %146 = vmatprep.subr.mxu0 0.0
    %147 = vmatpush2.msra.mxu0 0.0
    %148 = vmatprep.subr.mxu0 0.0
    %149 = vmatpush2.msra.mxu0 0.0
    %150 = vmatprep.subr.mxu0 0.0
    %151 = vmatpush2.msra.mxu0 0.0
    %152 = vmatprep.subr.mxu0 0.0
    %153 = vmatpush2.msra.mxu0 0.0
    %154 = vmatprep.subr.mxu0 0.0
    %155 = vmatpush2.msra.mxu0 0.0
    %156 = vmatprep.subr.mxu0 0.0
    %157 = vmatpush2.msra.mxu0 0.0
    %158 = vmatprep.subr.mxu0 0.0
    %159 = vmatpush2.msra.mxu0 0.0
    %160 = vmatprep.subr.mxu0 0.0
    %161 = vmatpush2.msra.mxu0 0.0
    %162 = vmatprep.subr.mxu0 0.0
    %163 = vmatpush2.msra.mxu0 0.0
    %164 = vmatprep.subr.mxu0 0.0
    %165 = vmatpush2.msra.mxu0 0.0
    %166 = vmatprep.subr.mxu0 0.0
    %167 = vmatpush2.msra.mxu0 0.0
    %168 = vmatprep.subr.mxu0 0.0
    %169 = vmatpush2.msra.mxu0 0.0
    %170 = vmatprep.subr.mxu0 0.0
    %171 = vmatpush2.msra.mxu0 0.0
    %172 = vmatprep.mubr.f32.mxu0 0.0
    %173 = vmatmul.mubr.f32.gmra.mxu0 %v85
    %v174 = vpop.f32.mrf.mxu0
    %v175 = vadd.f32 %v81, %v174
    %v176 = vpop.f32.mrf.mxu0
    %177 = vmatprep.mubr.f32.mxu0 0.0
    %178 = vmatmul.mubr.f32.gmra.mxu0 %v88
    %v179 = vpop.f32.mrf.mxu0
    %v180 = vadd.f32 %v81, %v179
    %v181 = vpop.f32.mrf.mxu0
    %182 = vmatprep.mubr.f32.mxu0 0.0
    %183 = vmatmul.mubr.f32.gmra.mxu0 %v91
    %v184 = vpop.f32.mrf.mxu0
    %v185 = vadd.f32 %v81, %v184
    %v186 = vpop.f32.mrf.mxu0
    %187 = vmatprep.mubr.f32.mxu0 0.0
    %188 = vmatmul.mubr.f32.gmra.mxu0 %v94
    %v189 = vpop.f32.mrf.mxu0
    %v190 = vadd.f32 %v81, %v189
    %v191 = vpop.f32.mrf.mxu0
    %192 = vmatprep.mubr.f32.mxu0 0.0
    %193 = vmatmul.mubr.f32.gmra.mxu0 %v97
    %v194 = vpop.f32.mrf.mxu0
    %v195 = vadd.f32 %v81, %v194
    %v196 = vpop.f32.mrf.mxu0
    %197 = vmatprep.mubr.f32.mxu0 0.0
    %198 = vmatmul.mubr.f32.gmra.mxu0 %v100
    %v199 = vpop.f32.mrf.mxu0
    %v200 = vadd.f32 %v81, %v199
    %v201 = vpop.f32.mrf.mxu0
    %202 = vmatprep.mubr.f32.mxu0 0.0
    %203 = vmatmul.mubr.f32.gmra.mxu0 %v103
    %v204 = vpop.f32.mrf.mxu0
    %v205 = vadd.f32 %v81, %v204
    %v206 = vpop.f32.mrf.mxu0
    %207 = vmatprep.mubr.f32.mxu0 0.0
    %208 = vmatmul.mubr.f32.gmra.mxu0 %v106
    %v209 = vpop.f32.mrf.mxu0
    %v210 = vadd.f32 %v81, %v209
    %v211 = vpop.f32.mrf.mxu0
    %212 = vdwg.mxu0
    %213 = vst [vmem:[#allocation2] sm:$0xff] %v175
    %214 = vst [vmem:[#allocation2 + $0x8] sm:$0xff] %v180
    %215 = vst [vmem:[#allocation2 + $0x10] sm:$0xff] %v185
    %216 = vst [vmem:[#allocation2 + $0x18] sm:$0xff] %v190
    %217 = vst [vmem:[#allocation2 + $0x20] sm:$0xff] %v195
    %218 = vst [vmem:[#allocation2 + $0x28] sm:$0xff] %v200
    %219 = vst [vmem:[#allocation2 + $0x30] sm:$0xff] %v205
    %220 = vst [vmem:[#allocation2 + $0x38] sm:$0xff] %v210
    %v221 = vld [vmem:[%s5] sm:$0xff]
    %v222 = vld [vmem:[%s5 + $0x8] sm:$0xff]
    %v223 = vld [vmem:[%s5 + $0x10] sm:$0xff]
    %v224 = vld [vmem:[%s5 + $0x18] sm:$0xff]
    %s225 = scalar_lea.vmem %s5, 32
    %v226 = vld [vmem:[%s225] sm:$0xff]
    %v227 = vld [vmem:[%s225 + $0x8] sm:$0xff]
    %v228 = vld [vmem:[%s225 + $0x10] sm:$0xff]
    %v229 = vld [vmem:[%s225 + $0x18] sm:$0xff]
    %v230 = vld [vmem:[#allocation3] sm:$0xff]
    %v231 = vld [vmem:[#allocation3 + $0x8] sm:$0xff]
    %v232 = vld [vmem:[#allocation3 + $0x10] sm:$0xff]
    %v233 = vld [vmem:[#allocation3 + $0x18] sm:$0xff]
    %v234 = vld [vmem:[%s4] sm:$0x1]
    %v235 = vld [vmem:[#allocation2] sm:$0xff]
    %vm236 = vcmask 261120
    %v238 = vsel %vm236, 0.0, 0
    %240 = vmatprep.subr.mxu0 0.0
    %241 = vmatpush1.msra.mxu0 0.0
    %242 = vmatprep.subr.mxu0 0.0
    %243 = vmatpush1.msra.mxu0 0.0
    %244 = vmatprep.subr.mxu0 0.0
    %245 = vmatpush1.msra.mxu0 0.0
    %246 = vmatprep.subr.mxu0 0.0
    %247 = vmatpush1.msra.mxu0 0.0
    %248 = vmatprep.subr.mxu0 0.0
    %249 = vmatpush1.msra.mxu0 0.0
    %250 = vmatprep.subr.mxu0 0.0
    %251 = vmatpush1.msra.mxu0 0.0
    %252 = vmatprep.subr.mxu0 0.0
    %253 = vmatpush1.msra.mxu0 0.0
    %254 = vmatprep.subr.mxu0 0.0
    %255 = vmatpush1.msra.mxu0 0.0
    %256 = vmatprep.subr.mxu0 0.0
    %257 = vmatpush1.msra.mxu0 0.0
    %258 = vmatprep.subr.mxu0 0.0
    %259 = vmatpush1.msra.mxu0 0.0
    %260 = vmatprep.subr.mxu0 0.0
    %261 = vmatpush1.msra.mxu0 0.0
    %262 = vmatprep.subr.mxu0 0.0
    %263 = vmatpush1.msra.mxu0 0.0
    %264 = vmatprep.subr.mxu0 0.0
    %265 = vmatpush1.msra.mxu0 %v224
    %266 = vmatprep.subr.mxu0 0.0
    %267 = vmatpush1.msra.mxu0 %v223
    %268 = vmatprep.subr.mxu0 0.0
    %269 = vmatpush1.msra.mxu0 %v222
    %270 = vmatprep.subr.mxu0 0.0
    %271 = vmatpush1.msra.mxu0 %v221
    %272 = vmatprep.subr.mxu0 0.0
    %273 = vmatpush2.msra.mxu0 0.0
    %274 = vmatprep.subr.mxu0 0.0
    %275 = vmatpush2.msra.mxu0 0.0
    %276 = vmatprep.subr.mxu0 0.0
    %277 = vmatpush2.msra.mxu0 0.0
    %278 = vmatprep.subr.mxu0 0.0
    %279 = vmatpush2.msra.mxu0 0.0
    %280 = vmatprep.subr.mxu0 0.0
    %281 = vmatpush2.msra.mxu0 0.0
    %282 = vmatprep.subr.mxu0 0.0
    %283 = vmatpush2.msra.mxu0 0.0
    %284 = vmatprep.subr.mxu0 0.0
    %285 = vmatpush2.msra.mxu0 0.0
    %286 = vmatprep.subr.mxu0 0.0
    %287 = vmatpush2.msra.mxu0 0.0
    %288 = vmatprep.subr.mxu0 0.0
    %289 = vmatpush2.msra.mxu0 0.0
    %290 = vmatprep.subr.mxu0 0.0
    %291 = vmatpush2.msra.mxu0 0.0
    %292 = vmatprep.subr.mxu0 0.0
    %293 = vmatpush2.msra.mxu0 0.0
    %294 = vmatprep.subr.mxu0 0.0
    %295 = vmatpush2.msra.mxu0 0.0
    %296 = vmatprep.subr.mxu0 0.0
    %297 = vmatpush2.msra.mxu0 0.0
    %298 = vmatprep.subr.mxu0 0.0
    %299 = vmatpush2.msra.mxu0 0.0
    %300 = vmatprep.subr.mxu0 0.0
    %301 = vmatpush2.msra.mxu0 0.0
    %302 = vmatprep.subr.mxu0 0.0
    %303 = vmatpush2.msra.mxu0 0.0
    %304 = vmatprep.mubr.f32.mxu0 0.0
    %305 = vmatmul.mubr.f32.gmra.mxu0 %v238
    %v306 = vpop.f32.mrf.mxu0
    %v307 = vadd.f32 0.0, %v306
    %v308 = vpop.f32.mrf.mxu0
    %309 = vdwg.mxu0
    %v310 = vadd.f32 %v235, %v307
    %v311 = vxor.u32 %v310, 2147483648
    %v312 = vmul.f32 %v311, 1.442695
    %v313 = vpow.pop %v312
    %v314 = vadd.f32 %v313, 1.0
    %v315 = vrcp.pop %v314
    %v316 = vmul.f32 1.0, %v315
    %v317 = vtanh.pop %v310
    %v318 = vmul.f32 %v316, 0.0
    %320 = vrot.lane.b32.xlu0 %v317, 64
    %v321 = vpop.permute.xlu0 %320
    %v323 = vmul.f32 %v316, %v321
    %325 = vrot.lane.b32.xlu0 %v323, 32
    %v326 = vpop.permute.xlu0 %325
    %v328 = vadd.f32 %v318, %v326
    %v329 = vtanh.pop %v328
    %331 = vrot.lane.b32.xlu0 %v329, 64
    %v332 = vpop.permute.xlu0 %331
    %v334 = vmul.f32 %v316, %v332
    %335 = vmatprep.subr.mxu0 0.0
    %336 = vmatpush1.msra.mxu0 0.0
    %337 = vmatprep.subr.mxu0 0.0
    %338 = vmatpush1.msra.mxu0 0.0
    %339 = vmatprep.subr.mxu0 0.0
    %340 = vmatpush1.msra.mxu0 0.0
    %341 = vmatprep.subr.mxu0 0.0
    %342 = vmatpush1.msra.mxu0 0.0
    %343 = vmatprep.subr.mxu0 0.0
    %344 = vmatpush1.msra.mxu0 0.0
    %345 = vmatprep.subr.mxu0 0.0
    %346 = vmatpush1.msra.mxu0 0.0
    %347 = vmatprep.subr.mxu0 0.0
    %348 = vmatpush1.msra.mxu0 0.0
    %349 = vmatprep.subr.mxu0 0.0
    %350 = vmatpush1.msra.mxu0 0.0
    %351 = vmatprep.subr.mxu0 0.0
    %352 = vmatpush1.msra.mxu0 0.0
    %353 = vmatprep.subr.mxu0 0.0
    %354 = vmatpush1.msra.mxu0 0.0
    %355 = vmatprep.subr.mxu0 0.0
    %356 = vmatpush1.msra.mxu0 0.0
    %357 = vmatprep.subr.mxu0 0.0
    %358 = vmatpush1.msra.mxu0 0.0
    %359 = vmatprep.subr.mxu0 0.0
    %360 = vmatpush1.msra.mxu0 %v229
    %361 = vmatprep.subr.mxu0 0.0
    %362 = vmatpush1.msra.mxu0 %v228
    %363 = vmatprep.subr.mxu0 0.0
    %364 = vmatpush1.msra.mxu0 %v227
    %365 = vmatprep.subr.mxu0 0.0
    %366 = vmatpush1.msra.mxu0 %v226
    %367 = vmatprep.subr.mxu0 0.0
    %368 = vmatpush2.msra.mxu0 0.0
    %369 = vmatprep.subr.mxu0 0.0
    %370 = vmatpush2.msra.mxu0 0.0
    %371 = vmatprep.subr.mxu0 0.0
    %372 = vmatpush2.msra.mxu0 0.0
    %373 = vmatprep.subr.mxu0 0.0
    %374 = vmatpush2.msra.mxu0 0.0
    %375 = vmatprep.subr.mxu0 0.0
    %376 = vmatpush2.msra.mxu0 0.0
    %377 = vmatprep.subr.mxu0 0.0
    %378 = vmatpush2.msra.mxu0 0.0
    %379 = vmatprep.subr.mxu0 0.0
    %380 = vmatpush2.msra.mxu0 0.0
    %381 = vmatprep.subr.mxu0 0.0
    %382 = vmatpush2.msra.mxu0 0.0
    %383 = vmatprep.subr.mxu0 0.0
    %384 = vmatpush2.msra.mxu0 0.0
    %385 = vmatprep.subr.mxu0 0.0
    %386 = vmatpush2.msra.mxu0 0.0
    %387 = vmatprep.subr.mxu0 0.0
    %388 = vmatpush2.msra.mxu0 0.0
    %389 = vmatprep.subr.mxu0 0.0
    %390 = vmatpush2.msra.mxu0 0.0
    %391 = vmatprep.subr.mxu0 0.0
    %392 = vmatpush2.msra.mxu0 0.0
    %393 = vmatprep.subr.mxu0 0.0
    %394 = vmatpush2.msra.mxu0 0.0
    %395 = vmatprep.subr.mxu0 0.0
    %396 = vmatpush2.msra.mxu0 0.0
    %397 = vmatprep.subr.mxu0 0.0
    %398 = vmatpush2.msra.mxu0 0.0
    %399 = vmatprep.mubr.f32.mxu0 0.0
    %400 = vmatmul.mubr.f32.gmra.mxu0 %v238
    %v401 = vpop.f32.mrf.mxu0
    %v402 = vadd.f32 0.0, %v401
    %v403 = vpop.f32.mrf.mxu0
    %404 = vdwg.mxu0
    %406 = vrot.lane.b32.xlu0 %v334, 32
    %v407 = vpop.permute.xlu0 %406
    %v408 = vsel %vm236, %v407, 0
    %410 = vmatprep.subr.mxu0 0.0
    %411 = vmatpush1.msra.mxu0 0.0
    %412 = vmatprep.subr.mxu0 0.0
    %413 = vmatpush1.msra.mxu0 0.0
    %414 = vmatprep.subr.mxu0 0.0
    %415 = vmatpush1.msra.mxu0 0.0
    %416 = vmatprep.subr.mxu0 0.0
    %417 = vmatpush1.msra.mxu0 0.0
    %418 = vmatprep.subr.mxu0 0.0
    %419 = vmatpush1.msra.mxu0 0.0
    %420 = vmatprep.subr.mxu0 0.0
    %421 = vmatpush1.msra.mxu0 0.0
    %422 = vmatprep.subr.mxu0 0.0
    %423 = vmatpush1.msra.mxu0 0.0
    %424 = vmatprep.subr.mxu0 0.0
    %425 = vmatpush1.msra.mxu0 0.0
    %426 = vmatprep.subr.mxu0 0.0
    %427 = vmatpush1.msra.mxu0 0.0
    %428 = vmatprep.subr.mxu0 0.0
    %429 = vmatpush1.msra.mxu0 0.0
    %430 = vmatprep.subr.mxu0 0.0
    %431 = vmatpush1.msra.mxu0 0.0
    %432 = vmatprep.subr.mxu0 0.0
    %433 = vmatpush1.msra.mxu0 0.0
    %434 = vmatprep.subr.mxu0 0.0
    %435 = vmatpush1.msra.mxu0 %v233
    %436 = vmatprep.subr.mxu0 0.0
    %437 = vmatpush1.msra.mxu0 %v232
    %438 = vmatprep.subr.mxu0 0.0
    %439 = vmatpush1.msra.mxu0 %v231
    %440 = vmatprep.subr.mxu0 0.0
    %441 = vmatpush1.msra.mxu0 %v230
    %442 = vmatprep.subr.mxu0 0.0
    %443 = vmatpush2.msra.mxu0 0.0
    %444 = vmatprep.subr.mxu0 0.0
    %445 = vmatpush2.msra.mxu0 0.0
    %446 = vmatprep.subr.mxu0 0.0
    %447 = vmatpush2.msra.mxu0 0.0
    %448 = vmatprep.subr.mxu0 0.0
    %449 = vmatpush2.msra.mxu0 0.0
    %450 = vmatprep.subr.mxu0 0.0
    %451 = vmatpush2.msra.mxu0 0.0
    %452 = vmatprep.subr.mxu0 0.0
    %453 = vmatpush2.msra.mxu0 0.0
    %454 = vmatprep.subr.mxu0 0.0
    %455 = vmatpush2.msra.mxu0 0.0
    %456 = vmatprep.subr.mxu0 0.0
    %457 = vmatpush2.msra.mxu0 0.0
    %458 = vmatprep.subr.mxu0 0.0
    %459 = vmatpush2.msra.mxu0 0.0
    %460 = vmatprep.subr.mxu0 0.0
    %461 = vmatpush2.msra.mxu0 0.0
    %462 = vmatprep.subr.mxu0 0.0
    %463 = vmatpush2.msra.mxu0 0.0
    %464 = vmatprep.subr.mxu0 0.0
    %465 = vmatpush2.msra.mxu0 0.0
    %466 = vmatprep.subr.mxu0 0.0
    %467 = vmatpush2.msra.mxu0 0.0
    %468 = vmatprep.subr.mxu0 0.0
    %469 = vmatpush2.msra.mxu0 0.0
    %470 = vmatprep.subr.mxu0 0.0
    %471 = vmatpush2.msra.mxu0 0.0
    %472 = vmatprep.subr.mxu0 0.0
    %473 = vmatpush2.msra.mxu0 0.0
    %474 = vmatprep.mubr.f32.mxu0 0.0
    %475 = vmatmul.mubr.f32.gmra.mxu0 %v408
    %v476 = vpop.f32.mrf.mxu0
    %v477 = vadd.f32 %v402, %v476
    %v478 = vpop.f32.mrf.mxu0
    %479 = vdwg.mxu0
    %v481 = vlaneseq
    %v482 = vshrl.u32 %v481, 7
    %v483 = vsub.s32 0, %v482
    %v484 = vrot.slane %v234, %v483
    %v486 = vadd.f32 %v477, %v484
    %v487 = vxor.u32 %v486, 2147483648
    %v488 = vmul.f32 %v487, 1.442695
    %v489 = vpow.pop %v488
    %v490 = vadd.f32 %v489, 1.0
    %v491 = vrcp.pop %v490
    %v492 = vmul.f32 1.0, %v491
    %v493 = vtanh.pop %v486
    %v494 = vmul.f32 %v492, 0.0
    %496 = vrot.lane.b32.xlu0 %v493, 64
    %v497 = vpop.permute.xlu0 %496
    %v499 = vmul.f32 %v492, %v497
    %501 = vrot.lane.b32.xlu0 %v499, 32
    %v502 = vpop.permute.xlu0 %501
    %v504 = vadd.f32 %v494, %v502
    %v505 = vtanh.pop %v504
    %507 = vrot.lane.b32.xlu0 %v505, 64
    %v508 = vpop.permute.xlu0 %507
    %v510 = vmul.f32 %v492, %v508
    %s511 = scalar_lea.vmem [#allocation2], 8
    %v512 = vld [vmem:[%s511] sm:$0xff]
    %513 = vmatprep.subr.mxu0 0.0
    %514 = vmatpush1.msra.mxu0 0.0
    %515 = vmatprep.subr.mxu0 0.0
    %516 = vmatpush1.msra.mxu0 0.0
    %517 = vmatprep.subr.mxu0 0.0
    %518 = vmatpush1.msra.mxu0 0.0
    %519 = vmatprep.subr.mxu0 0.0
    %520 = vmatpush1.msra.mxu0 0.0
    %521 = vmatprep.subr.mxu0 0.0
    %522 = vmatpush1.msra.mxu0 0.0
    %523 = vmatprep.subr.mxu0 0.0
    %524 = vmatpush1.msra.mxu0 0.0
    %525 = vmatprep.subr.mxu0 0.0
    %526 = vmatpush1.msra.mxu0 0.0
    %527 = vmatprep.subr.mxu0 0.0
    %528 = vmatpush1.msra.mxu0 0.0
    %529 = vmatprep.subr.mxu0 0.0
    %530 = vmatpush1.msra.mxu0 0.0
    %531 = vmatprep.subr.mxu0 0.0
    %532 = vmatpush1.msra.mxu0 0.0
    %533 = vmatprep.subr.mxu0 0.0
    %534 = vmatpush1.msra.mxu0 0.0
    %535 = vmatprep.subr.mxu0 0.0
    %536 = vmatpush1.msra.mxu0 0.0
    %537 = vmatprep.subr.mxu0 0.0
    %538 = vmatpush1.msra.mxu0 %v224
    %539 = vmatprep.subr.mxu0 0.0
    %540 = vmatpush1.msra.mxu0 %v223
    %541 = vmatprep.subr.mxu0 0.0
    %542 = vmatpush1.msra.mxu0 %v222
    %543 = vmatprep.subr.mxu0 0.0
    %544 = vmatpush1.msra.mxu0 %v221
    %545 = vmatprep.subr.mxu0 0.0
    %546 = vmatpush2.msra.mxu0 0.0
    %547 = vmatprep.subr.mxu0 0.0
    %548 = vmatpush2.msra.mxu0 0.0
    %549 = vmatprep.subr.mxu0 0.0
    %550 = vmatpush2.msra.mxu0 0.0
    %551 = vmatprep.subr.mxu0 0.0
    %552 = vmatpush2.msra.mxu0 0.0
    %553 = vmatprep.subr.mxu0 0.0
    %554 = vmatpush2.msra.mxu0 0.0
    %555 = vmatprep.subr.mxu0 0.0
    %556 = vmatpush2.msra.mxu0 0.0
    %557 = vmatprep.subr.mxu0 0.0
    %558 = vmatpush2.msra.mxu0 0.0
    %559 = vmatprep.subr.mxu0 0.0
    %560 = vmatpush2.msra.mxu0 0.0
    %561 = vmatprep.subr.mxu0 0.0
    %562 = vmatpush2.msra.mxu0 0.0
    %563 = vmatprep.subr.mxu0 0.0
    %564 = vmatpush2.msra.mxu0 0.0
    %565 = vmatprep.subr.mxu0 0.0
    %566 = vmatpush2.msra.mxu0 0.0
    %567 = vmatprep.subr.mxu0 0.0
    %568 = vmatpush2.msra.mxu0 0.0
    %569 = vmatprep.subr.mxu0 0.0
    %570 = vmatpush2.msra.mxu0 0.0
    %571 = vmatprep.subr.mxu0 0.0
    %572 = vmatpush2.msra.mxu0 0.0
    %573 = vmatprep.subr.mxu0 0.0
    %574 = vmatpush2.msra.mxu0 0.0
    %575 = vmatprep.subr.mxu0 0.0
    %576 = vmatpush2.msra.mxu0 0.0
    %577 = vmatprep.mubr.f32.mxu0 0.0
    %578 = vmatmul.mubr.f32.gmra.mxu0 %v408
    %v579 = vpop.f32.mrf.mxu0
    %v580 = vadd.f32 0.0, %v579
    %v581 = vpop.f32.mrf.mxu0
    %582 = vdwg.mxu0
    %v583 = vadd.f32 %v512, %v580
    %v584 = vxor.u32 %v583, 2147483648
    %v585 = vmul.f32 %v584, 1.442695
    %v586 = vpow.pop %v585
    %v587 = vadd.f32 %v586, 1.0
    %v588 = vrcp.pop %v587
    %v589 = vmul.f32 1.0, %v588
    %v590 = vtanh.pop %v583
    %v591 = vmul.f32 %v589, %v328
    %593 = vrot.lane.b32.xlu0 %v590, 64
    %v594 = vpop.permute.xlu0 %593
    %v596 = vmul.f32 %v589, %v594
    %598 = vrot.lane.b32.xlu0 %v596, 32
    %v599 = vpop.permute.xlu0 %598
    %v601 = vadd.f32 %v591, %v599
    %v602 = vtanh.pop %v601
    %604 = vrot.lane.b32.xlu0 %v602, 64
    %v605 = vpop.permute.xlu0 %604
    %v607 = vmul.f32 %v589, %v605
    %609 = vrot.lane.b32.xlu0 %v510, 32
    %v610 = vpop.permute.xlu0 %609
    %v611 = vsel %vm236, %v610, 0
    %613 = vmatprep.subr.mxu0 0.0
    %614 = vmatpush1.msra.mxu0 0.0
    %615 = vmatprep.subr.mxu0 0.0
    %616 = vmatpush1.msra.mxu0 0.0
    %617 = vmatprep.subr.mxu0 0.0
    %618 = vmatpush1.msra.mxu0 0.0
    %619 = vmatprep.subr.mxu0 0.0
    %620 = vmatpush1.msra.mxu0 0.0
    %621 = vmatprep.subr.mxu0 0.0
    %622 = vmatpush1.msra.mxu0 0.0
    %623 = vmatprep.subr.mxu0 0.0
    %624 = vmatpush1.msra.mxu0 0.0
    %625 = vmatprep.subr.mxu0 0.0
    %626 = vmatpush1.msra.mxu0 0.0
    %627 = vmatprep.subr.mxu0 0.0
    %628 = vmatpush1.msra.mxu0 0.0
    %629 = vmatprep.subr.mxu0 0.0
    %630 = vmatpush1.msra.mxu0 0.0
    %631 = vmatprep.subr.mxu0 0.0
    %632 = vmatpush1.msra.mxu0 0.0
    %633 = vmatprep.subr.mxu0 0.0
    %634 = vmatpush1.msra.mxu0 0.0
    %635 = vmatprep.subr.mxu0 0.0
    %636 = vmatpush1.msra.mxu0 0.0
    %637 = vmatprep.subr.mxu0 0.0
    %638 = vmatpush1.msra.mxu0 %v229
    %639 = vmatprep.subr.mxu0 0.0
    %640 = vmatpush1.msra.mxu0 %v228
    %641 = vmatprep.subr.mxu0 0.0
    %642 = vmatpush1.msra.mxu0 %v227
    %643 = vmatprep.subr.mxu0 0.0
    %644 = vmatpush1.msra.mxu0 %v226
    %645 = vmatprep.subr.mxu0 0.0
    %646 = vmatpush2.msra.mxu0 0.0
    %647 = vmatprep.subr.mxu0 0.0
    %648 = vmatpush2.msra.mxu0 0.0
    %649 = vmatprep.subr.mxu0 0.0
    %650 = vmatpush2.msra.mxu0 0.0
    %651 = vmatprep.subr.mxu0 0.0
    %652 = vmatpush2.msra.mxu0 0.0
    %653 = vmatprep.subr.mxu0 0.0
    %654 = vmatpush2.msra.mxu0 0.0
    %655 = vmatprep.subr.mxu0 0.0
    %656 = vmatpush2.msra.mxu0 0.0
    %657 = vmatprep.subr.mxu0 0.0
    %658 = vmatpush2.msra.mxu0 0.0
    %659 = vmatprep.subr.mxu0 0.0
    %660 = vmatpush2.msra.mxu0 0.0
    %661 = vmatprep.subr.mxu0 0.0
    %662 = vmatpush2.msra.mxu0 0.0
    %663 = vmatprep.subr.mxu0 0.0
    %664 = vmatpush2.msra.mxu0 0.0
    %665 = vmatprep.subr.mxu0 0.0
    %666 = vmatpush2.msra.mxu0 0.0
    %667 = vmatprep.subr.mxu0 0.0
    %668 = vmatpush2.msra.mxu0 0.0
    %669 = vmatprep.subr.mxu0 0.0
    %670 = vmatpush2.msra.mxu0 0.0
    %671 = vmatprep.subr.mxu0 0.0
    %672 = vmatpush2.msra.mxu0 0.0
    %673 = vmatprep.subr.mxu0 0.0
    %674 = vmatpush2.msra.mxu0 0.0
    %675 = vmatprep.subr.mxu0 0.0
    %676 = vmatpush2.msra.mxu0 0.0
    %677 = vmatprep.mubr.f32.mxu0 0.0
    %678 = vmatmul.mubr.f32.gmra.mxu0 %v611
    %v679 = vpop.f32.mrf.mxu0
    %v680 = vadd.f32 0.0, %v679
    %v681 = vpop.f32.mrf.mxu0
    %682 = vdwg.mxu0
    %684 = vrot.lane.b32.xlu0 %v607, 32
    %v685 = vpop.permute.xlu0 %684
    %v686 = vsel %vm236, %v685, 0
    %688 = vmatprep.subr.mxu0 0.0
    %689 = vmatpush1.msra.mxu0 0.0
    %690 = vmatprep.subr.mxu0 0.0
    %691 = vmatpush1.msra.mxu0 0.0
    %692 = vmatprep.subr.mxu0 0.0
    %693 = vmatpush1.msra.mxu0 0.0
    %694 = vmatprep.subr.mxu0 0.0
    %695 = vmatpush1.msra.mxu0 0.0
    %696 = vmatprep.subr.mxu0 0.0
    %697 = vmatpush1.msra.mxu0 0.0
    %698 = vmatprep.subr.mxu0 0.0
    %699 = vmatpush1.msra.mxu0 0.0
    %700 = vmatprep.subr.mxu0 0.0
    %701 = vmatpush1.msra.mxu0 0.0
    %702 = vmatprep.subr.mxu0 0.0
    %703 = vmatpush1.msra.mxu0 0.0
    %704 = vmatprep.subr.mxu0 0.0
    %705 = vmatpush1.msra.mxu0 0.0
    %706 = vmatprep.subr.mxu0 0.0
    %707 = vmatpush1.msra.mxu0 0.0
    %708 = vmatprep.subr.mxu0 0.0
    %709 = vmatpush1.msra.mxu0 0.0
    %710 = vmatprep.subr.mxu0 0.0
    %711 = vmatpush1.msra.mxu0 0.0
    %712 = vmatprep.subr.mxu0 0.0
    %713 = vmatpush1.msra.mxu0 %v233
    %714 = vmatprep.subr.mxu0 0.0
    %715 = vmatpush1.msra.mxu0 %v232
    %716 = vmatprep.subr.mxu0 0.0
    %717 = vmatpush1.msra.mxu0 %v231
    %718 = vmatprep.subr.mxu0 0.0
    %719 = vmatpush1.msra.mxu0 %v230
    %720 = vmatprep.subr.mxu0 0.0
    %721 = vmatpush2.msra.mxu0 0.0
    %722 = vmatprep.subr.mxu0 0.0
    %723 = vmatpush2.msra.mxu0 0.0
    %724 = vmatprep.subr.mxu0 0.0
    %725 = vmatpush2.msra.mxu0 0.0
    %726 = vmatprep.subr.mxu0 0.0
    %727 = vmatpush2.msra.mxu0 0.0
    %728 = vmatprep.subr.mxu0 0.0
    %729 = vmatpush2.msra.mxu0 0.0
    %730 = vmatprep.subr.mxu0 0.0
    %731 = vmatpush2.msra.mxu0 0.0
    %732 = vmatprep.subr.mxu0 0.0
    %733 = vmatpush2.msra.mxu0 0.0
    %734 = vmatprep.subr.mxu0 0.0
    %735 = vmatpush2.msra.mxu0 0.0
    %736 = vmatprep.subr.mxu0 0.0
    %737 = vmatpush2.msra.mxu0 0.0
    %738 = vmatprep.subr.mxu0 0.0
    %739 = vmatpush2.msra.mxu0 0.0
    %740 = vmatprep.subr.mxu0 0.0
    %741 = vmatpush2.msra.mxu0 0.0
    %742 = vmatprep.subr.mxu0 0.0
    %743 = vmatpush2.msra.mxu0 0.0
    %744 = vmatprep.subr.mxu0 0.0
    %745 = vmatpush2.msra.mxu0 0.0
    %746 = vmatprep.subr.mxu0 0.0
    %747 = vmatpush2.msra.mxu0 0.0
    %748 = vmatprep.subr.mxu0 0.0
    %749 = vmatpush2.msra.mxu0 0.0
    %750 = vmatprep.subr.mxu0 0.0
    %751 = vmatpush2.msra.mxu0 0.0
    %752 = vmatprep.mubr.f32.mxu0 0.0
    %753 = vmatmul.mubr.f32.gmra.mxu0 %v686
    %v754 = vpop.f32.mrf.mxu0
    %v755 = vadd.f32 %v680, %v754
    %v756 = vpop.f32.mrf.mxu0
    %757 = vdwg.mxu0
    %v758 = vadd.f32 %v755, %v484
    %v759 = vxor.u32 %v758, 2147483648
    %v760 = vmul.f32 %v759, 1.442695
    %v761 = vpow.pop %v760
    %v762 = vadd.f32 %v761, 1.0
    %v763 = vrcp.pop %v762
    %v764 = vmul.f32 1.0, %v763
    %v765 = vtanh.pop %v758
    %v766 = vmul.f32 %v764, %v504
    %768 = vrot.lane.b32.xlu0 %v765, 64
    %v769 = vpop.permute.xlu0 %768
    %v771 = vmul.f32 %v764, %v769
    %773 = vrot.lane.b32.xlu0 %v771, 32
    %v774 = vpop.permute.xlu0 %773
    %v776 = vadd.f32 %v766, %v774
    %v777 = vtanh.pop %v776
    %779 = vrot.lane.b32.xlu0 %v777, 64
    %v780 = vpop.permute.xlu0 %779
    %v782 = vmul.f32 %v764, %v780
    %s783 = scalar_lea.vmem [#allocation2], 16
    %v784 = vld [vmem:[%s783] sm:$0xff]
    %785 = vmatprep.subr.mxu0 0.0
    %786 = vmatpush1.msra.mxu0 0.0
    %787 = vmatprep.subr.mxu0 0.0
    %788 = vmatpush1.msra.mxu0 0.0
    %789 = vmatprep.subr.mxu0 0.0
    %790 = vmatpush1.msra.mxu0 0.0
    %791 = vmatprep.subr.mxu0 0.0
    %792 = vmatpush1.msra.mxu0 0.0
    %793 = vmatprep.subr.mxu0 0.0
    %794 = vmatpush1.msra.mxu0 0.0
    %795 = vmatprep.subr.mxu0 0.0
    %796 = vmatpush1.msra.mxu0 0.0
    %797 = vmatprep.subr.mxu0 0.0
    %798 = vmatpush1.msra.mxu0 0.0
    %799 = vmatprep.subr.mxu0 0.0
    %800 = vmatpush1.msra.mxu0 0.0
    %801 = vmatprep.subr.mxu0 0.0
    %802 = vmatpush1.msra.mxu0 0.0
    %803 = vmatprep.subr.mxu0 0.0
    %804 = vmatpush1.msra.mxu0 0.0
    %805 = vmatprep.subr.mxu0 0.0
    %806 = vmatpush1.msra.mxu0 0.0
    %807 = vmatprep.subr.mxu0 0.0
    %808 = vmatpush1.msra.mxu0 0.0
    %809 = vmatprep.subr.mxu0 0.0
    %810 = vmatpush1.msra.mxu0 %v224
    %811 = vmatprep.subr.mxu0 0.0
    %812 = vmatpush1.msra.mxu0 %v223
    %813 = vmatprep.subr.mxu0 0.0
    %814 = vmatpush1.msra.mxu0 %v222
    %815 = vmatprep.subr.mxu0 0.0
    %816 = vmatpush1.msra.mxu0 %v221
    %817 = vmatprep.subr.mxu0 0.0
    %818 = vmatpush2.msra.mxu0 0.0
    %819 = vmatprep.subr.mxu0 0.0
    %820 = vmatpush2.msra.mxu0 0.0
    %821 = vmatprep.subr.mxu0 0.0
    %822 = vmatpush2.msra.mxu0 0.0
    %823 = vmatprep.subr.mxu0 0.0
    %824 = vmatpush2.msra.mxu0 0.0
    %825 = vmatprep.subr.mxu0 0.0
    %826 = vmatpush2.msra.mxu0 0.0
    %827 = vmatprep.subr.mxu0 0.0
    %828 = vmatpush2.msra.mxu0 0.0
    %829 = vmatprep.subr.mxu0 0.0
    %830 = vmatpush2.msra.mxu0 0.0
    %831 = vmatprep.subr.mxu0 0.0
    %832 = vmatpush2.msra.mxu0 0.0
    %833 = vmatprep.subr.mxu0 0.0
    %834 = vmatpush2.msra.mxu0 0.0
    %835 = vmatprep.subr.mxu0 0.0
    %836 = vmatpush2.msra.mxu0 0.0
    %837 = vmatprep.subr.mxu0 0.0
    %838 = vmatpush2.msra.mxu0 0.0
    %839 = vmatprep.subr.mxu0 0.0
    %840 = vmatpush2.msra.mxu0 0.0
    %841 = vmatprep.subr.mxu0 0.0
    %842 = vmatpush2.msra.mxu0 0.0
    %843 = vmatprep.subr.mxu0 0.0
    %844 = vmatpush2.msra.mxu0 0.0
    %845 = vmatprep.subr.mxu0 0.0
    %846 = vmatpush2.msra.mxu0 0.0
    %847 = vmatprep.subr.mxu0 0.0
    %848 = vmatpush2.msra.mxu0 0.0
    %849 = vmatprep.mubr.f32.mxu0 0.0
    %850 = vmatmul.mubr.f32.gmra.mxu0 %v686
    %v851 = vpop.f32.mrf.mxu0
    %v852 = vadd.f32 0.0, %v851
    %v853 = vpop.f32.mrf.mxu0
    %854 = vdwg.mxu0
    %v855 = vadd.f32 %v784, %v852
    %v856 = vxor.u32 %v855, 2147483648
    %v857 = vmul.f32 %v856, 1.442695
    %v858 = vpow.pop %v857
    %v859 = vadd.f32 %v858, 1.0
    %v860 = vrcp.pop %v859
    %v861 = vmul.f32 1.0, %v860
    %v862 = vtanh.pop %v855
    %v863 = vmul.f32 %v861, %v601
    %865 = vrot.lane.b32.xlu0 %v862, 64
    %v866 = vpop.permute.xlu0 %865
    %v868 = vmul.f32 %v861, %v866
    %870 = vrot.lane.b32.xlu0 %v868, 32
    %v871 = vpop.permute.xlu0 %870
    %v873 = vadd.f32 %v863, %v871
    %v874 = vtanh.pop %v873
    %876 = vrot.lane.b32.xlu0 %v874, 64
    %v877 = vpop.permute.xlu0 %876
    %v879 = vmul.f32 %v861, %v877
    %881 = vrot.lane.b32.xlu0 %v782, 32
    %v882 = vpop.permute.xlu0 %881
    %v883 = vsel %vm236, %v882, 0
    %885 = vmatprep.subr.mxu0 0.0
    %886 = vmatpush1.msra.mxu0 0.0
    %887 = vmatprep.subr.mxu0 0.0
    %888 = vmatpush1.msra.mxu0 0.0
    %889 = vmatprep.subr.mxu0 0.0
    %890 = vmatpush1.msra.mxu0 0.0
    %891 = vmatprep.subr.mxu0 0.0
    %892 = vmatpush1.msra.mxu0 0.0
    %893 = vmatprep.subr.mxu0 0.0
    %894 = vmatpush1.msra.mxu0 0.0
    %895 = vmatprep.subr.mxu0 0.0
    %896 = vmatpush1.msra.mxu0 0.0
    %897 = vmatprep.subr.mxu0 0.0
    %898 = vmatpush1.msra.mxu0 0.0
    %899 = vmatprep.subr.mxu0 0.0
    %900 = vmatpush1.msra.mxu0 0.0
    %901 = vmatprep.subr.mxu0 0.0
    %902 = vmatpush1.msra.mxu0 0.0
    %903 = vmatprep.subr.mxu0 0.0
    %904 = vmatpush1.msra.mxu0 0.0
    %905 = vmatprep.subr.mxu0 0.0
    %906 = vmatpush1.msra.mxu0 0.0
    %907 = vmatprep.subr.mxu0 0.0
    %908 = vmatpush1.msra.mxu0 0.0
    %909 = vmatprep.subr.mxu0 0.0
    %910 = vmatpush1.msra.mxu0 %v229
    %911 = vmatprep.subr.mxu0 0.0
    %912 = vmatpush1.msra.mxu0 %v228
    %913 = vmatprep.subr.mxu0 0.0
    %914 = vmatpush1.msra.mxu0 %v227
    %915 = vmatprep.subr.mxu0 0.0
    %916 = vmatpush1.msra.mxu0 %v226
    %917 = vmatprep.subr.mxu0 0.0
    %918 = vmatpush2.msra.mxu0 0.0
    %919 = vmatprep.subr.mxu0 0.0
    %920 = vmatpush2.msra.mxu0 0.0
    %921 = vmatprep.subr.mxu0 0.0
    %922 = vmatpush2.msra.mxu0 0.0
    %923 = vmatprep.subr.mxu0 0.0
    %924 = vmatpush2.msra.mxu0 0.0
    %925 = vmatprep.subr.mxu0 0.0
    %926 = vmatpush2.msra.mxu0 0.0
    %927 = vmatprep.subr.mxu0 0.0
    %928 = vmatpush2.msra.mxu0 0.0
    %929 = vmatprep.subr.mxu0 0.0
    %930 = vmatpush2.msra.mxu0 0.0
    %931 = vmatprep.subr.mxu0 0.0
    %932 = vmatpush2.msra.mxu0 0.0
    %933 = vmatprep.subr.mxu0 0.0
    %934 = vmatpush2.msra.mxu0 0.0
    %935 = vmatprep.subr.mxu0 0.0
    %936 = vmatpush2.msra.mxu0 0.0
    %937 = vmatprep.subr.mxu0 0.0
    %938 = vmatpush2.msra.mxu0 0.0
    %939 = vmatprep.subr.mxu0 0.0
    %940 = vmatpush2.msra.mxu0 0.0
    %941 = vmatprep.subr.mxu0 0.0
    %942 = vmatpush2.msra.mxu0 0.0
    %943 = vmatprep.subr.mxu0 0.0
    %944 = vmatpush2.msra.mxu0 0.0
    %945 = vmatprep.subr.mxu0 0.0
    %946 = vmatpush2.msra.mxu0 0.0
    %947 = vmatprep.subr.mxu0 0.0
    %948 = vmatpush2.msra.mxu0 0.0
    %949 = vmatprep.mubr.f32.mxu0 0.0
    %950 = vmatmul.mubr.f32.gmra.mxu0 %v883
    %v951 = vpop.f32.mrf.mxu0
    %v952 = vadd.f32 0.0, %v951
    %v953 = vpop.f32.mrf.mxu0
    %954 = vdwg.mxu0
    %956 = vrot.lane.b32.xlu0 %v879, 32
    %v957 = vpop.permute.xlu0 %956
    %v958 = vsel %vm236, %v957, 0
    %960 = vmatprep.subr.mxu0 0.0
    %961 = vmatpush1.msra.mxu0 0.0
    %962 = vmatprep.subr.mxu0 0.0
    %963 = vmatpush1.msra.mxu0 0.0
    %964 = vmatprep.subr.mxu0 0.0
    %965 = vmatpush1.msra.mxu0 0.0
    %966 = vmatprep.subr.mxu0 0.0
    %967 = vmatpush1.msra.mxu0 0.0
    %968 = vmatprep.subr.mxu0 0.0
    %969 = vmatpush1.msra.mxu0 0.0
    %970 = vmatprep.subr.mxu0 0.0
    %971 = vmatpush1.msra.mxu0 0.0
    %972 = vmatprep.subr.mxu0 0.0
    %973 = vmatpush1.msra.mxu0 0.0
    %974 = vmatprep.subr.mxu0 0.0
    %975 = vmatpush1.msra.mxu0 0.0
    %976 = vmatprep.subr.mxu0 0.0
    %977 = vmatpush1.msra.mxu0 0.0
    %978 = vmatprep.subr.mxu0 0.0
    %979 = vmatpush1.msra.mxu0 0.0
    %980 = vmatprep.subr.mxu0 0.0
    %981 = vmatpush1.msra.mxu0 0.0
    %982 = vmatprep.subr.mxu0 0.0
    %983 = vmatpush1.msra.mxu0 0.0
    %984 = vmatprep.subr.mxu0 0.0
    %985 = vmatpush1.msra.mxu0 %v233
    %986 = vmatprep.subr.mxu0 0.0
    %987 = vmatpush1.msra.mxu0 %v232
    %988 = vmatprep.subr.mxu0 0.0
    %989 = vmatpush1.msra.mxu0 %v231
    %990 = vmatprep.subr.mxu0 0.0
    %991 = vmatpush1.msra.mxu0 %v230
    %992 = vmatprep.subr.mxu0 0.0
    %993 = vmatpush2.msra.mxu0 0.0
    %994 = vmatprep.subr.mxu0 0.0
    %995 = vmatpush2.msra.mxu0 0.0
    %996 = vmatprep.subr.mxu0 0.0
    %997 = vmatpush2.msra.mxu0 0.0
    %998 = vmatprep.subr.mxu0 0.0
    %999 = vmatpush2.msra.mxu0 0.0
    %1000 = vmatprep.subr.mxu0 0.0
    %1001 = vmatpush2.msra.mxu0 0.0
    %1002 = vmatprep.subr.mxu0 0.0
    %1003 = vmatpush2.msra.mxu0 0.0
    %1004 = vmatprep.subr.mxu0 0.0
    %1005 = vmatpush2.msra.mxu0 0.0
    %1006 = vmatprep.subr.mxu0 0.0
    %1007 = vmatpush2.msra.mxu0 0.0
    %1008 = vmatprep.subr.mxu0 0.0
    %1009 = vmatpush2.msra.mxu0 0.0
    %1010 = vmatprep.subr.mxu0 0.0
    %1011 = vmatpush2.msra.mxu0 0.0
    %1012 = vmatprep.subr.mxu0 0.0
    %1013 = vmatpush2.msra.mxu0 0.0
    %1014 = vmatprep.subr.mxu0 0.0
    %1015 = vmatpush2.msra.mxu0 0.0
    %1016 = vmatprep.subr.mxu0 0.0
    %1017 = vmatpush2.msra.mxu0 0.0
    %1018 = vmatprep.subr.mxu0 0.0
    %1019 = vmatpush2.msra.mxu0 0.0
    %1020 = vmatprep.subr.mxu0 0.0
    %1021 = vmatpush2.msra.mxu0 0.0
    %1022 = vmatprep.subr.mxu0 0.0
    %1023 = vmatpush2.msra.mxu0 0.0
    %1024 = vmatprep.mubr.f32.mxu0 0.0
    %1025 = vmatmul.mubr.f32.gmra.mxu0 %v958
    %v1026 = vpop.f32.mrf.mxu0
    %v1027 = vadd.f32 %v952, %v1026
    %v1028 = vpop.f32.mrf.mxu0
    %1029 = vdwg.mxu0
    %v1030 = vadd.f32 %v1027, %v484
    %v1031 = vxor.u32 %v1030, 2147483648
    %v1032 = vmul.f32 %v1031, 1.442695
    %v1033 = vpow.pop %v1032
    %v1034 = vadd.f32 %v1033, 1.0
    %v1035 = vrcp.pop %v1034
    %v1036 = vmul.f32 1.0, %v1035
    %v1037 = vtanh.pop %v1030
    %v1038 = vmul.f32 %v1036, %v776
    %1040 = vrot.lane.b32.xlu0 %v1037, 64
    %v1041 = vpop.permute.xlu0 %1040
    %v1043 = vmul.f32 %v1036, %v1041
    %1045 = vrot.lane.b32.xlu0 %v1043, 32
    %v1046 = vpop.permute.xlu0 %1045
    %v1048 = vadd.f32 %v1038, %v1046
    %v1049 = vtanh.pop %v1048
    %1051 = vrot.lane.b32.xlu0 %v1049, 64
    %v1052 = vpop.permute.xlu0 %1051
    %v1054 = vmul.f32 %v1036, %v1052
    %s1055 = scalar_lea.vmem [#allocation2], 24
    %v1056 = vld [vmem:[%s1055] sm:$0xff]
    %1057 = vmatprep.subr.mxu0 0.0
    %1058 = vmatpush1.msra.mxu0 0.0
    %1059 = vmatprep.subr.mxu0 0.0
    %1060 = vmatpush1.msra.mxu0 0.0
    %1061 = vmatprep.subr.mxu0 0.0
    %1062 = vmatpush1.msra.mxu0 0.0
    %1063 = vmatprep.subr.mxu0 0.0
    %1064 = vmatpush1.msra.mxu0 0.0
    %1065 = vmatprep.subr.mxu0 0.0
    %1066 = vmatpush1.msra.mxu0 0.0
    %1067 = vmatprep.subr.mxu0 0.0
    %1068 = vmatpush1.msra.mxu0 0.0
    %1069 = vmatprep.subr.mxu0 0.0
    %1070 = vmatpush1.msra.mxu0 0.0
    %1071 = vmatprep.subr.mxu0 0.0
    %1072 = vmatpush1.msra.mxu0 0.0
    %1073 = vmatprep.subr.mxu0 0.0
    %1074 = vmatpush1.msra.mxu0 0.0
    %1075 = vmatprep.subr.mxu0 0.0
    %1076 = vmatpush1.msra.mxu0 0.0
    %1077 = vmatprep.subr.mxu0 0.0
    %1078 = vmatpush1.msra.mxu0 0.0
    %1079 = vmatprep.subr.mxu0 0.0
    %1080 = vmatpush1.msra.mxu0 0.0
    %1081 = vmatprep.subr.mxu0 0.0
    %1082 = vmatpush1.msra.mxu0 %v224
    %1083 = vmatprep.subr.mxu0 0.0
    %1084 = vmatpush1.msra.mxu0 %v223
    %1085 = vmatprep.subr.mxu0 0.0
    %1086 = vmatpush1.msra.mxu0 %v222
    %1087 = vmatprep.subr.mxu0 0.0
    %1088 = vmatpush1.msra.mxu0 %v221
    %1089 = vmatprep.subr.mxu0 0.0
    %1090 = vmatpush2.msra.mxu0 0.0
    %1091 = vmatprep.subr.mxu0 0.0
    %1092 = vmatpush2.msra.mxu0 0.0
    %1093 = vmatprep.subr.mxu0 0.0
    %1094 = vmatpush2.msra.mxu0 0.0
    %1095 = vmatprep.subr.mxu0 0.0
    %1096 = vmatpush2.msra.mxu0 0.0
    %1097 = vmatprep.subr.mxu0 0.0
    %1098 = vmatpush2.msra.mxu0 0.0
    %1099 = vmatprep.subr.mxu0 0.0
    %1100 = vmatpush2.msra.mxu0 0.0
    %1101 = vmatprep.subr.mxu0 0.0
    %1102 = vmatpush2.msra.mxu0 0.0
    %1103 = vmatprep.subr.mxu0 0.0
    %1104 = vmatpush2.msra.mxu0 0.0
    %1105 = vmatprep.subr.mxu0 0.0
    %1106 = vmatpush2.msra.mxu0 0.0
    %1107 = vmatprep.subr.mxu0 0.0
    %1108 = vmatpush2.msra.mxu0 0.0
    %1109 = vmatprep.subr.mxu0 0.0
    %1110 = vmatpush2.msra.mxu0 0.0
    %1111 = vmatprep.subr.mxu0 0.0
    %1112 = vmatpush2.msra.mxu0 0.0
    %1113 = vmatprep.subr.mxu0 0.0
    %1114 = vmatpush2.msra.mxu0 0.0
    %1115 = vmatprep.subr.mxu0 0.0
    %1116 = vmatpush2.msra.mxu0 0.0
    %1117 = vmatprep.subr.mxu0 0.0
    %1118 = vmatpush2.msra.mxu0 0.0
    %1119 = vmatprep.subr.mxu0 0.0
    %1120 = vmatpush2.msra.mxu0 0.0
    %1121 = vmatprep.mubr.f32.mxu0 0.0
    %1122 = vmatmul.mubr.f32.gmra.mxu0 %v958
    %v1123 = vpop.f32.mrf.mxu0
    %v1124 = vadd.f32 0.0, %v1123
    %v1125 = vpop.f32.mrf.mxu0
    %1126 = vdwg.mxu0
    %v1127 = vadd.f32 %v1056, %v1124
    %v1128 = vxor.u32 %v1127, 2147483648
    %v1129 = vmul.f32 %v1128, 1.442695
    %v1130 = vpow.pop %v1129
    %v1131 = vadd.f32 %v1130, 1.0
    %v1132 = vrcp.pop %v1131
    %v1133 = vmul.f32 1.0, %v1132
    %v1134 = vtanh.pop %v1127
    %v1135 = vmul.f32 %v1133, %v873
    %1137 = vrot.lane.b32.xlu0 %v1134, 64
    %v1138 = vpop.permute.xlu0 %1137
    %v1140 = vmul.f32 %v1133, %v1138
    %1142 = vrot.lane.b32.xlu0 %v1140, 32
    %v1143 = vpop.permute.xlu0 %1142
    %v1145 = vadd.f32 %v1135, %v1143
    %v1146 = vtanh.pop %v1145
    %1148 = vrot.lane.b32.xlu0 %v1146, 64
    %v1149 = vpop.permute.xlu0 %1148
    %v1151 = vmul.f32 %v1133, %v1149
    %1153 = vrot.lane.b32.xlu0 %v1054, 32
    %v1154 = vpop.permute.xlu0 %1153
    %v1155 = vsel %vm236, %v1154, 0
    %1157 = vmatprep.subr.mxu0 0.0
    %1158 = vmatpush1.msra.mxu0 0.0
    %1159 = vmatprep.subr.mxu0 0.0
    %1160 = vmatpush1.msra.mxu0 0.0
    %1161 = vmatprep.subr.mxu0 0.0
    %1162 = vmatpush1.msra.mxu0 0.0
    %1163 = vmatprep.subr.mxu0 0.0
    %1164 = vmatpush1.msra.mxu0 0.0
    %1165 = vmatprep.subr.mxu0 0.0
    %1166 = vmatpush1.msra.mxu0 0.0
    %1167 = vmatprep.subr.mxu0 0.0
    %1168 = vmatpush1.msra.mxu0 0.0
    %1169 = vmatprep.subr.mxu0 0.0
    %1170 = vmatpush1.msra.mxu0 0.0
    %1171 = vmatprep.subr.mxu0 0.0
    %1172 = vmatpush1.msra.mxu0 0.0
    %1173 = vmatprep.subr.mxu0 0.0
    %1174 = vmatpush1.msra.mxu0 0.0
    %1175 = vmatprep.subr.mxu0 0.0
    %1176 = vmatpush1.msra.mxu0 0.0
    %1177 = vmatprep.subr.mxu0 0.0
    %1178 = vmatpush1.msra.mxu0 0.0
    %1179 = vmatprep.subr.mxu0 0.0
    %1180 = vmatpush1.msra.mxu0 0.0
    %1181 = vmatprep.subr.mxu0 0.0
    %1182 = vmatpush1.msra.mxu0 %v229
    %1183 = vmatprep.subr.mxu0 0.0
    %1184 = vmatpush1.msra.mxu0 %v228
    %1185 = vmatprep.subr.mxu0 0.0
    %1186 = vmatpush1.msra.mxu0 %v227
    %1187 = vmatprep.subr.mxu0 0.0
    %1188 = vmatpush1.msra.mxu0 %v226
    %1189 = vmatprep.subr.mxu0 0.0
    %1190 = vmatpush2.msra.mxu0 0.0
    %1191 = vmatprep.subr.mxu0 0.0
    %1192 = vmatpush2.msra.mxu0 0.0
    %1193 = vmatprep.subr.mxu0 0.0
    %1194 = vmatpush2.msra.mxu0 0.0
    %1195 = vmatprep.subr.mxu0 0.0
    %1196 = vmatpush2.msra.mxu0 0.0
    %1197 = vmatprep.subr.mxu0 0.0
    %1198 = vmatpush2.msra.mxu0 0.0
    %1199 = vmatprep.subr.mxu0 0.0
    %1200 = vmatpush2.msra.mxu0 0.0
    %1201 = vmatprep.subr.mxu0 0.0
    %1202 = vmatpush2.msra.mxu0 0.0
    %1203 = vmatprep.subr.mxu0 0.0
    %1204 = vmatpush2.msra.mxu0 0.0
    %1205 = vmatprep.subr.mxu0 0.0
    %1206 = vmatpush2.msra.mxu0 0.0
    %1207 = vmatprep.subr.mxu0 0.0
    %1208 = vmatpush2.msra.mxu0 0.0
    %1209 = vmatprep.subr.mxu0 0.0
    %1210 = vmatpush2.msra.mxu0 0.0
    %1211 = vmatprep.subr.mxu0 0.0
    %1212 = vmatpush2.msra.mxu0 0.0
    %1213 = vmatprep.subr.mxu0 0.0
    %1214 = vmatpush2.msra.mxu0 0.0
    %1215 = vmatprep.subr.mxu0 0.0
    %1216 = vmatpush2.msra.mxu0 0.0
    %1217 = vmatprep.subr.mxu0 0.0
    %1218 = vmatpush2.msra.mxu0 0.0
    %1219 = vmatprep.subr.mxu0 0.0
    %1220 = vmatpush2.msra.mxu0 0.0
    %1221 = vmatprep.mubr.f32.mxu0 0.0
    %1222 = vmatmul.mubr.f32.gmra.mxu0 %v1155
    %v1223 = vpop.f32.mrf.mxu0
    %v1224 = vadd.f32 0.0, %v1223
    %v1225 = vpop.f32.mrf.mxu0
    %1226 = vdwg.mxu0
    %1228 = vrot.lane.b32.xlu0 %v1151, 32
    %v1229 = vpop.permute.xlu0 %1228
    %v1230 = vsel %vm236, %v1229, 0
    %1232 = vmatprep.subr.mxu0 0.0
    %1233 = vmatpush1.msra.mxu0 0.0
    %1234 = vmatprep.subr.mxu0 0.0
    %1235 = vmatpush1.msra.mxu0 0.0
    %1236 = vmatprep.subr.mxu0 0.0
    %1237 = vmatpush1.msra.mxu0 0.0
    %1238 = vmatprep.subr.mxu0 0.0
    %1239 = vmatpush1.msra.mxu0 0.0
    %1240 = vmatprep.subr.mxu0 0.0
    %1241 = vmatpush1.msra.mxu0 0.0
    %1242 = vmatprep.subr.mxu0 0.0
    %1243 = vmatpush1.msra.mxu0 0.0
    %1244 = vmatprep.subr.mxu0 0.0
    %1245 = vmatpush1.msra.mxu0 0.0
    %1246 = vmatprep.subr.mxu0 0.0
    %1247 = vmatpush1.msra.mxu0 0.0
    %1248 = vmatprep.subr.mxu0 0.0
    %1249 = vmatpush1.msra.mxu0 0.0
    %1250 = vmatprep.subr.mxu0 0.0
    %1251 = vmatpush1.msra.mxu0 0.0
    %1252 = vmatprep.subr.mxu0 0.0
    %1253 = vmatpush1.msra.mxu0 0.0
    %1254 = vmatprep.subr.mxu0 0.0
    %1255 = vmatpush1.msra.mxu0 0.0
    %1256 = vmatprep.subr.mxu0 0.0
    %1257 = vmatpush1.msra.mxu0 %v233
    %1258 = vmatprep.subr.mxu0 0.0
    %1259 = vmatpush1.msra.mxu0 %v232
    %1260 = vmatprep.subr.mxu0 0.0
    %1261 = vmatpush1.msra.mxu0 %v231
    %1262 = vmatprep.subr.mxu0 0.0
    %1263 = vmatpush1.msra.mxu0 %v230
    %1264 = vmatprep.subr.mxu0 0.0
    %1265 = vmatpush2.msra.mxu0 0.0
    %1266 = vmatprep.subr.mxu0 0.0
    %1267 = vmatpush2.msra.mxu0 0.0
    %1268 = vmatprep.subr.mxu0 0.0
    %1269 = vmatpush2.msra.mxu0 0.0
    %1270 = vmatprep.subr.mxu0 0.0
    %1271 = vmatpush2.msra.mxu0 0.0
    %1272 = vmatprep.subr.mxu0 0.0
    %1273 = vmatpush2.msra.mxu0 0.0
    %1274 = vmatprep.subr.mxu0 0.0
    %1275 = vmatpush2.msra.mxu0 0.0
    %1276 = vmatprep.subr.mxu0 0.0
    %1277 = vmatpush2.msra.mxu0 0.0
    %1278 = vmatprep.subr.mxu0 0.0
    %1279 = vmatpush2.msra.mxu0 0.0
    %1280 = vmatprep.subr.mxu0 0.0
    %1281 = vmatpush2.msra.mxu0 0.0
    %1282 = vmatprep.subr.mxu0 0.0
    %1283 = vmatpush2.msra.mxu0 0.0
    %1284 = vmatprep.subr.mxu0 0.0
    %1285 = vmatpush2.msra.mxu0 0.0
    %1286 = vmatprep.subr.mxu0 0.0
    %1287 = vmatpush2.msra.mxu0 0.0
    %1288 = vmatprep.subr.mxu0 0.0
    %1289 = vmatpush2.msra.mxu0 0.0
    %1290 = vmatprep.subr.mxu0 0.0
    %1291 = vmatpush2.msra.mxu0 0.0
    %1292 = vmatprep.subr.mxu0 0.0
    %1293 = vmatpush2.msra.mxu0 0.0
    %1294 = vmatprep.subr.mxu0 0.0
    %1295 = vmatpush2.msra.mxu0 0.0
    %1296 = vmatprep.mubr.f32.mxu0 0.0
    %1297 = vmatmul.mubr.f32.gmra.mxu0 %v1230
    %v1298 = vpop.f32.mrf.mxu0
    %v1299 = vadd.f32 %v1224, %v1298
    %v1300 = vpop.f32.mrf.mxu0
    %1301 = vdwg.mxu0
    %v1302 = vadd.f32 %v1299, %v484
    %v1303 = vxor.u32 %v1302, 2147483648
    %v1304 = vmul.f32 %v1303, 1.442695
    %v1305 = vpow.pop %v1304
    %v1306 = vadd.f32 %v1305, 1.0
    %v1307 = vrcp.pop %v1306
    %v1308 = vmul.f32 1.0, %v1307
    %v1309 = vtanh.pop %v1302
    %v1310 = vmul.f32 %v1308, %v1048
    %1312 = vrot.lane.b32.xlu0 %v1309, 64
    %v1313 = vpop.permute.xlu0 %1312
    %v1315 = vmul.f32 %v1308, %v1313
    %1317 = vrot.lane.b32.xlu0 %v1315, 32
    %v1318 = vpop.permute.xlu0 %1317
    %v1320 = vadd.f32 %v1310, %v1318
    %v1321 = vtanh.pop %v1320
    %1323 = vrot.lane.b32.xlu0 %v1321, 64
    %v1324 = vpop.permute.xlu0 %1323
    %v1326 = vmul.f32 %v1308, %v1324
    %s1327 = scalar_lea.vmem [#allocation2], 32
    %v1328 = vld [vmem:[%s1327] sm:$0xff]
    %1329 = vmatprep.subr.mxu0 0.0
    %1330 = vmatpush1.msra.mxu0 0.0
    %1331 = vmatprep.subr.mxu0 0.0
    %1332 = vmatpush1.msra.mxu0 0.0
    %1333 = vmatprep.subr.mxu0 0.0
    %1334 = vmatpush1.msra.mxu0 0.0
    %1335 = vmatprep.subr.mxu0 0.0
    %1336 = vmatpush1.msra.mxu0 0.0
    %1337 = vmatprep.subr.mxu0 0.0
    %1338 = vmatpush1.msra.mxu0 0.0
    %1339 = vmatprep.subr.mxu0 0.0
    %1340 = vmatpush1.msra.mxu0 0.0
    %1341 = vmatprep.subr.mxu0 0.0
    %1342 = vmatpush1.msra.mxu0 0.0
    %1343 = vmatprep.subr.mxu0 0.0
    %1344 = vmatpush1.msra.mxu0 0.0
    %1345 = vmatprep.subr.mxu0 0.0
    %1346 = vmatpush1.msra.mxu0 0.0
    %1347 = vmatprep.subr.mxu0 0.0
    %1348 = vmatpush1.msra.mxu0 0.0
    %1349 = vmatprep.subr.mxu0 0.0
    %1350 = vmatpush1.msra.mxu0 0.0
    %1351 = vmatprep.subr.mxu0 0.0
    %1352 = vmatpush1.msra.mxu0 0.0
    %1353 = vmatprep.subr.mxu0 0.0
    %1354 = vmatpush1.msra.mxu0 %v224
    %1355 = vmatprep.subr.mxu0 0.0
    %1356 = vmatpush1.msra.mxu0 %v223
    %1357 = vmatprep.subr.mxu0 0.0
    %1358 = vmatpush1.msra.mxu0 %v222
    %1359 = vmatprep.subr.mxu0 0.0
    %1360 = vmatpush1.msra.mxu0 %v221
    %1361 = vmatprep.subr.mxu0 0.0
    %1362 = vmatpush2.msra.mxu0 0.0
    %1363 = vmatprep.subr.mxu0 0.0
    %1364 = vmatpush2.msra.mxu0 0.0
    %1365 = vmatprep.subr.mxu0 0.0
    %1366 = vmatpush2.msra.mxu0 0.0
    %1367 = vmatprep.subr.mxu0 0.0
    %1368 = vmatpush2.msra.mxu0 0.0
    %1369 = vmatprep.subr.mxu0 0.0
    %1370 = vmatpush2.msra.mxu0 0.0
    %1371 = vmatprep.subr.mxu0 0.0
    %1372 = vmatpush2.msra.mxu0 0.0
    %1373 = vmatprep.subr.mxu0 0.0
    %1374 = vmatpush2.msra.mxu0 0.0
    %1375 = vmatprep.subr.mxu0 0.0
    %1376 = vmatpush2.msra.mxu0 0.0
    %1377 = vmatprep.subr.mxu0 0.0
    %1378 = vmatpush2.msra.mxu0 0.0
    %1379 = vmatprep.subr.mxu0 0.0
    %1380 = vmatpush2.msra.mxu0 0.0
    %1381 = vmatprep.subr.mxu0 0.0
    %1382 = vmatpush2.msra.mxu0 0.0
    %1383 = vmatprep.subr.mxu0 0.0
    %1384 = vmatpush2.msra.mxu0 0.0
    %1385 = vmatprep.subr.mxu0 0.0
    %1386 = vmatpush2.msra.mxu0 0.0
    %1387 = vmatprep.subr.mxu0 0.0
    %1388 = vmatpush2.msra.mxu0 0.0
    %1389 = vmatprep.subr.mxu0 0.0
    %1390 = vmatpush2.msra.mxu0 0.0
    %1391 = vmatprep.subr.mxu0 0.0
    %1392 = vmatpush2.msra.mxu0 0.0
    %1393 = vmatprep.mubr.f32.mxu0 0.0
    %1394 = vmatmul.mubr.f32.gmra.mxu0 %v1230
    %v1395 = vpop.f32.mrf.mxu0
    %v1396 = vadd.f32 0.0, %v1395
    %v1397 = vpop.f32.mrf.mxu0
    %1398 = vdwg.mxu0
    %v1399 = vadd.f32 %v1328, %v1396
    %v1400 = vxor.u32 %v1399, 2147483648
    %v1401 = vmul.f32 %v1400, 1.442695
    %v1402 = vpow.pop %v1401
    %v1403 = vadd.f32 %v1402, 1.0
    %v1404 = vrcp.pop %v1403
    %v1405 = vmul.f32 1.0, %v1404
    %v1406 = vtanh.pop %v1399
    %v1407 = vmul.f32 %v1405, %v1145
    %1409 = vrot.lane.b32.xlu0 %v1406, 64
    %v1410 = vpop.permute.xlu0 %1409
    %v1412 = vmul.f32 %v1405, %v1410
    %1414 = vrot.lane.b32.xlu0 %v1412, 32
    %v1415 = vpop.permute.xlu0 %1414
    %v1417 = vadd.f32 %v1407, %v1415
    %v1418 = vtanh.pop %v1417
    %1420 = vrot.lane.b32.xlu0 %v1418, 64
    %v1421 = vpop.permute.xlu0 %1420
    %v1423 = vmul.f32 %v1405, %v1421
    %1425 = vrot.lane.b32.xlu0 %v1326, 32
    %v1426 = vpop.permute.xlu0 %1425
    %v1427 = vsel %vm236, %v1426, 0
    %1429 = vmatprep.subr.mxu0 0.0
    %1430 = vmatpush1.msra.mxu0 0.0
    %1431 = vmatprep.subr.mxu0 0.0
    %1432 = vmatpush1.msra.mxu0 0.0
    %1433 = vmatprep.subr.mxu0 0.0
    %1434 = vmatpush1.msra.mxu0 0.0
    %1435 = vmatprep.subr.mxu0 0.0
    %1436 = vmatpush1.msra.mxu0 0.0
    %1437 = vmatprep.subr.mxu0 0.0
    %1438 = vmatpush1.msra.mxu0 0.0
    %1439 = vmatprep.subr.mxu0 0.0
    %1440 = vmatpush1.msra.mxu0 0.0
    %1441 = vmatprep.subr.mxu0 0.0
    %1442 = vmatpush1.msra.mxu0 0.0
    %1443 = vmatprep.subr.mxu0 0.0
    %1444 = vmatpush1.msra.mxu0 0.0
    %1445 = vmatprep.subr.mxu0 0.0
    %1446 = vmatpush1.msra.mxu0 0.0
    %1447 = vmatprep.subr.mxu0 0.0
    %1448 = vmatpush1.msra.mxu0 0.0
    %1449 = vmatprep.subr.mxu0 0.0
    %1450 = vmatpush1.msra.mxu0 0.0
    %1451 = vmatprep.subr.mxu0 0.0
    %1452 = vmatpush1.msra.mxu0 0.0
    %1453 = vmatprep.subr.mxu0 0.0
    %1454 = vmatpush1.msra.mxu0 %v229
    %1455 = vmatprep.subr.mxu0 0.0
    %1456 = vmatpush1.msra.mxu0 %v228
    %1457 = vmatprep.subr.mxu0 0.0
    %1458 = vmatpush1.msra.mxu0 %v227
    %1459 = vmatprep.subr.mxu0 0.0
    %1460 = vmatpush1.msra.mxu0 %v226
    %1461 = vmatprep.subr.mxu0 0.0
    %1462 = vmatpush2.msra.mxu0 0.0
    %1463 = vmatprep.subr.mxu0 0.0
    %1464 = vmatpush2.msra.mxu0 0.0
    %1465 = vmatprep.subr.mxu0 0.0
    %1466 = vmatpush2.msra.mxu0 0.0
    %1467 = vmatprep.subr.mxu0 0.0
    %1468 = vmatpush2.msra.mxu0 0.0
    %1469 = vmatprep.subr.mxu0 0.0
    %1470 = vmatpush2.msra.mxu0 0.0
    %1471 = vmatprep.subr.mxu0 0.0
    %1472 = vmatpush2.msra.mxu0 0.0
    %1473 = vmatprep.subr.mxu0 0.0
    %1474 = vmatpush2.msra.mxu0 0.0
    %1475 = vmatprep.subr.mxu0 0.0
    %1476 = vmatpush2.msra.mxu0 0.0
    %1477 = vmatprep.subr.mxu0 0.0
    %1478 = vmatpush2.msra.mxu0 0.0
    %1479 = vmatprep.subr.mxu0 0.0
    %1480 = vmatpush2.msra.mxu0 0.0
    %1481 = vmatprep.subr.mxu0 0.0
    %1482 = vmatpush2.msra.mxu0 0.0
    %1483 = vmatprep.subr.mxu0 0.0
    %1484 = vmatpush2.msra.mxu0 0.0
    %1485 = vmatprep.subr.mxu0 0.0
    %1486 = vmatpush2.msra.mxu0 0.0
    %1487 = vmatprep.subr.mxu0 0.0
    %1488 = vmatpush2.msra.mxu0 0.0
    %1489 = vmatprep.subr.mxu0 0.0
    %1490 = vmatpush2.msra.mxu0 0.0
    %1491 = vmatprep.subr.mxu0 0.0
    %1492 = vmatpush2.msra.mxu0 0.0
    %1493 = vmatprep.mubr.f32.mxu0 0.0
    %1494 = vmatmul.mubr.f32.gmra.mxu0 %v1427
    %v1495 = vpop.f32.mrf.mxu0
    %v1496 = vadd.f32 0.0, %v1495
    %v1497 = vpop.f32.mrf.mxu0
    %1498 = vdwg.mxu0
    %1500 = vrot.lane.b32.xlu0 %v1423, 32
    %v1501 = vpop.permute.xlu0 %1500
    %v1502 = vsel %vm236, %v1501, 0
    %1504 = vmatprep.subr.mxu0 0.0
    %1505 = vmatpush1.msra.mxu0 0.0
    %1506 = vmatprep.subr.mxu0 0.0
    %1507 = vmatpush1.msra.mxu0 0.0
    %1508 = vmatprep.subr.mxu0 0.0
    %1509 = vmatpush1.msra.mxu0 0.0
    %1510 = vmatprep.subr.mxu0 0.0
    %1511 = vmatpush1.msra.mxu0 0.0
    %1512 = vmatprep.subr.mxu0 0.0
    %1513 = vmatpush1.msra.mxu0 0.0
    %1514 = vmatprep.subr.mxu0 0.0
    %1515 = vmatpush1.msra.mxu0 0.0
    %1516 = vmatprep.subr.mxu0 0.0
    %1517 = vmatpush1.msra.mxu0 0.0
    %1518 = vmatprep.subr.mxu0 0.0
    %1519 = vmatpush1.msra.mxu0 0.0
    %1520 = vmatprep.subr.mxu0 0.0
    %1521 = vmatpush1.msra.mxu0 0.0
    %1522 = vmatprep.subr.mxu0 0.0
    %1523 = vmatpush1.msra.mxu0 0.0
    %1524 = vmatprep.subr.mxu0 0.0
    %1525 = vmatpush1.msra.mxu0 0.0
    %1526 = vmatprep.subr.mxu0 0.0
    %1527 = vmatpush1.msra.mxu0 0.0
    %1528 = vmatprep.subr.mxu0 0.0
    %1529 = vmatpush1.msra.mxu0 %v233
    %1530 = vmatprep.subr.mxu0 0.0
    %1531 = vmatpush1.msra.mxu0 %v232
    %1532 = vmatprep.subr.mxu0 0.0
    %1533 = vmatpush1.msra.mxu0 %v231
    %1534 = vmatprep.subr.mxu0 0.0
    %1535 = vmatpush1.msra.mxu0 %v230
    %1536 = vmatprep.subr.mxu0 0.0
    %1537 = vmatpush2.msra.mxu0 0.0
    %1538 = vmatprep.subr.mxu0 0.0
    %1539 = vmatpush2.msra.mxu0 0.0
    %1540 = vmatprep.subr.mxu0 0.0
    %1541 = vmatpush2.msra.mxu0 0.0
    %1542 = vmatprep.subr.mxu0 0.0
    %1543 = vmatpush2.msra.mxu0 0.0
    %1544 = vmatprep.subr.mxu0 0.0
    %1545 = vmatpush2.msra.mxu0 0.0
    %1546 = vmatprep.subr.mxu0 0.0
    %1547 = vmatpush2.msra.mxu0 0.0
    %1548 = vmatprep.subr.mxu0 0.0
    %1549 = vmatpush2.msra.mxu0 0.0
    %1550 = vmatprep.subr.mxu0 0.0
    %1551 = vmatpush2.msra.mxu0 0.0
    %1552 = vmatprep.subr.mxu0 0.0
    %1553 = vmatpush2.msra.mxu0 0.0
    %1554 = vmatprep.subr.mxu0 0.0
    %1555 = vmatpush2.msra.mxu0 0.0
    %1556 = vmatprep.subr.mxu0 0.0
    %1557 = vmatpush2.msra.mxu0 0.0
    %1558 = vmatprep.subr.mxu0 0.0
    %1559 = vmatpush2.msra.mxu0 0.0
    %1560 = vmatprep.subr.mxu0 0.0
    %1561 = vmatpush2.msra.mxu0 0.0
    %1562 = vmatprep.subr.mxu0 0.0
    %1563 = vmatpush2.msra.mxu0 0.0
    %1564 = vmatprep.subr.mxu0 0.0
    %1565 = vmatpush2.msra.mxu0 0.0
    %1566 = vmatprep.subr.mxu0 0.0
    %1567 = vmatpush2.msra.mxu0 0.0
    %1568 = vmatprep.mubr.f32.mxu0 0.0
    %1569 = vmatmul.mubr.f32.gmra.mxu0 %v1502
    %v1570 = vpop.f32.mrf.mxu0
    %v1571 = vadd.f32 %v1496, %v1570
    %v1572 = vpop.f32.mrf.mxu0
    %1573 = vdwg.mxu0
    %v1574 = vadd.f32 %v1571, %v484
    %v1575 = vxor.u32 %v1574, 2147483648
    %v1576 = vmul.f32 %v1575, 1.442695
    %v1577 = vpow.pop %v1576
    %v1578 = vadd.f32 %v1577, 1.0
    %v1579 = vrcp.pop %v1578
    %v1580 = vmul.f32 1.0, %v1579
    %v1581 = vtanh.pop %v1574
    %v1582 = vmul.f32 %v1580, %v1320
    %1584 = vrot.lane.b32.xlu0 %v1581, 64
    %v1585 = vpop.permute.xlu0 %1584
    %v1587 = vmul.f32 %v1580, %v1585
    %1589 = vrot.lane.b32.xlu0 %v1587, 32
    %v1590 = vpop.permute.xlu0 %1589
    %v1592 = vadd.f32 %v1582, %v1590
    %v1593 = vtanh.pop %v1592
    %1595 = vrot.lane.b32.xlu0 %v1593, 64
    %v1596 = vpop.permute.xlu0 %1595
    %v1598 = vmul.f32 %v1580, %v1596
    %s1599 = scalar_lea.vmem [#allocation2], 40
    %v1600 = vld [vmem:[%s1599] sm:$0xff]
    %1601 = vmatprep.subr.mxu0 0.0
    %1602 = vmatpush1.msra.mxu0 0.0
    %1603 = vmatprep.subr.mxu0 0.0
    %1604 = vmatpush1.msra.mxu0 0.0
    %1605 = vmatprep.subr.mxu0 0.0
    %1606 = vmatpush1.msra.mxu0 0.0
    %1607 = vmatprep.subr.mxu0 0.0
    %1608 = vmatpush1.msra.mxu0 0.0
    %1609 = vmatprep.subr.mxu0 0.0
    %1610 = vmatpush1.msra.mxu0 0.0
    %1611 = vmatprep.subr.mxu0 0.0
    %1612 = vmatpush1.msra.mxu0 0.0
    %1613 = vmatprep.subr.mxu0 0.0
    %1614 = vmatpush1.msra.mxu0 0.0
    %1615 = vmatprep.subr.mxu0 0.0
    %1616 = vmatpush1.msra.mxu0 0.0
    %1617 = vmatprep.subr.mxu0 0.0
    %1618 = vmatpush1.msra.mxu0 0.0
    %1619 = vmatprep.subr.mxu0 0.0
    %1620 = vmatpush1.msra.mxu0 0.0
    %1621 = vmatprep.subr.mxu0 0.0
    %1622 = vmatpush1.msra.mxu0 0.0
    %1623 = vmatprep.subr.mxu0 0.0
    %1624 = vmatpush1.msra.mxu0 0.0
    %1625 = vmatprep.subr.mxu0 0.0
    %1626 = vmatpush1.msra.mxu0 %v224
    %1627 = vmatprep.subr.mxu0 0.0
    %1628 = vmatpush1.msra.mxu0 %v223
    %1629 = vmatprep.subr.mxu0 0.0
    %1630 = vmatpush1.msra.mxu0 %v222
    %1631 = vmatprep.subr.mxu0 0.0
    %1632 = vmatpush1.msra.mxu0 %v221
    %1633 = vmatprep.subr.mxu0 0.0
    %1634 = vmatpush2.msra.mxu0 0.0
    %1635 = vmatprep.subr.mxu0 0.0
    %1636 = vmatpush2.msra.mxu0 0.0
    %1637 = vmatprep.subr.mxu0 0.0
    %1638 = vmatpush2.msra.mxu0 0.0
    %1639 = vmatprep.subr.mxu0 0.0
    %1640 = vmatpush2.msra.mxu0 0.0
    %1641 = vmatprep.subr.mxu0 0.0
    %1642 = vmatpush2.msra.mxu0 0.0
    %1643 = vmatprep.subr.mxu0 0.0
    %1644 = vmatpush2.msra.mxu0 0.0
    %1645 = vmatprep.subr.mxu0 0.0
    %1646 = vmatpush2.msra.mxu0 0.0
    %1647 = vmatprep.subr.mxu0 0.0
    %1648 = vmatpush2.msra.mxu0 0.0
    %1649 = vmatprep.subr.mxu0 0.0
    %1650 = vmatpush2.msra.mxu0 0.0
    %1651 = vmatprep.subr.mxu0 0.0
    %1652 = vmatpush2.msra.mxu0 0.0
    %1653 = vmatprep.subr.mxu0 0.0
    %1654 = vmatpush2.msra.mxu0 0.0
    %1655 = vmatprep.subr.mxu0 0.0
    %1656 = vmatpush2.msra.mxu0 0.0
    %1657 = vmatprep.subr.mxu0 0.0
    %1658 = vmatpush2.msra.mxu0 0.0
    %1659 = vmatprep.subr.mxu0 0.0
    %1660 = vmatpush2.msra.mxu0 0.0
    %1661 = vmatprep.subr.mxu0 0.0
    %1662 = vmatpush2.msra.mxu0 0.0
    %1663 = vmatprep.subr.mxu0 0.0
    %1664 = vmatpush2.msra.mxu0 0.0
    %1665 = vmatprep.mubr.f32.mxu0 0.0
    %1666 = vmatmul.mubr.f32.gmra.mxu0 %v1502
    %v1667 = vpop.f32.mrf.mxu0
    %v1668 = vadd.f32 0.0, %v1667
    %v1669 = vpop.f32.mrf.mxu0
    %1670 = vdwg.mxu0
    %v1671 = vadd.f32 %v1600, %v1668
    %v1672 = vxor.u32 %v1671, 2147483648
    %v1673 = vmul.f32 %v1672, 1.442695
    %v1674 = vpow.pop %v1673
    %v1675 = vadd.f32 %v1674, 1.0
    %v1676 = vrcp.pop %v1675
    %v1677 = vmul.f32 1.0, %v1676
    %v1678 = vtanh.pop %v1671
    %v1679 = vmul.f32 %v1677, %v1417
    %1681 = vrot.lane.b32.xlu0 %v1678, 64
    %v1682 = vpop.permute.xlu0 %1681
    %v1684 = vmul.f32 %v1677, %v1682
    %1686 = vrot.lane.b32.xlu0 %v1684, 32
    %v1687 = vpop.permute.xlu0 %1686
    %v1689 = vadd.f32 %v1679, %v1687
    %v1690 = vtanh.pop %v1689
    %1692 = vrot.lane.b32.xlu0 %v1690, 64
    %v1693 = vpop.permute.xlu0 %1692
    %v1695 = vmul.f32 %v1677, %v1693
    %1697 = vrot.lane.b32.xlu0 %v1598, 32
    %v1698 = vpop.permute.xlu0 %1697
    %v1699 = vsel %vm236, %v1698, 0
    %1701 = vmatprep.subr.mxu0 0.0
    %1702 = vmatpush1.msra.mxu0 0.0
    %1703 = vmatprep.subr.mxu0 0.0
    %1704 = vmatpush1.msra.mxu0 0.0
    %1705 = vmatprep.subr.mxu0 0.0
    %1706 = vmatpush1.msra.mxu0 0.0
    %1707 = vmatprep.subr.mxu0 0.0
    %1708 = vmatpush1.msra.mxu0 0.0
    %1709 = vmatprep.subr.mxu0 0.0
    %1710 = vmatpush1.msra.mxu0 0.0
    %1711 = vmatprep.subr.mxu0 0.0
    %1712 = vmatpush1.msra.mxu0 0.0
    %1713 = vmatprep.subr.mxu0 0.0
    %1714 = vmatpush1.msra.mxu0 0.0
    %1715 = vmatprep.subr.mxu0 0.0
    %1716 = vmatpush1.msra.mxu0 0.0
    %1717 = vmatprep.subr.mxu0 0.0
    %1718 = vmatpush1.msra.mxu0 0.0
    %1719 = vmatprep.subr.mxu0 0.0
    %1720 = vmatpush1.msra.mxu0 0.0
    %1721 = vmatprep.subr.mxu0 0.0
    %1722 = vmatpush1.msra.mxu0 0.0
    %1723 = vmatprep.subr.mxu0 0.0
    %1724 = vmatpush1.msra.mxu0 0.0
    %1725 = vmatprep.subr.mxu0 0.0
    %1726 = vmatpush1.msra.mxu0 %v229
    %1727 = vmatprep.subr.mxu0 0.0
    %1728 = vmatpush1.msra.mxu0 %v228
    %1729 = vmatprep.subr.mxu0 0.0
    %1730 = vmatpush1.msra.mxu0 %v227
    %1731 = vmatprep.subr.mxu0 0.0
    %1732 = vmatpush1.msra.mxu0 %v226
    %1733 = vmatprep.subr.mxu0 0.0
    %1734 = vmatpush2.msra.mxu0 0.0
    %1735 = vmatprep.subr.mxu0 0.0
    %1736 = vmatpush2.msra.mxu0 0.0
    %1737 = vmatprep.subr.mxu0 0.0
    %1738 = vmatpush2.msra.mxu0 0.0
    %1739 = vmatprep.subr.mxu0 0.0
    %1740 = vmatpush2.msra.mxu0 0.0
    %1741 = vmatprep.subr.mxu0 0.0
    %1742 = vmatpush2.msra.mxu0 0.0
    %1743 = vmatprep.subr.mxu0 0.0
    %1744 = vmatpush2.msra.mxu0 0.0
    %1745 = vmatprep.subr.mxu0 0.0
    %1746 = vmatpush2.msra.mxu0 0.0
    %1747 = vmatprep.subr.mxu0 0.0
    %1748 = vmatpush2.msra.mxu0 0.0
    %1749 = vmatprep.subr.mxu0 0.0
    %1750 = vmatpush2.msra.mxu0 0.0
    %1751 = vmatprep.subr.mxu0 0.0
    %1752 = vmatpush2.msra.mxu0 0.0
    %1753 = vmatprep.subr.mxu0 0.0
    %1754 = vmatpush2.msra.mxu0 0.0
    %1755 = vmatprep.subr.mxu0 0.0
    %1756 = vmatpush2.msra.mxu0 0.0
    %1757 = vmatprep.subr.mxu0 0.0
    %1758 = vmatpush2.msra.mxu0 0.0
    %1759 = vmatprep.subr.mxu0 0.0
    %1760 = vmatpush2.msra.mxu0 0.0
    %1761 = vmatprep.subr.mxu0 0.0
    %1762 = vmatpush2.msra.mxu0 0.0
    %1763 = vmatprep.subr.mxu0 0.0
    %1764 = vmatpush2.msra.mxu0 0.0
    %1765 = vmatprep.mubr.f32.mxu0 0.0
    %1766 = vmatmul.mubr.f32.gmra.mxu0 %v1699
    %v1767 = vpop.f32.mrf.mxu0
    %v1768 = vadd.f32 0.0, %v1767
    %v1769 = vpop.f32.mrf.mxu0
    %1770 = vdwg.mxu0
    %1772 = vrot.lane.b32.xlu0 %v1695, 32
    %v1773 = vpop.permute.xlu0 %1772
    %v1774 = vsel %vm236, %v1773, 0
    %1776 = vmatprep.subr.mxu0 0.0
    %1777 = vmatpush1.msra.mxu0 0.0
    %1778 = vmatprep.subr.mxu0 0.0
    %1779 = vmatpush1.msra.mxu0 0.0
    %1780 = vmatprep.subr.mxu0 0.0
    %1781 = vmatpush1.msra.mxu0 0.0
    %1782 = vmatprep.subr.mxu0 0.0
    %1783 = vmatpush1.msra.mxu0 0.0
    %1784 = vmatprep.subr.mxu0 0.0
    %1785 = vmatpush1.msra.mxu0 0.0
    %1786 = vmatprep.subr.mxu0 0.0
    %1787 = vmatpush1.msra.mxu0 0.0
    %1788 = vmatprep.subr.mxu0 0.0
    %1789 = vmatpush1.msra.mxu0 0.0
    %1790 = vmatprep.subr.mxu0 0.0
    %1791 = vmatpush1.msra.mxu0 0.0
    %1792 = vmatprep.subr.mxu0 0.0
    %1793 = vmatpush1.msra.mxu0 0.0
    %1794 = vmatprep.subr.mxu0 0.0
    %1795 = vmatpush1.msra.mxu0 0.0
    %1796 = vmatprep.subr.mxu0 0.0
    %1797 = vmatpush1.msra.mxu0 0.0
    %1798 = vmatprep.subr.mxu0 0.0
    %1799 = vmatpush1.msra.mxu0 0.0
    %1800 = vmatprep.subr.mxu0 0.0
    %1801 = vmatpush1.msra.mxu0 %v233
    %1802 = vmatprep.subr.mxu0 0.0
    %1803 = vmatpush1.msra.mxu0 %v232
    %1804 = vmatprep.subr.mxu0 0.0
    %1805 = vmatpush1.msra.mxu0 %v231
    %1806 = vmatprep.subr.mxu0 0.0
    %1807 = vmatpush1.msra.mxu0 %v230
    %1808 = vmatprep.subr.mxu0 0.0
    %1809 = vmatpush2.msra.mxu0 0.0
    %1810 = vmatprep.subr.mxu0 0.0
    %1811 = vmatpush2.msra.mxu0 0.0
    %1812 = vmatprep.subr.mxu0 0.0
    %1813 = vmatpush2.msra.mxu0 0.0
    %1814 = vmatprep.subr.mxu0 0.0
    %1815 = vmatpush2.msra.mxu0 0.0
    %1816 = vmatprep.subr.mxu0 0.0
    %1817 = vmatpush2.msra.mxu0 0.0
    %1818 = vmatprep.subr.mxu0 0.0
    %1819 = vmatpush2.msra.mxu0 0.0
    %1820 = vmatprep.subr.mxu0 0.0
    %1821 = vmatpush2.msra.mxu0 0.0
    %1822 = vmatprep.subr.mxu0 0.0
    %1823 = vmatpush2.msra.mxu0 0.0
    %1824 = vmatprep.subr.mxu0 0.0
    %1825 = vmatpush2.msra.mxu0 0.0
    %1826 = vmatprep.subr.mxu0 0.0
    %1827 = vmatpush2.msra.mxu0 0.0
    %1828 = vmatprep.subr.mxu0 0.0
    %1829 = vmatpush2.msra.mxu0 0.0
    %1830 = vmatprep.subr.mxu0 0.0
    %1831 = vmatpush2.msra.mxu0 0.0
    %1832 = vmatprep.subr.mxu0 0.0
    %1833 = vmatpush2.msra.mxu0 0.0
    %1834 = vmatprep.subr.mxu0 0.0
    %1835 = vmatpush2.msra.mxu0 0.0
    %1836 = vmatprep.subr.mxu0 0.0
    %1837 = vmatpush2.msra.mxu0 0.0
    %1838 = vmatprep.subr.mxu0 0.0
    %1839 = vmatpush2.msra.mxu0 0.0
    %1840 = vmatprep.mubr.f32.mxu0 0.0
    %1841 = vmatmul.mubr.f32.gmra.mxu0 %v1774
    %v1842 = vpop.f32.mrf.mxu0
    %v1843 = vadd.f32 %v1768, %v1842
    %v1844 = vpop.f32.mrf.mxu0
    %1845 = vdwg.mxu0
    %v1846 = vadd.f32 %v1843, %v484
    %v1847 = vxor.u32 %v1846, 2147483648
    %v1848 = vmul.f32 %v1847, 1.442695
    %v1849 = vpow.pop %v1848
    %v1850 = vadd.f32 %v1849, 1.0
    %v1851 = vrcp.pop %v1850
    %v1852 = vmul.f32 1.0, %v1851
    %v1853 = vtanh.pop %v1846
    %v1854 = vmul.f32 %v1852, %v1592
    %1856 = vrot.lane.b32.xlu0 %v1853, 64
    %v1857 = vpop.permute.xlu0 %1856
    %v1859 = vmul.f32 %v1852, %v1857
    %1861 = vrot.lane.b32.xlu0 %v1859, 32
    %v1862 = vpop.permute.xlu0 %1861
    %v1864 = vadd.f32 %v1854, %v1862
    %v1865 = vtanh.pop %v1864
    %1867 = vrot.lane.b32.xlu0 %v1865, 64
    %v1868 = vpop.permute.xlu0 %1867
    %v1870 = vmul.f32 %v1852, %v1868
    %s1871 = scalar_lea.vmem [#allocation2], 48
    %v1872 = vld [vmem:[%s1871] sm:$0xff]
    %1873 = vmatprep.subr.mxu0 0.0
    %1874 = vmatpush1.msra.mxu0 0.0
    %1875 = vmatprep.subr.mxu0 0.0
    %1876 = vmatpush1.msra.mxu0 0.0
    %1877 = vmatprep.subr.mxu0 0.0
    %1878 = vmatpush1.msra.mxu0 0.0
    %1879 = vmatprep.subr.mxu0 0.0
    %1880 = vmatpush1.msra.mxu0 0.0
    %1881 = vmatprep.subr.mxu0 0.0
    %1882 = vmatpush1.msra.mxu0 0.0
    %1883 = vmatprep.subr.mxu0 0.0
    %1884 = vmatpush1.msra.mxu0 0.0
    %1885 = vmatprep.subr.mxu0 0.0
    %1886 = vmatpush1.msra.mxu0 0.0
    %1887 = vmatprep.subr.mxu0 0.0
    %1888 = vmatpush1.msra.mxu0 0.0
    %1889 = vmatprep.subr.mxu0 0.0
    %1890 = vmatpush1.msra.mxu0 0.0
    %1891 = vmatprep.subr.mxu0 0.0
    %1892 = vmatpush1.msra.mxu0 0.0
    %1893 = vmatprep.subr.mxu0 0.0
    %1894 = vmatpush1.msra.mxu0 0.0
    %1895 = vmatprep.subr.mxu0 0.0
    %1896 = vmatpush1.msra.mxu0 0.0
    %1897 = vmatprep.subr.mxu0 0.0
    %1898 = vmatpush1.msra.mxu0 %v224
    %1899 = vmatprep.subr.mxu0 0.0
    %1900 = vmatpush1.msra.mxu0 %v223
    %1901 = vmatprep.subr.mxu0 0.0
    %1902 = vmatpush1.msra.mxu0 %v222
    %1903 = vmatprep.subr.mxu0 0.0
    %1904 = vmatpush1.msra.mxu0 %v221
    %1905 = vmatprep.subr.mxu0 0.0
    %1906 = vmatpush2.msra.mxu0 0.0
    %1907 = vmatprep.subr.mxu0 0.0
    %1908 = vmatpush2.msra.mxu0 0.0
    %1909 = vmatprep.subr.mxu0 0.0
    %1910 = vmatpush2.msra.mxu0 0.0
    %1911 = vmatprep.subr.mxu0 0.0
    %1912 = vmatpush2.msra.mxu0 0.0
    %1913 = vmatprep.subr.mxu0 0.0
    %1914 = vmatpush2.msra.mxu0 0.0
    %1915 = vmatprep.subr.mxu0 0.0
    %1916 = vmatpush2.msra.mxu0 0.0
    %1917 = vmatprep.subr.mxu0 0.0
    %1918 = vmatpush2.msra.mxu0 0.0
    %1919 = vmatprep.subr.mxu0 0.0
    %1920 = vmatpush2.msra.mxu0 0.0
    %1921 = vmatprep.subr.mxu0 0.0
    %1922 = vmatpush2.msra.mxu0 0.0
    %1923 = vmatprep.subr.mxu0 0.0
    %1924 = vmatpush2.msra.mxu0 0.0
    %1925 = vmatprep.subr.mxu0 0.0
    %1926 = vmatpush2.msra.mxu0 0.0
    %1927 = vmatprep.subr.mxu0 0.0
    %1928 = vmatpush2.msra.mxu0 0.0
    %1929 = vmatprep.subr.mxu0 0.0
    %1930 = vmatpush2.msra.mxu0 0.0
    %1931 = vmatprep.subr.mxu0 0.0
    %1932 = vmatpush2.msra.mxu0 0.0
    %1933 = vmatprep.subr.mxu0 0.0
    %1934 = vmatpush2.msra.mxu0 0.0
    %1935 = vmatprep.subr.mxu0 0.0
    %1936 = vmatpush2.msra.mxu0 0.0
    %1937 = vmatprep.mubr.f32.mxu0 0.0
    %1938 = vmatmul.mubr.f32.gmra.mxu0 %v1774
    %v1939 = vpop.f32.mrf.mxu0
    %v1940 = vadd.f32 0.0, %v1939
    %v1941 = vpop.f32.mrf.mxu0
    %1942 = vdwg.mxu0
    %v1943 = vadd.f32 %v1872, %v1940
    %v1944 = vxor.u32 %v1943, 2147483648
    %v1945 = vmul.f32 %v1944, 1.442695
    %v1946 = vpow.pop %v1945
    %v1947 = vadd.f32 %v1946, 1.0
    %v1948 = vrcp.pop %v1947
    %v1949 = vmul.f32 1.0, %v1948
    %v1950 = vtanh.pop %v1943
    %v1951 = vmul.f32 %v1949, %v1689
    %1953 = vrot.lane.b32.xlu0 %v1950, 64
    %v1954 = vpop.permute.xlu0 %1953
    %v1956 = vmul.f32 %v1949, %v1954
    %1958 = vrot.lane.b32.xlu0 %v1956, 32
    %v1959 = vpop.permute.xlu0 %1958
    %v1961 = vadd.f32 %v1951, %v1959
    %v1962 = vtanh.pop %v1961
    %1964 = vrot.lane.b32.xlu0 %v1962, 64
    %v1965 = vpop.permute.xlu0 %1964
    %v1967 = vmul.f32 %v1949, %v1965
    %1969 = vrot.lane.b32.xlu0 %v1870, 32
    %v1970 = vpop.permute.xlu0 %1969
    %v1971 = vsel %vm236, %v1970, 0
    %1973 = vmatprep.subr.mxu0 0.0
    %1974 = vmatpush1.msra.mxu0 0.0
    %1975 = vmatprep.subr.mxu0 0.0
    %1976 = vmatpush1.msra.mxu0 0.0
    %1977 = vmatprep.subr.mxu0 0.0
    %1978 = vmatpush1.msra.mxu0 0.0
    %1979 = vmatprep.subr.mxu0 0.0
    %1980 = vmatpush1.msra.mxu0 0.0
    %1981 = vmatprep.subr.mxu0 0.0
    %1982 = vmatpush1.msra.mxu0 0.0
    %1983 = vmatprep.subr.mxu0 0.0
    %1984 = vmatpush1.msra.mxu0 0.0
    %1985 = vmatprep.subr.mxu0 0.0
    %1986 = vmatpush1.msra.mxu0 0.0
    %1987 = vmatprep.subr.mxu0 0.0
    %1988 = vmatpush1.msra.mxu0 0.0
    %1989 = vmatprep.subr.mxu0 0.0
    %1990 = vmatpush1.msra.mxu0 0.0
    %1991 = vmatprep.subr.mxu0 0.0
    %1992 = vmatpush1.msra.mxu0 0.0
    %1993 = vmatprep.subr.mxu0 0.0
    %1994 = vmatpush1.msra.mxu0 0.0
    %1995 = vmatprep.subr.mxu0 0.0
    %1996 = vmatpush1.msra.mxu0 0.0
    %1997 = vmatprep.subr.mxu0 0.0
    %1998 = vmatpush1.msra.mxu0 %v229
    %1999 = vmatprep.subr.mxu0 0.0
    %2000 = vmatpush1.msra.mxu0 %v228
    %2001 = vmatprep.subr.mxu0 0.0
    %2002 = vmatpush1.msra.mxu0 %v227
    %2003 = vmatprep.subr.mxu0 0.0
    %2004 = vmatpush1.msra.mxu0 %v226
    %2005 = vmatprep.subr.mxu0 0.0
    %2006 = vmatpush2.msra.mxu0 0.0
    %2007 = vmatprep.subr.mxu0 0.0
    %2008 = vmatpush2.msra.mxu0 0.0
    %2009 = vmatprep.subr.mxu0 0.0
    %2010 = vmatpush2.msra.mxu0 0.0
    %2011 = vmatprep.subr.mxu0 0.0
    %2012 = vmatpush2.msra.mxu0 0.0
    %2013 = vmatprep.subr.mxu0 0.0
    %2014 = vmatpush2.msra.mxu0 0.0
    %2015 = vmatprep.subr.mxu0 0.0
    %2016 = vmatpush2.msra.mxu0 0.0
    %2017 = vmatprep.subr.mxu0 0.0
    %2018 = vmatpush2.msra.mxu0 0.0
    %2019 = vmatprep.subr.mxu0 0.0
    %2020 = vmatpush2.msra.mxu0 0.0
    %2021 = vmatprep.subr.mxu0 0.0
    %2022 = vmatpush2.msra.mxu0 0.0
    %2023 = vmatprep.subr.mxu0 0.0
    %2024 = vmatpush2.msra.mxu0 0.0
    %2025 = vmatprep.subr.mxu0 0.0
    %2026 = vmatpush2.msra.mxu0 0.0
    %2027 = vmatprep.subr.mxu0 0.0
    %2028 = vmatpush2.msra.mxu0 0.0
    %2029 = vmatprep.subr.mxu0 0.0
    %2030 = vmatpush2.msra.mxu0 0.0
    %2031 = vmatprep.subr.mxu0 0.0
    %2032 = vmatpush2.msra.mxu0 0.0
    %2033 = vmatprep.subr.mxu0 0.0
    %2034 = vmatpush2.msra.mxu0 0.0
    %2035 = vmatprep.subr.mxu0 0.0
    %2036 = vmatpush2.msra.mxu0 0.0
    %2037 = vmatprep.mubr.f32.mxu0 0.0
    %2038 = vmatmul.mubr.f32.gmra.mxu0 %v1971
    %v2039 = vpop.f32.mrf.mxu0
    %v2040 = vadd.f32 0.0, %v2039
    %v2041 = vpop.f32.mrf.mxu0
    %2042 = vdwg.mxu0
    %2044 = vrot.lane.b32.xlu0 %v1967, 32
    %v2045 = vpop.permute.xlu0 %2044
    %v2046 = vsel %vm236, %v2045, 0
    %2048 = vmatprep.subr.mxu0 0.0
    %2049 = vmatpush1.msra.mxu0 0.0
    %2050 = vmatprep.subr.mxu0 0.0
    %2051 = vmatpush1.msra.mxu0 0.0
    %2052 = vmatprep.subr.mxu0 0.0
    %2053 = vmatpush1.msra.mxu0 0.0
    %2054 = vmatprep.subr.mxu0 0.0
    %2055 = vmatpush1.msra.mxu0 0.0
    %2056 = vmatprep.subr.mxu0 0.0
    %2057 = vmatpush1.msra.mxu0 0.0
    %2058 = vmatprep.subr.mxu0 0.0
    %2059 = vmatpush1.msra.mxu0 0.0
    %2060 = vmatprep.subr.mxu0 0.0
    %2061 = vmatpush1.msra.mxu0 0.0
    %2062 = vmatprep.subr.mxu0 0.0
    %2063 = vmatpush1.msra.mxu0 0.0
    %2064 = vmatprep.subr.mxu0 0.0
    %2065 = vmatpush1.msra.mxu0 0.0
    %2066 = vmatprep.subr.mxu0 0.0
    %2067 = vmatpush1.msra.mxu0 0.0
    %2068 = vmatprep.subr.mxu0 0.0
    %2069 = vmatpush1.msra.mxu0 0.0
    %2070 = vmatprep.subr.mxu0 0.0
    %2071 = vmatpush1.msra.mxu0 0.0
    %2072 = vmatprep.subr.mxu0 0.0
    %2073 = vmatpush1.msra.mxu0 %v233
    %2074 = vmatprep.subr.mxu0 0.0
    %2075 = vmatpush1.msra.mxu0 %v232
    %2076 = vmatprep.subr.mxu0 0.0
    %2077 = vmatpush1.msra.mxu0 %v231
    %2078 = vmatprep.subr.mxu0 0.0
    %2079 = vmatpush1.msra.mxu0 %v230
    %2080 = vmatprep.subr.mxu0 0.0
    %2081 = vmatpush2.msra.mxu0 0.0
    %2082 = vmatprep.subr.mxu0 0.0
    %2083 = vmatpush2.msra.mxu0 0.0
    %2084 = vmatprep.subr.mxu0 0.0
    %2085 = vmatpush2.msra.mxu0 0.0
    %2086 = vmatprep.subr.mxu0 0.0
    %2087 = vmatpush2.msra.mxu0 0.0
    %2088 = vmatprep.subr.mxu0 0.0
    %2089 = vmatpush2.msra.mxu0 0.0
    %2090 = vmatprep.subr.mxu0 0.0
    %2091 = vmatpush2.msra.mxu0 0.0
    %2092 = vmatprep.subr.mxu0 0.0
    %2093 = vmatpush2.msra.mxu0 0.0
    %2094 = vmatprep.subr.mxu0 0.0
    %2095 = vmatpush2.msra.mxu0 0.0
    %2096 = vmatprep.subr.mxu0 0.0
    %2097 = vmatpush2.msra.mxu0 0.0
    %2098 = vmatprep.subr.mxu0 0.0
    %2099 = vmatpush2.msra.mxu0 0.0
    %2100 = vmatprep.subr.mxu0 0.0
    %2101 = vmatpush2.msra.mxu0 0.0
    %2102 = vmatprep.subr.mxu0 0.0
    %2103 = vmatpush2.msra.mxu0 0.0
    %2104 = vmatprep.subr.mxu0 0.0
    %2105 = vmatpush2.msra.mxu0 0.0
    %2106 = vmatprep.subr.mxu0 0.0
    %2107 = vmatpush2.msra.mxu0 0.0
    %2108 = vmatprep.subr.mxu0 0.0
    %2109 = vmatpush2.msra.mxu0 0.0
    %2110 = vmatprep.subr.mxu0 0.0
    %2111 = vmatpush2.msra.mxu0 0.0
    %2112 = vmatprep.mubr.f32.mxu0 0.0
    %2113 = vmatmul.mubr.f32.gmra.mxu0 %v2046
    %v2114 = vpop.f32.mrf.mxu0
    %v2115 = vadd.f32 %v2040, %v2114
    %v2116 = vpop.f32.mrf.mxu0
    %2117 = vdwg.mxu0
    %v2118 = vadd.f32 %v2115, %v484
    %v2119 = vxor.u32 %v2118, 2147483648
    %v2120 = vmul.f32 %v2119, 1.442695
    %v2121 = vpow.pop %v2120
    %v2122 = vadd.f32 %v2121, 1.0
    %v2123 = vrcp.pop %v2122
    %v2124 = vmul.f32 1.0, %v2123
    %v2125 = vtanh.pop %v2118
    %v2126 = vmul.f32 %v2124, %v1864
    %2128 = vrot.lane.b32.xlu0 %v2125, 64
    %v2129 = vpop.permute.xlu0 %2128
    %v2131 = vmul.f32 %v2124, %v2129
    %2133 = vrot.lane.b32.xlu0 %v2131, 32
    %v2134 = vpop.permute.xlu0 %2133
    %v2136 = vadd.f32 %v2126, %v2134
    %v2137 = vtanh.pop %v2136
    %2139 = vrot.lane.b32.xlu0 %v2137, 64
    %v2140 = vpop.permute.xlu0 %2139
    %v2142 = vmul.f32 %v2124, %v2140
    %s2143 = scalar_lea.vmem [#allocation2], 56
    %v2144 = vld [vmem:[%s2143] sm:$0xff]
    %2145 = vmatprep.subr.mxu0 0.0
    %2146 = vmatpush1.msra.mxu0 0.0
    %2147 = vmatprep.subr.mxu0 0.0
    %2148 = vmatpush1.msra.mxu0 0.0
    %2149 = vmatprep.subr.mxu0 0.0
    %2150 = vmatpush1.msra.mxu0 0.0
    %2151 = vmatprep.subr.mxu0 0.0
    %2152 = vmatpush1.msra.mxu0 0.0
    %2153 = vmatprep.subr.mxu0 0.0
    %2154 = vmatpush1.msra.mxu0 0.0
    %2155 = vmatprep.subr.mxu0 0.0
    %2156 = vmatpush1.msra.mxu0 0.0
    %2157 = vmatprep.subr.mxu0 0.0
    %2158 = vmatpush1.msra.mxu0 0.0
    %2159 = vmatprep.subr.mxu0 0.0
    %2160 = vmatpush1.msra.mxu0 0.0
    %2161 = vmatprep.subr.mxu0 0.0
    %2162 = vmatpush1.msra.mxu0 0.0
    %2163 = vmatprep.subr.mxu0 0.0
    %2164 = vmatpush1.msra.mxu0 0.0
    %2165 = vmatprep.subr.mxu0 0.0
    %2166 = vmatpush1.msra.mxu0 0.0
    %2167 = vmatprep.subr.mxu0 0.0
    %2168 = vmatpush1.msra.mxu0 0.0
    %2169 = vmatprep.subr.mxu0 0.0
    %2170 = vmatpush1.msra.mxu0 %v224
    %2171 = vmatprep.subr.mxu0 0.0
    %2172 = vmatpush1.msra.mxu0 %v223
    %2173 = vmatprep.subr.mxu0 0.0
    %2174 = vmatpush1.msra.mxu0 %v222
    %2175 = vmatprep.subr.mxu0 0.0
    %2176 = vmatpush1.msra.mxu0 %v221
    %2177 = vmatprep.subr.mxu0 0.0
    %2178 = vmatpush2.msra.mxu0 0.0
    %2179 = vmatprep.subr.mxu0 0.0
    %2180 = vmatpush2.msra.mxu0 0.0
    %2181 = vmatprep.subr.mxu0 0.0
    %2182 = vmatpush2.msra.mxu0 0.0
    %2183 = vmatprep.subr.mxu0 0.0
    %2184 = vmatpush2.msra.mxu0 0.0
    %2185 = vmatprep.subr.mxu0 0.0
    %2186 = vmatpush2.msra.mxu0 0.0
    %2187 = vmatprep.subr.mxu0 0.0
    %2188 = vmatpush2.msra.mxu0 0.0
    %2189 = vmatprep.subr.mxu0 0.0
    %2190 = vmatpush2.msra.mxu0 0.0
    %2191 = vmatprep.subr.mxu0 0.0
    %2192 = vmatpush2.msra.mxu0 0.0
    %2193 = vmatprep.subr.mxu0 0.0
    %2194 = vmatpush2.msra.mxu0 0.0
    %2195 = vmatprep.subr.mxu0 0.0
    %2196 = vmatpush2.msra.mxu0 0.0
    %2197 = vmatprep.subr.mxu0 0.0
    %2198 = vmatpush2.msra.mxu0 0.0
    %2199 = vmatprep.subr.mxu0 0.0
    %2200 = vmatpush2.msra.mxu0 0.0
    %2201 = vmatprep.subr.mxu0 0.0
    %2202 = vmatpush2.msra.mxu0 0.0
    %2203 = vmatprep.subr.mxu0 0.0
    %2204 = vmatpush2.msra.mxu0 0.0
    %2205 = vmatprep.subr.mxu0 0.0
    %2206 = vmatpush2.msra.mxu0 0.0
    %2207 = vmatprep.subr.mxu0 0.0
    %2208 = vmatpush2.msra.mxu0 0.0
    %2209 = vmatprep.mubr.f32.mxu0 0.0
    %2210 = vmatmul.mubr.f32.gmra.mxu0 %v2046
    %v2211 = vpop.f32.mrf.mxu0
    %v2212 = vadd.f32 0.0, %v2211
    %v2213 = vpop.f32.mrf.mxu0
    %2214 = vdwg.mxu0
    %v2215 = vadd.f32 %v2144, %v2212
    %v2216 = vxor.u32 %v2215, 2147483648
    %v2217 = vmul.f32 %v2216, 1.442695
    %v2218 = vpow.pop %v2217
    %v2219 = vadd.f32 %v2218, 1.0
    %v2220 = vrcp.pop %v2219
    %v2221 = vmul.f32 1.0, %v2220
    %v2222 = vtanh.pop %v2215
    %v2223 = vmul.f32 %v2221, %v1961
    %2225 = vrot.lane.b32.xlu0 %v2222, 64
    %v2226 = vpop.permute.xlu0 %2225
    %v2228 = vmul.f32 %v2221, %v2226
    %2230 = vrot.lane.b32.xlu0 %v2228, 32
    %v2231 = vpop.permute.xlu0 %2230
    %v2233 = vadd.f32 %v2223, %v2231
    %v2234 = vtanh.pop %v2233
    %2236 = vrot.lane.b32.xlu0 %v2234, 64
    %v2237 = vpop.permute.xlu0 %2236
    %v2239 = vmul.f32 %v2221, %v2237
    %2241 = vrot.lane.b32.xlu0 %v2142, 32
    %v2242 = vpop.permute.xlu0 %2241
    %v2243 = vsel %vm236, %v2242, 0
    %2245 = vmatprep.subr.mxu0 0.0
    %2246 = vmatpush1.msra.mxu0 0.0
    %2247 = vmatprep.subr.mxu0 0.0
    %2248 = vmatpush1.msra.mxu0 0.0
    %2249 = vmatprep.subr.mxu0 0.0
    %2250 = vmatpush1.msra.mxu0 0.0
    %2251 = vmatprep.subr.mxu0 0.0
    %2252 = vmatpush1.msra.mxu0 0.0
    %2253 = vmatprep.subr.mxu0 0.0
    %2254 = vmatpush1.msra.mxu0 0.0
    %2255 = vmatprep.subr.mxu0 0.0
    %2256 = vmatpush1.msra.mxu0 0.0
    %2257 = vmatprep.subr.mxu0 0.0
    %2258 = vmatpush1.msra.mxu0 0.0
    %2259 = vmatprep.subr.mxu0 0.0
    %2260 = vmatpush1.msra.mxu0 0.0
    %2261 = vmatprep.subr.mxu0 0.0
    %2262 = vmatpush1.msra.mxu0 0.0
    %2263 = vmatprep.subr.mxu0 0.0
    %2264 = vmatpush1.msra.mxu0 0.0
    %2265 = vmatprep.subr.mxu0 0.0
    %2266 = vmatpush1.msra.mxu0 0.0
    %2267 = vmatprep.subr.mxu0 0.0
    %2268 = vmatpush1.msra.mxu0 0.0
    %2269 = vmatprep.subr.mxu0 0.0
    %2270 = vmatpush1.msra.mxu0 %v229
    %2271 = vmatprep.subr.mxu0 0.0
    %2272 = vmatpush1.msra.mxu0 %v228
    %2273 = vmatprep.subr.mxu0 0.0
    %2274 = vmatpush1.msra.mxu0 %v227
    %2275 = vmatprep.subr.mxu0 0.0
    %2276 = vmatpush1.msra.mxu0 %v226
    %2277 = vmatprep.subr.mxu0 0.0
    %2278 = vmatpush2.msra.mxu0 0.0
    %2279 = vmatprep.subr.mxu0 0.0
    %2280 = vmatpush2.msra.mxu0 0.0
    %2281 = vmatprep.subr.mxu0 0.0
    %2282 = vmatpush2.msra.mxu0 0.0
    %2283 = vmatprep.subr.mxu0 0.0
    %2284 = vmatpush2.msra.mxu0 0.0
    %2285 = vmatprep.subr.mxu0 0.0
    %2286 = vmatpush2.msra.mxu0 0.0
    %2287 = vmatprep.subr.mxu0 0.0
    %2288 = vmatpush2.msra.mxu0 0.0
    %2289 = vmatprep.subr.mxu0 0.0
    %2290 = vmatpush2.msra.mxu0 0.0
    %2291 = vmatprep.subr.mxu0 0.0
    %2292 = vmatpush2.msra.mxu0 0.0
    %2293 = vmatprep.subr.mxu0 0.0
    %2294 = vmatpush2.msra.mxu0 0.0
    %2295 = vmatprep.subr.mxu0 0.0
    %2296 = vmatpush2.msra.mxu0 0.0
    %2297 = vmatprep.subr.mxu0 0.0
    %2298 = vmatpush2.msra.mxu0 0.0
    %2299 = vmatprep.subr.mxu0 0.0
    %2300 = vmatpush2.msra.mxu0 0.0
    %2301 = vmatprep.subr.mxu0 0.0
    %2302 = vmatpush2.msra.mxu0 0.0
    %2303 = vmatprep.subr.mxu0 0.0
    %2304 = vmatpush2.msra.mxu0 0.0
    %2305 = vmatprep.subr.mxu0 0.0
    %2306 = vmatpush2.msra.mxu0 0.0
    %2307 = vmatprep.subr.mxu0 0.0
    %2308 = vmatpush2.msra.mxu0 0.0
    %2309 = vmatprep.mubr.f32.mxu0 0.0
    %2310 = vmatmul.mubr.f32.gmra.mxu0 %v2243
    %v2311 = vpop.f32.mrf.mxu0
    %v2312 = vadd.f32 0.0, %v2311
    %v2313 = vpop.f32.mrf.mxu0
    %2314 = vdwg.mxu0
    %2316 = vrot.lane.b32.xlu0 %v2239, 32
    %v2317 = vpop.permute.xlu0 %2316
    %v2318 = vsel %vm236, %v2317, 0
    %2320 = vmatprep.subr.mxu0 0.0
    %2321 = vmatpush1.msra.mxu0 0.0
    %2322 = vmatprep.subr.mxu0 0.0
    %2323 = vmatpush1.msra.mxu0 0.0
    %2324 = vmatprep.subr.mxu0 0.0
    %2325 = vmatpush1.msra.mxu0 0.0
    %2326 = vmatprep.subr.mxu0 0.0
    %2327 = vmatpush1.msra.mxu0 0.0
    %2328 = vmatprep.subr.mxu0 0.0
    %2329 = vmatpush1.msra.mxu0 0.0
    %2330 = vmatprep.subr.mxu0 0.0
    %2331 = vmatpush1.msra.mxu0 0.0
    %2332 = vmatprep.subr.mxu0 0.0
    %2333 = vmatpush1.msra.mxu0 0.0
    %2334 = vmatprep.subr.mxu0 0.0
    %2335 = vmatpush1.msra.mxu0 0.0
    %2336 = vmatprep.subr.mxu0 0.0
    %2337 = vmatpush1.msra.mxu0 0.0
    %2338 = vmatprep.subr.mxu0 0.0
    %2339 = vmatpush1.msra.mxu0 0.0
    %2340 = vmatprep.subr.mxu0 0.0
    %2341 = vmatpush1.msra.mxu0 0.0
    %2342 = vmatprep.subr.mxu0 0.0
    %2343 = vmatpush1.msra.mxu0 0.0
    %2344 = vmatprep.subr.mxu0 0.0
    %2345 = vmatpush1.msra.mxu0 %v233
    %2346 = vmatprep.subr.mxu0 0.0
    %2347 = vmatpush1.msra.mxu0 %v232
    %2348 = vmatprep.subr.mxu0 0.0
    %2349 = vmatpush1.msra.mxu0 %v231
    %2350 = vmatprep.subr.mxu0 0.0
    %2351 = vmatpush1.msra.mxu0 %v230
    %2352 = vmatprep.subr.mxu0 0.0
    %2353 = vmatpush2.msra.mxu0 0.0
    %2354 = vmatprep.subr.mxu0 0.0
    %2355 = vmatpush2.msra.mxu0 0.0
    %2356 = vmatprep.subr.mxu0 0.0
    %2357 = vmatpush2.msra.mxu0 0.0
    %2358 = vmatprep.subr.mxu0 0.0
    %2359 = vmatpush2.msra.mxu0 0.0
    %2360 = vmatprep.subr.mxu0 0.0
    %2361 = vmatpush2.msra.mxu0 0.0
    %2362 = vmatprep.subr.mxu0 0.0
    %2363 = vmatpush2.msra.mxu0 0.0
    %2364 = vmatprep.subr.mxu0 0.0
    %2365 = vmatpush2.msra.mxu0 0.0
    %2366 = vmatprep.subr.mxu0 0.0
    %2367 = vmatpush2.msra.mxu0 0.0
    %2368 = vmatprep.subr.mxu0 0.0
    %2369 = vmatpush2.msra.mxu0 0.0
    %2370 = vmatprep.subr.mxu0 0.0
    %2371 = vmatpush2.msra.mxu0 0.0
    %2372 = vmatprep.subr.mxu0 0.0
    %2373 = vmatpush2.msra.mxu0 0.0
    %2374 = vmatprep.subr.mxu0 0.0
    %2375 = vmatpush2.msra.mxu0 0.0
    %2376 = vmatprep.subr.mxu0 0.0
    %2377 = vmatpush2.msra.mxu0 0.0
    %2378 = vmatprep.subr.mxu0 0.0
    %2379 = vmatpush2.msra.mxu0 0.0
    %2380 = vmatprep.subr.mxu0 0.0
    %2381 = vmatpush2.msra.mxu0 0.0
    %2382 = vmatprep.subr.mxu0 0.0
    %2383 = vmatpush2.msra.mxu0 0.0
    %2384 = vmatprep.mubr.f32.mxu0 0.0
    %2385 = vmatmul.mubr.f32.gmra.mxu0 %v2318
    %v2386 = vpop.f32.mrf.mxu0
    %v2387 = vadd.f32 %v2312, %v2386
    %v2388 = vpop.f32.mrf.mxu0
    %2389 = vdwg.mxu0
    %v2390 = vadd.f32 %v2387, %v484
    %v2391 = vxor.u32 %v2390, 2147483648
    %v2392 = vmul.f32 %v2391, 1.442695
    %v2393 = vpow.pop %v2392
    %v2394 = vadd.f32 %v2393, 1.0
    %v2395 = vrcp.pop %v2394
    %v2396 = vmul.f32 1.0, %v2395
    %v2397 = vtanh.pop %v2390
    %v2398 = vmul.f32 %v2396, %v2136
    %2400 = vrot.lane.b32.xlu0 %v2397, 64
    %v2401 = vpop.permute.xlu0 %2400
    %v2403 = vmul.f32 %v2396, %v2401
    %2405 = vrot.lane.b32.xlu0 %v2403, 32
    %v2406 = vpop.permute.xlu0 %2405
    %v2408 = vadd.f32 %v2398, %v2406
    %v2409 = vtanh.pop %v2408
    %2411 = vrot.lane.b32.xlu0 %v2409, 64
    %v2412 = vpop.permute.xlu0 %2411
    %v2414 = vmul.f32 %v2396, %v2412
    %v2415 = vtanh.pop %v2239
    %v2416 = vld [vmem:[#allocation6] sm:$0xff]
    %v2417 = vld [vmem:[#allocation6 + $0x8] sm:$0xff]
    %v2418 = vld [vmem:[#allocation6 + $0x10] sm:$0xff]
    %v2419 = vld [vmem:[#allocation6 + $0x18] sm:$0xff]
    %s2420 = scalar_lea.vmem [#allocation6], 32
    %v2421 = vld [vmem:[%s2420] sm:$0xff]
    %v2422 = vld [vmem:[%s2420 + $0x8] sm:$0xff]
    %v2423 = vld [vmem:[%s2420 + $0x10] sm:$0xff]
    %v2424 = vld [vmem:[%s2420 + $0x18] sm:$0xff]
    %2425 = vrot.lane.b32.xlu0 %v2234, 96
    %v2426 = vpop.permute.xlu0 %2425
    %v2427 = vsel %vm236, %v2426, 0
    %2429 = vmatprep.subr.mxu0 0.0
    %2430 = vmatpush1.msra.mxu0 0.0
    %2431 = vmatprep.subr.mxu0 0.0
    %2432 = vmatpush1.msra.mxu0 0.0
    %2433 = vmatprep.subr.mxu0 0.0
    %2434 = vmatpush1.msra.mxu0 0.0
    %2435 = vmatprep.subr.mxu0 0.0
    %2436 = vmatpush1.msra.mxu0 0.0
    %2437 = vmatprep.subr.mxu0 0.0
    %2438 = vmatpush1.msra.mxu0 0.0
    %2439 = vmatprep.subr.mxu0 0.0
    %2440 = vmatpush1.msra.mxu0 0.0
    %2441 = vmatprep.subr.mxu0 0.0
    %2442 = vmatpush1.msra.mxu0 0.0
    %2443 = vmatprep.subr.mxu0 0.0
    %2444 = vmatpush1.msra.mxu0 0.0
    %2445 = vmatprep.subr.mxu0 0.0
    %2446 = vmatpush1.msra.mxu0 0.0
    %2447 = vmatprep.subr.mxu0 0.0
    %2448 = vmatpush1.msra.mxu0 0.0
    %2449 = vmatprep.subr.mxu0 0.0
    %2450 = vmatpush1.msra.mxu0 0.0
    %2451 = vmatprep.subr.mxu0 0.0
    %2452 = vmatpush1.msra.mxu0 0.0
    %2453 = vmatprep.subr.mxu0 0.0
    %2454 = vmatpush1.msra.mxu0 %v2424
    %2455 = vmatprep.subr.mxu0 0.0
    %2456 = vmatpush1.msra.mxu0 %v2423
    %2457 = vmatprep.subr.mxu0 0.0
    %2458 = vmatpush1.msra.mxu0 %v2422
    %2459 = vmatprep.subr.mxu0 0.0
    %2460 = vmatpush1.msra.mxu0 %v2421
    %2461 = vmatprep.subr.mxu0 0.0
    %2462 = vmatpush2.msra.mxu0 0.0
    %2463 = vmatprep.subr.mxu0 0.0
    %2464 = vmatpush2.msra.mxu0 0.0
    %2465 = vmatprep.subr.mxu0 0.0
    %2466 = vmatpush2.msra.mxu0 0.0
    %2467 = vmatprep.subr.mxu0 0.0
    %2468 = vmatpush2.msra.mxu0 0.0
    %2469 = vmatprep.subr.mxu0 0.0
    %2470 = vmatpush2.msra.mxu0 0.0
    %2471 = vmatprep.subr.mxu0 0.0
    %2472 = vmatpush2.msra.mxu0 0.0
    %2473 = vmatprep.subr.mxu0 0.0
    %2474 = vmatpush2.msra.mxu0 0.0
    %2475 = vmatprep.subr.mxu0 0.0
    %2476 = vmatpush2.msra.mxu0 0.0
    %2477 = vmatprep.subr.mxu0 0.0
    %2478 = vmatpush2.msra.mxu0 0.0
    %2479 = vmatprep.subr.mxu0 0.0
    %2480 = vmatpush2.msra.mxu0 0.0
    %2481 = vmatprep.subr.mxu0 0.0
    %2482 = vmatpush2.msra.mxu0 0.0
    %2483 = vmatprep.subr.mxu0 0.0
    %2484 = vmatpush2.msra.mxu0 0.0
    %2485 = vmatprep.subr.mxu0 0.0
    %2486 = vmatpush2.msra.mxu0 0.0
    %2487 = vmatprep.subr.mxu0 0.0
    %2488 = vmatpush2.msra.mxu0 0.0
    %2489 = vmatprep.subr.mxu0 0.0
    %2490 = vmatpush2.msra.mxu0 0.0
    %2491 = vmatprep.subr.mxu0 0.0
    %2492 = vmatpush2.msra.mxu0 0.0
    %2493 = vmatprep.mubr.f32.mxu0 0.0
    %2494 = vmatmul.mubr.f32.gmra.mxu0 %v2427
    %v2495 = vpop.f32.mrf.mxu0
    %v2496 = vadd.f32 0.0, %v2495
    %v2497 = vpop.f32.mrf.mxu0
    %2498 = vdwg.mxu0
    %2500 = vrot.lane.b32.xlu0 %v2415, 32
    %v2501 = vpop.permute.xlu0 %2500
    %v2502 = vsel %vm236, %v2501, 0
    %2504 = vmatprep.subr.mxu0 0.0
    %2505 = vmatpush1.msra.mxu0 0.0
    %2506 = vmatprep.subr.mxu0 0.0
    %2507 = vmatpush1.msra.mxu0 0.0
    %2508 = vmatprep.subr.mxu0 0.0
    %2509 = vmatpush1.msra.mxu0 0.0
    %2510 = vmatprep.subr.mxu0 0.0
    %2511 = vmatpush1.msra.mxu0 0.0
    %2512 = vmatprep.subr.mxu0 0.0
    %2513 = vmatpush1.msra.mxu0 0.0
    %2514 = vmatprep.subr.mxu0 0.0
    %2515 = vmatpush1.msra.mxu0 0.0
    %2516 = vmatprep.subr.mxu0 0.0
    %2517 = vmatpush1.msra.mxu0 0.0
    %2518 = vmatprep.subr.mxu0 0.0
    %2519 = vmatpush1.msra.mxu0 0.0
    %2520 = vmatprep.subr.mxu0 0.0
    %2521 = vmatpush1.msra.mxu0 0.0
    %2522 = vmatprep.subr.mxu0 0.0
    %2523 = vmatpush1.msra.mxu0 0.0
    %2524 = vmatprep.subr.mxu0 0.0
    %2525 = vmatpush1.msra.mxu0 0.0
    %2526 = vmatprep.subr.mxu0 0.0
    %2527 = vmatpush1.msra.mxu0 0.0
    %2528 = vmatprep.subr.mxu0 0.0
    %2529 = vmatpush1.msra.mxu0 %v2419
    %2530 = vmatprep.subr.mxu0 0.0
    %2531 = vmatpush1.msra.mxu0 %v2418
    %2532 = vmatprep.subr.mxu0 0.0
    %2533 = vmatpush1.msra.mxu0 %v2417
    %2534 = vmatprep.subr.mxu0 0.0
    %2535 = vmatpush1.msra.mxu0 %v2416
    %2536 = vmatprep.subr.mxu0 0.0
    %2537 = vmatpush2.msra.mxu0 0.0
    %2538 = vmatprep.subr.mxu0 0.0
    %2539 = vmatpush2.msra.mxu0 0.0
    %2540 = vmatprep.subr.mxu0 0.0
    %2541 = vmatpush2.msra.mxu0 0.0
    %2542 = vmatprep.subr.mxu0 0.0
    %2543 = vmatpush2.msra.mxu0 0.0
    %2544 = vmatprep.subr.mxu0 0.0
    %2545 = vmatpush2.msra.mxu0 0.0
    %2546 = vmatprep.subr.mxu0 0.0
    %2547 = vmatpush2.msra.mxu0 0.0
    %2548 = vmatprep.subr.mxu0 0.0
    %2549 = vmatpush2.msra.mxu0 0.0
    %2550 = vmatprep.subr.mxu0 0.0
    %2551 = vmatpush2.msra.mxu0 0.0
    %2552 = vmatprep.subr.mxu0 0.0
    %2553 = vmatpush2.msra.mxu0 0.0
    %2554 = vmatprep.subr.mxu0 0.0
    %2555 = vmatpush2.msra.mxu0 0.0
    %2556 = vmatprep.subr.mxu0 0.0
    %2557 = vmatpush2.msra.mxu0 0.0
    %2558 = vmatprep.subr.mxu0 0.0
    %2559 = vmatpush2.msra.mxu0 0.0
    %2560 = vmatprep.subr.mxu0 0.0
    %2561 = vmatpush2.msra.mxu0 0.0
    %2562 = vmatprep.subr.mxu0 0.0
    %2563 = vmatpush2.msra.mxu0 0.0
    %2564 = vmatprep.subr.mxu0 0.0
    %2565 = vmatpush2.msra.mxu0 0.0
    %2566 = vmatprep.subr.mxu0 0.0
    %2567 = vmatpush2.msra.mxu0 0.0
    %2568 = vmatprep.mubr.f32.mxu0 0.0
    %2569 = vmatmul.mubr.f32.gmra.mxu0 %v2502
    %v2570 = vpop.f32.mrf.mxu0
    %v2571 = vadd.f32 %v2496, %v2570
    %v2572 = vpop.f32.mrf.mxu0
    %2573 = vdwg.mxu0
    %v2574 = vtanh.pop %v2414
    %s2575 = scalar_lea.vmem [#allocation6], 64
    %v2576 = vld [vmem:[%s2575] sm:$0xff]
    %v2577 = vld [vmem:[%s2575 + $0x8] sm:$0xff]
    %v2578 = vld [vmem:[%s2575 + $0x10] sm:$0xff]
    %v2579 = vld [vmem:[%s2575 + $0x18] sm:$0xff]
    %2581 = vrot.lane.b32.xlu0 %v2574, 32
    %v2582 = vpop.permute.xlu0 %2581
    %v2583 = vsel %vm236, %v2582, 0
    %2585 = vmatprep.subr.mxu0 0.0
    %2586 = vmatpush1.msra.mxu0 0.0
    %2587 = vmatprep.subr.mxu0 0.0
    %2588 = vmatpush1.msra.mxu0 0.0
    %2589 = vmatprep.subr.mxu0 0.0
    %2590 = vmatpush1.msra.mxu0 0.0
    %2591 = vmatprep.subr.mxu0 0.0
    %2592 = vmatpush1.msra.mxu0 0.0
    %2593 = vmatprep.subr.mxu0 0.0
    %2594 = vmatpush1.msra.mxu0 0.0
    %2595 = vmatprep.subr.mxu0 0.0
    %2596 = vmatpush1.msra.mxu0 0.0
    %2597 = vmatprep.subr.mxu0 0.0
    %2598 = vmatpush1.msra.mxu0 0.0
    %2599 = vmatprep.subr.mxu0 0.0
    %2600 = vmatpush1.msra.mxu0 0.0
    %2601 = vmatprep.subr.mxu0 0.0
    %2602 = vmatpush1.msra.mxu0 0.0
    %2603 = vmatprep.subr.mxu0 0.0
    %2604 = vmatpush1.msra.mxu0 0.0
    %2605 = vmatprep.subr.mxu0 0.0
    %2606 = vmatpush1.msra.mxu0 0.0
    %2607 = vmatprep.subr.mxu0 0.0
    %2608 = vmatpush1.msra.mxu0 0.0
    %2609 = vmatprep.subr.mxu0 0.0
    %2610 = vmatpush1.msra.mxu0 %v2579
    %2611 = vmatprep.subr.mxu0 0.0
    %2612 = vmatpush1.msra.mxu0 %v2578
    %2613 = vmatprep.subr.mxu0 0.0
    %2614 = vmatpush1.msra.mxu0 %v2577
    %2615 = vmatprep.subr.mxu0 0.0
    %2616 = vmatpush1.msra.mxu0 %v2576
    %2617 = vmatprep.subr.mxu0 0.0
    %2618 = vmatpush2.msra.mxu0 0.0
    %2619 = vmatprep.subr.mxu0 0.0
    %2620 = vmatpush2.msra.mxu0 0.0
    %2621 = vmatprep.subr.mxu0 0.0
    %2622 = vmatpush2.msra.mxu0 0.0
    %2623 = vmatprep.subr.mxu0 0.0
    %2624 = vmatpush2.msra.mxu0 0.0
    %2625 = vmatprep.subr.mxu0 0.0
    %2626 = vmatpush2.msra.mxu0 0.0
    %2627 = vmatprep.subr.mxu0 0.0
    %2628 = vmatpush2.msra.mxu0 0.0
    %2629 = vmatprep.subr.mxu0 0.0
    %2630 = vmatpush2.msra.mxu0 0.0
    %2631 = vmatprep.subr.mxu0 0.0
    %2632 = vmatpush2.msra.mxu0 0.0
    %2633 = vmatprep.subr.mxu0 0.0
    %2634 = vmatpush2.msra.mxu0 0.0
    %2635 = vmatprep.subr.mxu0 0.0
    %2636 = vmatpush2.msra.mxu0 0.0
    %2637 = vmatprep.subr.mxu0 0.0
    %2638 = vmatpush2.msra.mxu0 0.0
    %2639 = vmatprep.subr.mxu0 0.0
    %2640 = vmatpush2.msra.mxu0 0.0
    %2641 = vmatprep.subr.mxu0 0.0
    %2642 = vmatpush2.msra.mxu0 0.0
    %2643 = vmatprep.subr.mxu0 0.0
    %2644 = vmatpush2.msra.mxu0 0.0
    %2645 = vmatprep.subr.mxu0 0.0
    %2646 = vmatpush2.msra.mxu0 0.0
    %2647 = vmatprep.subr.mxu0 0.0
    %2648 = vmatpush2.msra.mxu0 0.0
    %2649 = vmatprep.mubr.f32.mxu0 0.0
    %2650 = vmatmul.mubr.f32.gmra.mxu0 %v2583
    %v2651 = vpop.f32.mrf.mxu0
    %v2652 = vadd.f32 0.0, %v2651
    %v2653 = vpop.f32.mrf.mxu0
    %2654 = vdwg.mxu0
    %v2655 = vadd.f32 %v2571, %v2652
    %s2656 = scalar_lea.vmem [#allocation6], 96
    %v2657 = vld [vmem:[%s2656] sm:$0xff]
    %v2658 = vld [vmem:[%s2656 + $0x8] sm:$0xff]
    %v2659 = vld [vmem:[%s2656 + $0x10] sm:$0xff]
    %v2660 = vld [vmem:[%s2656 + $0x18] sm:$0xff]
    %2661 = vrot.lane.b32.xlu0 %v2409, 96
    %v2662 = vpop.permute.xlu0 %2661
    %v2663 = vsel %vm236, %v2662, 0
    %2665 = vmatprep.subr.mxu0 0.0
    %2666 = vmatpush1.msra.mxu0 0.0
    %2667 = vmatprep.subr.mxu0 0.0
    %2668 = vmatpush1.msra.mxu0 0.0
    %2669 = vmatprep.subr.mxu0 0.0
    %2670 = vmatpush1.msra.mxu0 0.0
    %2671 = vmatprep.subr.mxu0 0.0
    %2672 = vmatpush1.msra.mxu0 0.0
    %2673 = vmatprep.subr.mxu0 0.0
    %2674 = vmatpush1.msra.mxu0 0.0
    %2675 = vmatprep.subr.mxu0 0.0
    %2676 = vmatpush1.msra.mxu0 0.0
    %2677 = vmatprep.subr.mxu0 0.0
    %2678 = vmatpush1.msra.mxu0 0.0
    %2679 = vmatprep.subr.mxu0 0.0
    %2680 = vmatpush1.msra.mxu0 0.0
    %2681 = vmatprep.subr.mxu0 0.0
    %2682 = vmatpush1.msra.mxu0 0.0
    %2683 = vmatprep.subr.mxu0 0.0
    %2684 = vmatpush1.msra.mxu0 0.0
    %2685 = vmatprep.subr.mxu0 0.0
    %2686 = vmatpush1.msra.mxu0 0.0
    %2687 = vmatprep.subr.mxu0 0.0
    %2688 = vmatpush1.msra.mxu0 0.0
    %2689 = vmatprep.subr.mxu0 0.0
    %2690 = vmatpush1.msra.mxu0 %v2660
    %2691 = vmatprep.subr.mxu0 0.0
    %2692 = vmatpush1.msra.mxu0 %v2659
    %2693 = vmatprep.subr.mxu0 0.0
    %2694 = vmatpush1.msra.mxu0 %v2658
    %2695 = vmatprep.subr.mxu0 0.0
    %2696 = vmatpush1.msra.mxu0 %v2657
    %2697 = vmatprep.subr.mxu0 0.0
    %2698 = vmatpush2.msra.mxu0 0.0
    %2699 = vmatprep.subr.mxu0 0.0
    %2700 = vmatpush2.msra.mxu0 0.0
    %2701 = vmatprep.subr.mxu0 0.0
    %2702 = vmatpush2.msra.mxu0 0.0
    %2703 = vmatprep.subr.mxu0 0.0
    %2704 = vmatpush2.msra.mxu0 0.0
    %2705 = vmatprep.subr.mxu0 0.0
    %2706 = vmatpush2.msra.mxu0 0.0
    %2707 = vmatprep.subr.mxu0 0.0
    %2708 = vmatpush2.msra.mxu0 0.0
    %2709 = vmatprep.subr.mxu0 0.0
    %2710 = vmatpush2.msra.mxu0 0.0
    %2711 = vmatprep.subr.mxu0 0.0
    %2712 = vmatpush2.msra.mxu0 0.0
    %2713 = vmatprep.subr.mxu0 0.0
    %2714 = vmatpush2.msra.mxu0 0.0
    %2715 = vmatprep.subr.mxu0 0.0
    %2716 = vmatpush2.msra.mxu0 0.0
    %2717 = vmatprep.subr.mxu0 0.0
    %2718 = vmatpush2.msra.mxu0 0.0
    %2719 = vmatprep.subr.mxu0 0.0
    %2720 = vmatpush2.msra.mxu0 0.0
    %2721 = vmatprep.subr.mxu0 0.0
    %2722 = vmatpush2.msra.mxu0 0.0
    %2723 = vmatprep.subr.mxu0 0.0
    %2724 = vmatpush2.msra.mxu0 0.0
    %2725 = vmatprep.subr.mxu0 0.0
    %2726 = vmatpush2.msra.mxu0 0.0
    %2727 = vmatprep.subr.mxu0 0.0
    %2728 = vmatpush2.msra.mxu0 0.0
    %2729 = vmatprep.mubr.f32.mxu0 0.0
    %2730 = vmatmul.mubr.f32.gmra.mxu0 %v2663
    %v2731 = vpop.f32.mrf.mxu0
    %v2732 = vadd.f32 0.0, %v2731
    %v2733 = vpop.f32.mrf.mxu0
    %2734 = vdwg.mxu0
    %v2735 = vadd.f32 %v2655, %v2732
    %v2736 = vld [vmem:[%s7] sm:$0x1]
    %v2738 = vlaneseq
    %v2739 = vshrl.u32 %v2738, 7
    %v2740 = vsub.s32 0, %v2739
    %v2741 = vrot.slane %v2736, %v2740
    %v2743 = vadd.f32 %v2735, %v2741
    %2744 = vst [vmem:[#allocation8] sm:$0xff] %v2743
    // Predicated region
    $region42: #{tpu_custom_call.1} parent=1 // pred_check
      _
    $region43: #{tpu_custom_call.1} parent=1 // pred_check_branch
      %2746 = sbr.rel (0) target = $region45
    $region44: #{tpu_custom_call.1} parent=1 // pred_region
      %s2748 = ssub.s32 128, 128
      %2749 = vsyncadd [#allocation5], %s2748
      %s2751 = sshll.u32 [#allocation8], 4
      %s2752 = int_to_ptr.vmem [resolvable:$true] %s2751
      %2754 = dma.vmem_to_hbm [thread:$0]  %s2752, 128, %s8, [#allocation5]
    $region45: #{tpu_custom_call.1} parent=1 // pred_fallthru
      _
    // Predicated region
    $region46: #{tpu_custom_call.1} parent=1 // pred_check
      _
    $region47: #{tpu_custom_call.1} parent=1 // pred_check_branch
      %2756 = sbr.rel (0) target = $region49
    $region48: #{tpu_custom_call.1} parent=1 // pred_region
      %2757 = dma.done [#allocation5], 128
    $region49: #{tpu_custom_call.1} parent=1 // pred_fallthru
      _
    %2758 = vsyncpa [#allocation4], 1
    %2759 = vsyncpa [#allocation7], 1
    %2760 = vsyncpa [#allocation5], 1

</llo_original>
